<compile_context>
chip_gen: v6e
topology: v6e:2x2x1
jax: 0.10.0
libtpu: 0.0.40
codegen_flags: <defaults>
</compile_context>

<pallas_src>
import jax
import jax.numpy as jnp
from jax.experimental import pallas as pl
from jax.experimental.pallas import tpu as pltpu


# ------------------------------ fused kernel --------------------------------

def _cnn_kernel(g_ref, wc_ref, bc_ref, w1_ref, b1_ref, w2_ref, b2_ref,
                o_ref, flat_ref):
    """Forward for T images (one grid step).

    g_ref  : (14*T, 256) tap slab, rows ordered (pooled_row i, image t)
    wc_ref : (4, 256, 256) per-pool-phase conv weights (stencil folded in)
    bc_ref : (1, 256)  conv bias at lanes c*16+j (j<14), zeros elsewhere
    w1_ref : (3584, 64) fc1 weights matching the flat layout i*256 + c*16 + j
    b1_ref : (1, 64), w2_ref: (64, 128) zero-padded, b2_ref: (1, 128) (-1e30 pad)
    o_ref  : (T, 128) softmax probabilities (lanes >= 10 are ~0)
    flat_ref: (T, 3584) VMEM scratch for the flattened pooled features
    """
    f32 = jnp.float32
    T = o_ref.shape[0]
    n_rows = g_ref.shape[0] // T                     # 14 pooled rows

    g = g_ref[...].astype(wc_ref.dtype)              # (14*T, 256)

    # Conv 3x3 (pad 1) + bias + ReLU per pooling phase, then elementwise max
    # of the 4 phases == 2x2 stride-2 maxpool (ReLU is monotonic, so
    # max(relu(.)) == relu(max(.)) and the order matches torch semantics).
    pooled = None
    for p in range(4):
        a = jnp.dot(g, wc_ref[p], preferred_element_type=f32)     # (14*T, 256)
        a = jnp.maximum(a + bc_ref[...], 0.0)
        pooled = a if pooled is None else jnp.maximum(pooled, a)

    # Flatten (i, t) rows -> (t, i*256 + ...) lanes with 256-aligned copies.
    for i in range(n_rows):
        flat_ref[:, i * 256:(i + 1) * 256] = pooled[i * T:(i + 1) * T, :]

    # fc1 + ReLU as a single (T, 3584) @ (3584, 64) matmul.
    h = jnp.dot(flat_ref[...].astype(w1_ref.dtype), w1_ref[...],
                preferred_element_type=f32) + b1_ref[...]
    h = jnp.maximum(h, 0.0)                                        # (T, 64)

    # fc2 + softmax over 128 lanes; pad lanes carry -1e30 bias -> exp == 0.
    logits = jnp.dot(h.astype(w2_ref.dtype), w2_ref[...],
                     preferred_element_type=f32) + b2_ref[...]     # (T, 128)
    m = jnp.max(logits, axis=-1, keepdims=True)
    e = jnp.exp(logits - m)
    o_ref[...] = (e / jnp.sum(e, axis=-1, keepdims=True)).astype(o_ref.dtype)


# --------------------------- one-time weight packing --------------------------

def pack_params(conv_w, conv_b, w1, b1, w2, b2, mxu_dtype=jnp.float32):
    """Host-side weight repack.  Call ONCE; reuse the result for every forward."""
    f32 = jnp.float32
    w = conv_w.reshape(16, 3, 3).astype(f32)
    eye = jnp.eye(14, dtype=f32)

    # wc[p, (4r+s)*16 + j', c*16 + j] = w[c, r-py, s-px] * (j'==j), p = 2*py+px.
    blocks = jnp.zeros((4, 4, 4, 14, 16, 14), f32)      # [p, r, s, j', c, j]
    for py in range(2):
        for px in range(2):
            p = 2 * py + px
            for dy in range(3):
                for dx in range(3):
                    r, s = py + dy, px + dx
                    blk = eye[:, None, :] * w[None, :, dy, dx, None]  # (14,16,14)
                    blocks = blocks.at[p, r, s].set(blk)
    blocks = jnp.pad(blocks, ((0, 0), (0, 0), (0, 0), (0, 2), (0, 0), (0, 2)))
    wc = blocks.reshape(4, 256, 256).astype(mxu_dtype)

    bc = jnp.pad(jnp.broadcast_to(conv_b.astype(f32)[:, None], (16, 14)),
                 ((0, 0), (0, 2))).reshape(1, 256)

    # fc1: torch flattens CHW (c*196 + i*14 + j); our flat layout is
    # i*256 + c*16 + j with zero rows at the j-pad positions.
    w1r = w1.astype(f32).reshape(64, 16, 14, 14)          # [n, c, i, j]
    w1p = jnp.pad(jnp.transpose(w1r, (2, 1, 3, 0)),       # [i, c, j, n]
                  ((0, 0), (0, 0), (0, 2), (0, 0))).reshape(3584, 64)
    w1p = w1p.astype(mxu_dtype)
    b1p = b1.astype(f32).reshape(1, 64)

    # fc2: pad N to 128 lanes; pad-lane bias = -1e30 so softmax ignores them.
    w2p = jnp.pad(w2.astype(f32).T, ((0, 0), (0, 118))).astype(mxu_dtype)  # (64,128)
    b2p = jnp.full((1, 128), -1e30, f32).at[0, :10].set(b2.astype(f32))

    return dict(wc=wc, bc=bc, w1=w1p, b1=b1p, w2=w2p, b2=b2p)


# ------------------------------ full forward ---------------------------------

def cnn_forward(x, params, *, images_per_step=8):
    """x: anything reshapeable to (-1, 1, 28, 28).  Returns (B, 10) softmax."""
    T = images_per_step
    assert T % 8 == 0, "images_per_step must be a multiple of 8 (sublane tile)"

    x = x.reshape(-1, 28, 28).astype(jnp.float32)        # x.view(-1, 1, 28, 28)
    B = x.shape[0]
    steps = -(-B // T)
    Bp = steps * T

    # Zero-pad batch (to a multiple of T) and spatial (conv padding=1), then
    # build the lane-dense tap slab G: G[b, i, (4r+s)*16 + j'] = xp[b, 2i+r, 2j'+s].
    xp = jnp.pad(x, ((0, Bp - B), (1, 1), (1, 1)))                    # (Bp, 30, 30)
    taps = [jnp.pad(xp[:, r:r + 28:2, s:s + 28:2], ((0, 0), (0, 0), (0, 2)))
            for r in range(4) for s in range(4)]                      # 16 x (Bp,14,16)
    g = jnp.stack(taps, axis=2).reshape(Bp, 14, 256)
    # Rows per grid step ordered (pooled_row i, image t) so the in-kernel
    # flatten uses only sublane/lane-aligned copies.
    g = (g.reshape(steps, T, 14, 256).transpose(0, 2, 1, 3)
          .reshape(steps * 14 * T, 256))

    out = pl.pallas_call(
        _cnn_kernel,
        out_shape=jax.ShapeDtypeStruct((Bp, 128), jnp.float32),
        grid=(steps,),
        in_specs=[
            pl.BlockSpec((14 * T, 256), lambda i: (i, 0)),     # tap slab (per step)
            pl.BlockSpec((4, 256, 256), lambda i: (0, 0, 0)),  # conv weights
            pl.BlockSpec((1, 256), lambda i: (0, 0)),          # conv bias
            pl.BlockSpec((3584, 64), lambda i: (0, 0)),        # fc1 weights
            pl.BlockSpec((1, 64), lambda i: (0, 0)),           # fc1 bias
            pl.BlockSpec((64, 128), lambda i: (0, 0)),         # fc2 weights (padded)
            pl.BlockSpec((1, 128), lambda i: (0, 0)),          # fc2 bias (padded)
        ],
        out_specs=pl.BlockSpec((T, 128), lambda i: (i, 0)),
        scratch_shapes=[pltpu.VMEM((T, 14 * 256), jnp.float32)],
        compiler_params=pltpu.CompilerParams(
            dimension_semantics=("parallel",)),                 # megacore on v7x
    )(g, params["wc"], params["bc"], params["w1"], params["b1"],
      params["w2"], params["b2"])

    return out[:B, :10]


# ------------------------------ pure-JAX reference ---------------------------

def reference_forward(x, conv_w, conv_b, w1, b1, w2, b2):
    x = x.reshape(-1, 1, 28, 28)
    B = x.shape[0]
    y = jax.lax.conv_general_dilated(
        x, conv_w, window_strides=(1, 1), padding=((1, 1), (1, 1)),
        dimension_numbers=("NCHW", "OIHW", "NCHW"))
    y = jnp.maximum(y + conv_b[None, :, None, None], 0.0)
    y = y.reshape(B, 16, 14, 2, 14, 2).max(axis=(3, 5))
    f = y.reshape(B, 16 * 14 * 14)
    h = jnp.maximum(f @ w1.T + b1, 0.0)
    return jax.nn.softmax(h @ w2.T + b2, axis=1)


# ----------------------------------- main ------------------------------------

if __name__ == "__main__":
    key = jax.random.PRNGKey(0)
    k_x, k_cw, k_cb, k_w1, k_b1, k_w2, k_b2 = jax.random.split(key, 7)

    B = 12                                   # pads to 16 -> 2 grid steps of T=8
    x = jax.random.normal(k_x, (B, 1, 28, 28), jnp.float32)

    # Deterministic synthetic parameters (shapes from the module's __init__).
    conv_w = jax.random.normal(k_cw, (16, 1, 3, 3), jnp.float32) * 0.1
    conv_b = jax.random.normal(k_cb, (16,), jnp.float32) * 0.1
    w1 = jax.random.normal(k_w1, (64, 16 * 14 * 14), jnp.float32) * 0.02
    b1 = jax.random.normal(k_b1, (64,), jnp.float32) * 0.02
    w2 = jax.random.normal(k_w2, (10, 64), jnp.float32) * 0.1
    b2 = jax.random.normal(k_b2, (10,), jnp.float32) * 0.1

    params = pack_params(conv_w, conv_b, w1, b1, w2, b2)   # one-time host prep

    fwd = jax.jit(cnn_forward)
    out = jax.block_until_ready(fwd(x, params))

    ref = reference_forward(x, conv_w, conv_b, w1, b1, w2, b2)
    assert out.shape == (B, 10)
    assert jnp.allclose(out, ref, atol=1e-3, rtol=1e-3), (out, ref)

    print("KERNEL_OK")
</pallas_src>

<mosaic_0001>
module attributes {stable_mosaic.version = 11 : i64} {
  func.func @_cnn_kernel(%arg0: i32, %arg1: memref<112x256xf32, #tpu.memory_space<vmem>>, %arg2: memref<4x256x256xf32, #tpu.memory_space<vmem>>, %arg3: memref<1x256xf32, #tpu.memory_space<vmem>>, %arg4: memref<3584x64xf32, #tpu.memory_space<vmem>>, %arg5: memref<1x64xf32, #tpu.memory_space<vmem>>, %arg6: memref<64x128xf32, #tpu.memory_space<vmem>>, %arg7: memref<1x128xf32, #tpu.memory_space<vmem>>, %arg8: memref<8x128xf32, #tpu.memory_space<vmem>>, %arg9: memref<8x3584xf32, #tpu.memory_space<vmem>>) attributes {dimension_semantics = [#tpu.dimension_semantics<parallel>], iteration_bounds = array<i64: 2>, scalar_prefetch = 0 : i64, scratch_operands = 1 : i64, tpu.core_type = #tpu.core_type<tc>, window_params = [{transform_indices = @transform_0, window_bounds = array<i64: 112, 256>}, {pipeline_mode = #tpu.pipeline_mode<synchronous>, transform_indices = @transform_1, window_bounds = array<i64: 4, 256, 256>}, {pipeline_mode = #tpu.pipeline_mode<synchronous>, transform_indices = @transform_2, window_bounds = array<i64: 1, 256>}, {pipeline_mode = #tpu.pipeline_mode<synchronous>, transform_indices = @transform_3, window_bounds = array<i64: 3584, 64>}, {pipeline_mode = #tpu.pipeline_mode<synchronous>, transform_indices = @transform_4, window_bounds = array<i64: 1, 64>}, {pipeline_mode = #tpu.pipeline_mode<synchronous>, transform_indices = @transform_5, window_bounds = array<i64: 64, 128>}, {pipeline_mode = #tpu.pipeline_mode<synchronous>, transform_indices = @transform_6, window_bounds = array<i64: 1, 128>}, {transform_indices = @transform_7, window_bounds = array<i64: 8, 128>}]} {
    %c0 = arith.constant 0 : index
    %c0_0 = arith.constant 0 : index
    %0 = vector.load %arg1[%c0, %c0_0] : memref<112x256xf32, #tpu.memory_space<vmem>>, vector<112x256xf32>
    %c0_1 = arith.constant 0 : index
    %c0_2 = arith.constant 0 : index
    %c0_3 = arith.constant 0 : index
    %1 = vector.load %arg2[%c0_1, %c0_2, %c0_3] : memref<4x256x256xf32, #tpu.memory_space<vmem>>, vector<1x256x256xf32>
    %2 = vector.shape_cast %1 : vector<1x256x256xf32> to vector<256x256xf32>
    %cst = arith.constant dense<0.000000e+00> : vector<112x256xf32>
    %3 = tpu.matmul %0, %2, %cst {dimension_numbers = #tpu.dot_dimension_numbers<[1], [0], [0], [1], [0, 0, 1, 1], [], []>} : vector<112x256xf32>, vector<256x256xf32>, vector<112x256xf32> -> vector<112x256xf32>
    %c0_4 = arith.constant 0 : index
    %c0_5 = arith.constant 0 : index
    %4 = vector.load %arg3[%c0_4, %c0_5] : memref<1x256xf32, #tpu.memory_space<vmem>>, vector<1x256xf32>
    %5 = vector.broadcast %4 : vector<1x256xf32> to vector<112x256xf32>
    %6 = arith.addf %3, %5 : vector<112x256xf32>
    %cst_6 = arith.constant 0.000000e+00 : f32
    %7 = vector.broadcast %cst_6 : f32 to vector<112x256xf32>
    %8 = arith.maximumf %6, %7 : vector<112x256xf32>
    %c1 = arith.constant 1 : index
    %c0_7 = arith.constant 0 : index
    %c0_8 = arith.constant 0 : index
    %9 = vector.load %arg2[%c1, %c0_7, %c0_8] : memref<4x256x256xf32, #tpu.memory_space<vmem>>, vector<1x256x256xf32>
    %10 = vector.shape_cast %9 : vector<1x256x256xf32> to vector<256x256xf32>
    %cst_9 = arith.constant dense<0.000000e+00> : vector<112x256xf32>
    %11 = tpu.matmul %0, %10, %cst_9 {dimension_numbers = #tpu.dot_dimension_numbers<[1], [0], [0], [1], [0, 0, 1, 1], [], []>} : vector<112x256xf32>, vector<256x256xf32>, vector<112x256xf32> -> vector<112x256xf32>
    %c0_10 = arith.constant 0 : index
    %c0_11 = arith.constant 0 : index
    %12 = vector.load %arg3[%c0_10, %c0_11] : memref<1x256xf32, #tpu.memory_space<vmem>>, vector<1x256xf32>
    %13 = vector.broadcast %12 : vector<1x256xf32> to vector<112x256xf32>
    %14 = arith.addf %11, %13 : vector<112x256xf32>
    %cst_12 = arith.constant 0.000000e+00 : f32
    %15 = vector.broadcast %cst_12 : f32 to vector<112x256xf32>
    %16 = arith.maximumf %14, %15 : vector<112x256xf32>
    %17 = arith.maximumf %8, %16 : vector<112x256xf32>
    %c2 = arith.constant 2 : index
    %c0_13 = arith.constant 0 : index
    %c0_14 = arith.constant 0 : index
    %18 = vector.load %arg2[%c2, %c0_13, %c0_14] : memref<4x256x256xf32, #tpu.memory_space<vmem>>, vector<1x256x256xf32>
    %19 = vector.shape_cast %18 : vector<1x256x256xf32> to vector<256x256xf32>
    %cst_15 = arith.constant dense<0.000000e+00> : vector<112x256xf32>
    %20 = tpu.matmul %0, %19, %cst_15 {dimension_numbers = #tpu.dot_dimension_numbers<[1], [0], [0], [1], [0, 0, 1, 1], [], []>} : vector<112x256xf32>, vector<256x256xf32>, vector<112x256xf32> -> vector<112x256xf32>
    %c0_16 = arith.constant 0 : index
    %c0_17 = arith.constant 0 : index
    %21 = vector.load %arg3[%c0_16, %c0_17] : memref<1x256xf32, #tpu.memory_space<vmem>>, vector<1x256xf32>
    %22 = vector.broadcast %21 : vector<1x256xf32> to vector<112x256xf32>
    %23 = arith.addf %20, %22 : vector<112x256xf32>
    %cst_18 = arith.constant 0.000000e+00 : f32
    %24 = vector.broadcast %cst_18 : f32 to vector<112x256xf32>
    %25 = arith.maximumf %23, %24 : vector<112x256xf32>
    %26 = arith.maximumf %17, %25 : vector<112x256xf32>
    %c3 = arith.constant 3 : index
    %c0_19 = arith.constant 0 : index
    %c0_20 = arith.constant 0 : index
    %27 = vector.load %arg2[%c3, %c0_19, %c0_20] : memref<4x256x256xf32, #tpu.memory_space<vmem>>, vector<1x256x256xf32>
    %28 = vector.shape_cast %27 : vector<1x256x256xf32> to vector<256x256xf32>
    %cst_21 = arith.constant dense<0.000000e+00> : vector<112x256xf32>
    %29 = tpu.matmul %0, %28, %cst_21 {dimension_numbers = #tpu.dot_dimension_numbers<[1], [0], [0], [1], [0, 0, 1, 1], [], []>} : vector<112x256xf32>, vector<256x256xf32>, vector<112x256xf32> -> vector<112x256xf32>
    %c0_22 = arith.constant 0 : index
    %c0_23 = arith.constant 0 : index
    %30 = vector.load %arg3[%c0_22, %c0_23] : memref<1x256xf32, #tpu.memory_space<vmem>>, vector<1x256xf32>
    %31 = vector.broadcast %30 : vector<1x256xf32> to vector<112x256xf32>
    %32 = arith.addf %29, %31 : vector<112x256xf32>
    %cst_24 = arith.constant 0.000000e+00 : f32
    %33 = vector.broadcast %cst_24 : f32 to vector<112x256xf32>
    %34 = arith.maximumf %32, %33 : vector<112x256xf32>
    %35 = arith.maximumf %26, %34 : vector<112x256xf32>
    %36 = vector.extract_strided_slice %35 {offsets = [0, 0], sizes = [8, 256], strides = [1, 1]} : vector<112x256xf32> to vector<8x256xf32>
    %c0_25 = arith.constant 0 : index
    %c0_26 = arith.constant 0 : index
    %37 = vector.load %arg9[%c0_25, %c0_26] : memref<8x3584xf32, #tpu.memory_space<vmem>>, vector<8x256xf32>
    tpu.vector_store %arg9[%c0_25, %c0_26], %36 {strides = array<i32>} : memref<8x3584xf32, #tpu.memory_space<vmem>>, vector<8x256xf32>,
    %38 = vector.extract_strided_slice %35 {offsets = [8, 0], sizes = [8, 256], strides = [1, 1]} : vector<112x256xf32> to vector<8x256xf32>
    %c0_27 = arith.constant 0 : index
    %c256 = arith.constant 256 : index
    %39 = vector.load %arg9[%c0_27, %c256] : memref<8x3584xf32, #tpu.memory_space<vmem>>, vector<8x256xf32>
    tpu.vector_store %arg9[%c0_27, %c256], %38 {strides = array<i32>} : memref<8x3584xf32, #tpu.memory_space<vmem>>, vector<8x256xf32>,
    %40 = vector.extract_strided_slice %35 {offsets = [16, 0], sizes = [8, 256], strides = [1, 1]} : vector<112x256xf32> to vector<8x256xf32>
    %c0_28 = arith.constant 0 : index
    %c512 = arith.constant 512 : index
    %41 = vector.load %arg9[%c0_28, %c512] : memref<8x3584xf32, #tpu.memory_space<vmem>>, vector<8x256xf32>
    tpu.vector_store %arg9[%c0_28, %c512], %40 {strides = array<i32>} : memref<8x3584xf32, #tpu.memory_space<vmem>>, vector<8x256xf32>,
    %42 = vector.extract_strided_slice %35 {offsets = [24, 0], sizes = [8, 256], strides = [1, 1]} : vector<112x256xf32> to vector<8x256xf32>
    %c0_29 = arith.constant 0 : index
    %c768 = arith.constant 768 : index
    %43 = vector.load %arg9[%c0_29, %c768] : memref<8x3584xf32, #tpu.memory_space<vmem>>, vector<8x256xf32>
    tpu.vector_store %arg9[%c0_29, %c768], %42 {strides = array<i32>} : memref<8x3584xf32, #tpu.memory_space<vmem>>, vector<8x256xf32>,
    %44 = vector.extract_strided_slice %35 {offsets = [32, 0], sizes = [8, 256], strides = [1, 1]} : vector<112x256xf32> to vector<8x256xf32>
    %c0_30 = arith.constant 0 : index
    %c1024 = arith.constant 1024 : index
    %45 = vector.load %arg9[%c0_30, %c1024] : memref<8x3584xf32, #tpu.memory_space<vmem>>, vector<8x256xf32>
    tpu.vector_store %arg9[%c0_30, %c1024], %44 {strides = array<i32>} : memref<8x3584xf32, #tpu.memory_space<vmem>>, vector<8x256xf32>,
    %46 = vector.extract_strided_slice %35 {offsets = [40, 0], sizes = [8, 256], strides = [1, 1]} : vector<112x256xf32> to vector<8x256xf32>
    %c0_31 = arith.constant 0 : index
    %c1280 = arith.constant 1280 : index
    %47 = vector.load %arg9[%c0_31, %c1280] : memref<8x3584xf32, #tpu.memory_space<vmem>>, vector<8x256xf32>
    tpu.vector_store %arg9[%c0_31, %c1280], %46 {strides = array<i32>} : memref<8x3584xf32, #tpu.memory_space<vmem>>, vector<8x256xf32>,
    %48 = vector.extract_strided_slice %35 {offsets = [48, 0], sizes = [8, 256], strides = [1, 1]} : vector<112x256xf32> to vector<8x256xf32>
    %c0_32 = arith.constant 0 : index
    %c1536 = arith.constant 1536 : index
    %49 = vector.load %arg9[%c0_32, %c1536] : memref<8x3584xf32, #tpu.memory_space<vmem>>, vector<8x256xf32>
    tpu.vector_store %arg9[%c0_32, %c1536], %48 {strides = array<i32>} : memref<8x3584xf32, #tpu.memory_space<vmem>>, vector<8x256xf32>,
    %50 = vector.extract_strided_slice %35 {offsets = [56, 0], sizes = [8, 256], strides = [1, 1]} : vector<112x256xf32> to vector<8x256xf32>
    %c0_33 = arith.constant 0 : index
    %c1792 = arith.constant 1792 : index
    %51 = vector.load %arg9[%c0_33, %c1792] : memref<8x3584xf32, #tpu.memory_space<vmem>>, vector<8x256xf32>
    tpu.vector_store %arg9[%c0_33, %c1792], %50 {strides = array<i32>} : memref<8x3584xf32, #tpu.memory_space<vmem>>, vector<8x256xf32>,
    %52 = vector.extract_strided_slice %35 {offsets = [64, 0], sizes = [8, 256], strides = [1, 1]} : vector<112x256xf32> to vector<8x256xf32>
    %c0_34 = arith.constant 0 : index
    %c2048 = arith.constant 2048 : index
    %53 = vector.load %arg9[%c0_34, %c2048] : memref<8x3584xf32, #tpu.memory_space<vmem>>, vector<8x256xf32>
    tpu.vector_store %arg9[%c0_34, %c2048], %52 {strides = array<i32>} : memref<8x3584xf32, #tpu.memory_space<vmem>>, vector<8x256xf32>,
    %54 = vector.extract_strided_slice %35 {offsets = [72, 0], sizes = [8, 256], strides = [1, 1]} : vector<112x256xf32> to vector<8x256xf32>
    %c0_35 = arith.constant 0 : index
    %c2304 = arith.constant 2304 : index
    %55 = vector.load %arg9[%c0_35, %c2304] : memref<8x3584xf32, #tpu.memory_space<vmem>>, vector<8x256xf32>
    tpu.vector_store %arg9[%c0_35, %c2304], %54 {strides = array<i32>} : memref<8x3584xf32, #tpu.memory_space<vmem>>, vector<8x256xf32>,
    %56 = vector.extract_strided_slice %35 {offsets = [80, 0], sizes = [8, 256], strides = [1, 1]} : vector<112x256xf32> to vector<8x256xf32>
    %c0_36 = arith.constant 0 : index
    %c2560 = arith.constant 2560 : index
    %57 = vector.load %arg9[%c0_36, %c2560] : memref<8x3584xf32, #tpu.memory_space<vmem>>, vector<8x256xf32>
    tpu.vector_store %arg9[%c0_36, %c2560], %56 {strides = array<i32>} : memref<8x3584xf32, #tpu.memory_space<vmem>>, vector<8x256xf32>,
    %58 = vector.extract_strided_slice %35 {offsets = [88, 0], sizes = [8, 256], strides = [1, 1]} : vector<112x256xf32> to vector<8x256xf32>
    %c0_37 = arith.constant 0 : index
    %c2816 = arith.constant 2816 : index
    %59 = vector.load %arg9[%c0_37, %c2816] : memref<8x3584xf32, #tpu.memory_space<vmem>>, vector<8x256xf32>
    tpu.vector_store %arg9[%c0_37, %c2816], %58 {strides = array<i32>} : memref<8x3584xf32, #tpu.memory_space<vmem>>, vector<8x256xf32>,
    %60 = vector.extract_strided_slice %35 {offsets = [96, 0], sizes = [8, 256], strides = [1, 1]} : vector<112x256xf32> to vector<8x256xf32>
    %c0_38 = arith.constant 0 : index
    %c3072 = arith.constant 3072 : index
    %61 = vector.load %arg9[%c0_38, %c3072] : memref<8x3584xf32, #tpu.memory_space<vmem>>, vector<8x256xf32>
    tpu.vector_store %arg9[%c0_38, %c3072], %60 {strides = array<i32>} : memref<8x3584xf32, #tpu.memory_space<vmem>>, vector<8x256xf32>,
    %62 = vector.extract_strided_slice %35 {offsets = [104, 0], sizes = [8, 256], strides = [1, 1]} : vector<112x256xf32> to vector<8x256xf32>
    %c0_39 = arith.constant 0 : index
    %c3328 = arith.constant 3328 : index
    %63 = vector.load %arg9[%c0_39, %c3328] : memref<8x3584xf32, #tpu.memory_space<vmem>>, vector<8x256xf32>
    tpu.vector_store %arg9[%c0_39, %c3328], %62 {strides = array<i32>} : memref<8x3584xf32, #tpu.memory_space<vmem>>, vector<8x256xf32>,
    %c0_40 = arith.constant 0 : index
    %c0_41 = arith.constant 0 : index
    %64 = vector.load %arg9[%c0_40, %c0_41] : memref<8x3584xf32, #tpu.memory_space<vmem>>, vector<8x3584xf32>
    %c0_42 = arith.constant 0 : index
    %c0_43 = arith.constant 0 : index
    %65 = vector.load %arg4[%c0_42, %c0_43] : memref<3584x64xf32, #tpu.memory_space<vmem>>, vector<3584x64xf32>
    %cst_44 = arith.constant dense<0.000000e+00> : vector<8x64xf32>
    %66 = tpu.matmul %64, %65, %cst_44 {dimension_numbers = #tpu.dot_dimension_numbers<[1], [0], [0], [1], [0, 0, 1, 1], [], []>} : vector<8x3584xf32>, vector<3584x64xf32>, vector<8x64xf32> -> vector<8x64xf32>
    %c0_45 = arith.constant 0 : index
    %c0_46 = arith.constant 0 : index
    %67 = vector.load %arg5[%c0_45, %c0_46] : memref<1x64xf32, #tpu.memory_space<vmem>>, vector<1x64xf32>
    %68 = vector.broadcast %67 : vector<1x64xf32> to vector<8x64xf32>
    %69 = arith.addf %66, %68 : vector<8x64xf32>
    %cst_47 = arith.constant 0.000000e+00 : f32
    %70 = vector.broadcast %cst_47 : f32 to vector<8x64xf32>
    %71 = arith.maximumf %69, %70 : vector<8x64xf32>
    %c0_48 = arith.constant 0 : index
    %c0_49 = arith.constant 0 : index
    %72 = vector.load %arg6[%c0_48, %c0_49] : memref<64x128xf32, #tpu.memory_space<vmem>>, vector<64x128xf32>
    %cst_50 = arith.constant dense<0.000000e+00> : vector<8x128xf32>
    %73 = tpu.matmul %71, %72, %cst_50 {dimension_numbers = #tpu.dot_dimension_numbers<[1], [0], [0], [1], [0, 0, 1, 1], [], []>} : vector<8x64xf32>, vector<64x128xf32>, vector<8x128xf32> -> vector<8x128xf32>
    %c0_51 = arith.constant 0 : index
    %c0_52 = arith.constant 0 : index
    %74 = vector.load %arg7[%c0_51, %c0_52] : memref<1x128xf32, #tpu.memory_space<vmem>>, vector<1x128xf32>
    %75 = vector.broadcast %74 : vector<1x128xf32> to vector<8x128xf32>
    %76 = arith.addf %73, %75 : vector<8x128xf32>
    %cst_53 = arith.constant dense<0xFF800000> : vector<8xf32>
    %77 = vector.multi_reduction <maximumf>, %76, %cst_53 [1] : vector<8x128xf32> to vector<8xf32>
    %78 = vector.shape_cast %77 : vector<8xf32> to vector<8x1xf32>
    %79 = vector.broadcast %78 : vector<8x1xf32> to vector<8x128xf32>
    %80 = arith.subf %76, %79 : vector<8x128xf32>
    %81 = math.exp %80 : vector<8x128xf32>
    %cst_54 = arith.constant dense<0.000000e+00> : vector<8xf32>
    %82 = vector.multi_reduction <add>, %81, %cst_54 [1] : vector<8x128xf32> to vector<8xf32>
    %83 = vector.shape_cast %82 : vector<8xf32> to vector<8x1xf32>
    %84 = vector.broadcast %83 : vector<8x1xf32> to vector<8x128xf32>
    %85 = arith.divf %81, %84 : vector<8x128xf32>
    %c0_55 = arith.constant 0 : index
    %c0_56 = arith.constant 0 : index
    %86 = vector.load %arg8[%c0_55, %c0_56] : memref<8x128xf32, #tpu.memory_space<vmem>>, vector<8x128xf32>
    tpu.vector_store %arg8[%c0_55, %c0_56], %85 {strides = array<i32>} : memref<8x128xf32, #tpu.memory_space<vmem>>, vector<8x128xf32>,
    return
  }
  func.func @transform_0(%arg0: i32) -> (i32, i32) {
    %c0_i32 = arith.constant 0 : i32
    %c0_i32_0 = arith.constant 0 : i32
    return %arg0, %c0_i32 : i32, i32
  }
  func.func @transform_1(%arg0: i32) -> (i32, i32, i32) {
    %c0_i32 = arith.constant 0 : i32
    %c0_i32_0 = arith.constant 0 : i32
    %c0_i32_1 = arith.constant 0 : i32
    %c0_i32_2 = arith.constant 0 : i32
    return %c0_i32, %c0_i32_0, %c0_i32_1 : i32, i32, i32
  }
  func.func @transform_2(%arg0: i32) -> (i32, i32) {
    %c0_i32 = arith.constant 0 : i32
    %c0_i32_0 = arith.constant 0 : i32
    %c0_i32_1 = arith.constant 0 : i32
    return %c0_i32, %c0_i32_0 : i32, i32
  }
  func.func @transform_3(%arg0: i32) -> (i32, i32) {
    %c0_i32 = arith.constant 0 : i32
    %c0_i32_0 = arith.constant 0 : i32
    %c0_i32_1 = arith.constant 0 : i32
    return %c0_i32, %c0_i32_0 : i32, i32
  }
  func.func @transform_4(%arg0: i32) -> (i32, i32) {
    %c0_i32 = arith.constant 0 : i32
    %c0_i32_0 = arith.constant 0 : i32
    %c0_i32_1 = arith.constant 0 : i32
    return %c0_i32, %c0_i32_0 : i32, i32
  }
  func.func @transform_5(%arg0: i32) -> (i32, i32) {
    %c0_i32 = arith.constant 0 : i32
    %c0_i32_0 = arith.constant 0 : i32
    %c0_i32_1 = arith.constant 0 : i32
    return %c0_i32, %c0_i32_0 : i32, i32
  }
  func.func @transform_6(%arg0: i32) -> (i32, i32) {
    %c0_i32 = arith.constant 0 : i32
    %c0_i32_0 = arith.constant 0 : i32
    %c0_i32_1 = arith.constant 0 : i32
    return %c0_i32, %c0_i32_0 : i32, i32
  }
  func.func @transform_7(%arg0: i32) -> (i32, i32) {
    %c0_i32 = arith.constant 0 : i32
    %c0_i32_0 = arith.constant 0 : i32
    return %arg0, %c0_i32 : i32, i32
  }
}

</mosaic_0001>

<llo_original>
// kernel: cnn_forward.1
$region0: #{cnn_forward.1}
  #allocation0 [shape = 'u32[]', space=smem, size = 0x4, offset = 0x4, fixed_abs, tag = 'smem constant byte address 0x4 - core index']
  #allocation1 [shape = 'u32[144,128]{1,0:T(1,128)}', space=vmem, size = 0x12000, scoped, tag = 'internal scratch']
  #allocation2 [shape = 'f32[8,3584]{1,0:T(8,128)}', space=vmem, size = 0x1c000, scoped, tag = 'scratch operand']
  %s0 = inlined_call_operand.vmem [shape: f32[224,256], index: 0, kind: input, shape index: {}]
  %s1 = inlined_call_operand.vmem [shape: f32[4,256,256], index: 1, kind: input, shape index: {}]
  %s2 = inlined_call_operand.vmem [shape: f32[1,256], index: 2, kind: input, shape index: {}]
  %s3 = inlined_call_operand.vmem [shape: f32[3584,64], index: 3, kind: input, shape index: {}]
  %s4 = inlined_call_operand.vmem [shape: f32[1,64], index: 4, kind: input, shape index: {}]
  %s5 = inlined_call_operand.vmem [shape: f32[64,128], index: 5, kind: input, shape index: {}]
  %s6 = inlined_call_operand.vmem [shape: f32[1,128], index: 6, kind: input, shape index: {}]
  %s7 = inlined_call_operand.hbm [shape: f32[16,128], index: 7, kind: output, shape index: {}]
  %s8 = sld [smem:[#allocation0]]
  $region61: #{cnn_forward.1} parent=0
    _
  %s10 = ssub.s32 1, %s8
  %s11 = scalar_select 0, %s10, %s8
  $region1: #{cnn_forward.1} parent=0
    #allocation3 [shape = 'u8[8192]{0}', space=vmem, size = 0x2000, scoped, tag = 'output window, operand 0']
    #allocation4 [shape = 's32[2]{0}', space=sflag, size = 0x8, scoped, tag = 'scoped memory for cnn_forward.1']
    %12 = vsyncpa [#allocation4], 0
    %s13 = scalar_lea.sflag [#allocation4], 1
    %14 = vsyncpa %s13, 0
    loop: start=0, step=1, limit=4
    $region2: #{cnn_forward.1} parent=1 // loop_pre_header
      _
    $region3: #{cnn_forward.1} parent=1 // loop_header
      %s16 = sphi 0, %s20
      %p17 = scmp.ge.s32.totalorder %s16, 4
      %s26 = sphi 0, %s28
      %s29 = sphi 0, %s26
      %s30 = sphi 0, %s29
      %s46 = sphi 0, %s30
      %s50 = sphi 0, %s50
      %s52 = sphi 0, %s50
      %s53 = sphi 0, %s52
      %s67 = sphi 0, %s53
      %s71 = sphi 0, %s71
      %s73 = sphi 0, %s71
      %s74 = sphi 0, %s73
      %s88 = sphi 0, %s74
      %s92 = sphi 0, %s92
      %s94 = sphi 0, %s92
      %s95 = sphi 0, %s94
      %s109 = sphi 0, %s95
      %s113 = sphi 0, %s113
      %s115 = sphi 0, %s113
      %s116 = sphi 0, %s115
      %s130 = sphi 0, %s116
      %s134 = sphi 0, %s134
      %s136 = sphi 0, %s134
      %s137 = sphi 0, %s136
      %s151 = sphi 0, %s137
      %s155 = sphi 0, %s155
      %s157 = sphi 0, %s155
      %s158 = sphi 0, %s157
      %s172 = sphi 0, %s158
      %s178 = sphi 0, %s180
      %s181 = sphi 0, %s178
      %s182 = sphi 0, %s181
      %s198 = sphi 0, %s182
    $region4: #{cnn_forward.1} parent=1 // loop_header_branch
      %19 = sbr.rel (%p17) target = $region8
    $region5: #{cnn_forward.1} parent=1 // loop_body
      %s21 = ssub.s32 %s16, 1
      %s22 = ssub.s32 %s16, 2
      %s23 = sadd.s32 %s16, 1
      %s24 = ssub.s32 %s16, %s23
      %p25 = scmp.eq.s32.totalorder %s24, 0
      %s27 = sadd.s32 %s26, 1
      %s28 = scalar_select %p25, %s26, %s27
      %p31 = pneg %p25
      %p32 = scmp.eq.s32.totalorder %s16, 1
      %p33 = por %p31, %p32
      %p34 = scmp.ne.s32.totalorder %s26, %s29
      %p35 = scmp.eq.s32.totalorder %s16, 0
      %p36 = por %p34, %p35
      %p37 = scmp.ne.s32.totalorder %s26, %s29
      %p38 = scmp.eq.s32.totalorder %s21, 1
      %p39 = por %p37, %p38
      %p40 = scmp.ne.s32.totalorder %s29, %s30
      %p41 = scmp.eq.s32.totalorder %s21, 0
      %p42 = por %p40, %p41
      %p43 = scmp.ne.s32.totalorder %s29, %s30
      %p44 = scmp.eq.s32.totalorder %s22, 1
      %p45 = por %p43, %p44
      %p47 = scmp.ne.s32.totalorder %s30, %s46
      %p48 = scmp.eq.s32.totalorder %s22, 0
      %p49 = por %p47, %p48
      %s51 = sadd.s32 %s50, 1
      %p54 = scmp.eq.s32.totalorder %s16, 1
      %p55 = scmp.ne.s32.totalorder %s50, %s52
      %p56 = scmp.eq.s32.totalorder %s16, 0
      %p57 = por %p55, %p56
      %p58 = scmp.ne.s32.totalorder %s50, %s52
      %p59 = scmp.eq.s32.totalorder %s21, 1
      %p60 = por %p58, %p59
      %p61 = scmp.ne.s32.totalorder %s52, %s53
      %p62 = scmp.eq.s32.totalorder %s21, 0
      %p63 = por %p61, %p62
      %p64 = scmp.ne.s32.totalorder %s52, %s53
      %p65 = scmp.eq.s32.totalorder %s22, 1
      %p66 = por %p64, %p65
      %p68 = scmp.ne.s32.totalorder %s53, %s67
      %p69 = scmp.eq.s32.totalorder %s22, 0
      %p70 = por %p68, %p69
      %s72 = sadd.s32 %s71, 1
      %p75 = scmp.eq.s32.totalorder %s16, 1
      %p76 = scmp.ne.s32.totalorder %s71, %s73
      %p77 = scmp.eq.s32.totalorder %s16, 0
      %p78 = por %p76, %p77
      %p79 = scmp.ne.s32.totalorder %s71, %s73
      %p80 = scmp.eq.s32.totalorder %s21, 1
      %p81 = por %p79, %p80
      %p82 = scmp.ne.s32.totalorder %s73, %s74
      %p83 = scmp.eq.s32.totalorder %s21, 0
      %p84 = por %p82, %p83
      %p85 = scmp.ne.s32.totalorder %s73, %s74
      %p86 = scmp.eq.s32.totalorder %s22, 1
      %p87 = por %p85, %p86
      %p89 = scmp.ne.s32.totalorder %s74, %s88
      %p90 = scmp.eq.s32.totalorder %s22, 0
      %p91 = por %p89, %p90
      %s93 = sadd.s32 %s92, 1
      %p96 = scmp.eq.s32.totalorder %s16, 1
      %p97 = scmp.ne.s32.totalorder %s92, %s94
      %p98 = scmp.eq.s32.totalorder %s16, 0
      %p99 = por %p97, %p98
      %p100 = scmp.ne.s32.totalorder %s92, %s94
      %p101 = scmp.eq.s32.totalorder %s21, 1
      %p102 = por %p100, %p101
      %p103 = scmp.ne.s32.totalorder %s94, %s95
      %p104 = scmp.eq.s32.totalorder %s21, 0
      %p105 = por %p103, %p104
      %p106 = scmp.ne.s32.totalorder %s94, %s95
      %p107 = scmp.eq.s32.totalorder %s22, 1
      %p108 = por %p106, %p107
      %p110 = scmp.ne.s32.totalorder %s95, %s109
      %p111 = scmp.eq.s32.totalorder %s22, 0
      %p112 = por %p110, %p111
      %s114 = sadd.s32 %s113, 1
      %p117 = scmp.eq.s32.totalorder %s16, 1
      %p118 = scmp.ne.s32.totalorder %s113, %s115
      %p119 = scmp.eq.s32.totalorder %s16, 0
      %p120 = por %p118, %p119
      %p121 = scmp.ne.s32.totalorder %s113, %s115
      %p122 = scmp.eq.s32.totalorder %s21, 1
      %p123 = por %p121, %p122
      %p124 = scmp.ne.s32.totalorder %s115, %s116
      %p125 = scmp.eq.s32.totalorder %s21, 0
      %p126 = por %p124, %p125
      %p127 = scmp.ne.s32.totalorder %s115, %s116
      %p128 = scmp.eq.s32.totalorder %s22, 1
      %p129 = por %p127, %p128
      %p131 = scmp.ne.s32.totalorder %s116, %s130
      %p132 = scmp.eq.s32.totalorder %s22, 0
      %p133 = por %p131, %p132
      %s135 = sadd.s32 %s134, 1
      %p138 = scmp.eq.s32.totalorder %s16, 1
      %p139 = scmp.ne.s32.totalorder %s134, %s136
      %p140 = scmp.eq.s32.totalorder %s16, 0
      %p141 = por %p139, %p140
      %p142 = scmp.ne.s32.totalorder %s134, %s136
      %p143 = scmp.eq.s32.totalorder %s21, 1
      %p144 = por %p142, %p143
      %p145 = scmp.ne.s32.totalorder %s136, %s137
      %p146 = scmp.eq.s32.totalorder %s21, 0
      %p147 = por %p145, %p146
      %p148 = scmp.ne.s32.totalorder %s136, %s137
      %p149 = scmp.eq.s32.totalorder %s22, 1
      %p150 = por %p148, %p149
      %p152 = scmp.ne.s32.totalorder %s137, %s151
      %p153 = scmp.eq.s32.totalorder %s22, 0
      %p154 = por %p152, %p153
      %s156 = sadd.s32 %s155, 1
      %p159 = scmp.eq.s32.totalorder %s16, 1
      %p160 = scmp.ne.s32.totalorder %s155, %s157
      %p161 = scmp.eq.s32.totalorder %s16, 0
      %p162 = por %p160, %p161
      %p163 = scmp.ne.s32.totalorder %s155, %s157
      %p164 = scmp.eq.s32.totalorder %s21, 1
      %p165 = por %p163, %p164
      %p166 = scmp.ne.s32.totalorder %s157, %s158
      %p167 = scmp.eq.s32.totalorder %s21, 0
      %p168 = por %p166, %p167
      %p169 = scmp.ne.s32.totalorder %s157, %s158
      %p170 = scmp.eq.s32.totalorder %s22, 1
      %p171 = por %p169, %p170
      %p173 = scmp.ne.s32.totalorder %s158, %s172
      %p174 = scmp.eq.s32.totalorder %s22, 0
      %p175 = por %p173, %p174
      %s176 = ssub.s32 %s16, %s23
      %p177 = scmp.eq.s32.totalorder %s176, 0
      %s179 = sadd.s32 %s178, 1
      %s180 = scalar_select %p177, %s178, %s179
      %p183 = pneg %p177
      %p184 = scmp.eq.s32.totalorder %s16, 1
      %p185 = por %p183, %p184
      %p186 = scmp.ne.s32.totalorder %s178, %s181
      %p187 = scmp.eq.s32.totalorder %s16, 0
      %p188 = por %p186, %p187
      %p189 = scmp.ne.s32.totalorder %s178, %s181
      %p190 = scmp.eq.s32.totalorder %s21, 1
      %p191 = por %p189, %p190
      %p192 = scmp.ne.s32.totalorder %s181, %s182
      %p193 = scmp.eq.s32.totalorder %s21, 0
      %p194 = por %p192, %p193
      %p195 = scmp.ne.s32.totalorder %s181, %s182
      %p196 = scmp.eq.s32.totalorder %s22, 1
      %p197 = por %p195, %p196
      %p199 = scmp.ne.s32.totalorder %s182, %s198
      %p200 = scmp.eq.s32.totalorder %s22, 0
      %p201 = por %p199, %p200
      %p202 = scmp.le.s32.totalorder 1, %s16
      %p203 = scmp.lt.s32.totalorder %s16, 3
      %p204 = pnand %p202, %p203
      %p205 = pneg %p204
      // Predicated region
      $region9: #{cnn_forward.1} parent=5 // pred_check
        _
      $region10: #{cnn_forward.1} parent=5 // pred_check_branch
        %207 = sbr.rel (%p204) target = $region12
      $region11: #{cnn_forward.1} parent=5 // pred_region
        %s208 = ssub.s32 %s16, 1
        // Predicated region
        $region13: #{cnn_forward.1} parent=11 // pred_check
          %p209 = pneg %p63
        $region14: #{cnn_forward.1} parent=11 // pred_check_branch
          %211 = sbr.rel (%p209) target = $region16
        $region15: #{cnn_forward.1} parent=11 // pred_region
          _
        $region16: #{cnn_forward.1} parent=11 // pred_fallthru
          _
        // Predicated region
        $region17: #{cnn_forward.1} parent=11 // pred_check
          %p212 = pneg %p84
        $region18: #{cnn_forward.1} parent=11 // pred_check_branch
          %214 = sbr.rel (%p212) target = $region20
        $region19: #{cnn_forward.1} parent=11 // pred_region
          _
        $region20: #{cnn_forward.1} parent=11 // pred_fallthru
          _
        // Predicated region
        $region21: #{cnn_forward.1} parent=11 // pred_check
          %p215 = pneg %p105
        $region22: #{cnn_forward.1} parent=11 // pred_check_branch
          %217 = sbr.rel (%p215) target = $region24
        $region23: #{cnn_forward.1} parent=11 // pred_region
          _
        $region24: #{cnn_forward.1} parent=11 // pred_fallthru
          _
        // Predicated region
        $region25: #{cnn_forward.1} parent=11 // pred_check
          %p218 = pneg %p126
        $region26: #{cnn_forward.1} parent=11 // pred_check_branch
          %220 = sbr.rel (%p218) target = $region28
        $region27: #{cnn_forward.1} parent=11 // pred_region
          _
        $region28: #{cnn_forward.1} parent=11 // pred_fallthru
          _
        // Predicated region
        $region29: #{cnn_forward.1} parent=11 // pred_check
          %p221 = pneg %p147
        $region30: #{cnn_forward.1} parent=11 // pred_check_branch
          %223 = sbr.rel (%p221) target = $region32
        $region31: #{cnn_forward.1} parent=11 // pred_region
          _
        $region32: #{cnn_forward.1} parent=11 // pred_fallthru
          _
        // Predicated region
        $region33: #{cnn_forward.1} parent=11 // pred_check
          %p224 = pneg %p168
        $region34: #{cnn_forward.1} parent=11 // pred_check_branch
          %226 = sbr.rel (%p224) target = $region36
        $region35: #{cnn_forward.1} parent=11 // pred_region
          _
        $region36: #{cnn_forward.1} parent=11 // pred_fallthru
          _
      $region12: #{cnn_forward.1} parent=5 // pred_fallthru
        _
      %p227 = scmp.lt.s32.totalorder %s16, 2
      // Predicated region
      $region37: #{cnn_forward.1} parent=5 // pred_check
        %p228 = pneg %p227
      $region38: #{cnn_forward.1} parent=5 // pred_check_branch
        %230 = sbr.rel (%p228) target = $region40
      $region39: #{cnn_forward.1} parent=5 // pred_region
        // Predicated region
        $region41: #{cnn_forward.1} parent=39 // pred_check
          %p231 = pneg %p36
        $region42: #{cnn_forward.1} parent=39 // pred_check_branch
          %233 = sbr.rel (%p231) target = $region44
        $region43: #{cnn_forward.1} parent=39 // pred_region
          %s234 = smul.u32 14, %s16
          %p235 = scmp.lt.s32.totalorder %s234, 27
          %s236 = scalar_select %p235, %s234, 27
          %s237 = smul.addr %s236, 2
          %s238 = smul.addr %s237, 8
          %s239 = scalar_lea.vmem %s0, %s238
          %s240 = smul.u32 14, %s16
        $region44: #{cnn_forward.1} parent=39 // pred_fallthru
          _
      $region40: #{cnn_forward.1} parent=5 // pred_fallthru
        _
      %p241 = scmp.le.s32.totalorder 1, %s16
      %p242 = scmp.lt.s32.totalorder %s16, 3
      %p243 = pnand %p241, %p242
      %p244 = pneg %p243
      // Predicated region
      $region45: #{cnn_forward.1} parent=5 // pred_check
        _
      $region46: #{cnn_forward.1} parent=5 // pred_check_branch
        %246 = sbr.rel (%p243) target = $region48
      $region47: #{cnn_forward.1} parent=5 // pred_region
        %s247 = ssub.s32 %s16, 1
        %s248 = smul.u32 14, %s21
        %p249 = scmp.lt.s32.totalorder %s248, 27
        %s250 = scalar_select %p249, %s248, 27
        %s251 = smul.addr %s250, 2
        %s252 = smul.addr %s251, 8
        %s253 = scalar_lea.vmem %s0, %s252
        %p254 = pneg %p42
        %p255 = pneg %p39
        %p256 = pneg %p63
        %p257 = pneg %p60
        %p258 = pneg %p84
        %p259 = pneg %p81
        %p260 = pneg %p105
        %p261 = pneg %p102
        %p262 = pneg %p126
        %p263 = pneg %p123
        %p264 = pneg %p147
        %p265 = pneg %p144
        %p266 = pneg %p168
        %p267 = pneg %p165
        %p268 = pneg %p194
        %p269 = pneg %p191
        %s270 = sand.u32 %s181, 1
        %s271 = scalar_lea.sflag [#allocation4], %s270
        %s272 = sand.u32 %s181, 1
        %s273 = smul.addr %s272, 8
        %s274 = scalar_lea.vmem [#allocation3], %s273
        %s275 = smul.u32 14, %s21
        %p276 = scmp.lt.s32.totalorder %s275, 27
        %s277 = scalar_select %p276, %s275, 27
        %s278 = smul.addr %s277, 2
        %s279 = smul.addr %s278, 8
        %s280 = scalar_lea.vmem %s0, %s279
        %s281 = smul.u32 14, %s21
        %v282 = vld [vmem:[%s280] sm:$0xff]
        %v283 = vld [vmem:[%s280 + $0x8] sm:$0xff]
        %v284 = vld [vmem:[%s280 + $0x10] sm:$0xff]
        %v285 = vld [vmem:[%s280 + $0x18] sm:$0xff]
        %v286 = vld [vmem:[%s280 + $0x20] sm:$0xff]
        %v287 = vld [vmem:[%s280 + $0x28] sm:$0xff]
        %v288 = vld [vmem:[%s280 + $0x30] sm:$0xff]
        %v289 = vld [vmem:[%s280 + $0x38] sm:$0xff]
        %v290 = vld [vmem:[%s280 + $0x40] sm:$0xff]
        %v291 = vld [vmem:[%s280 + $0x48] sm:$0xff]
        %v292 = vld [vmem:[%s280 + $0x50] sm:$0xff]
        %v293 = vld [vmem:[%s280 + $0x58] sm:$0xff]
        %v294 = vld [vmem:[%s280 + $0x60] sm:$0xff]
        %v295 = vld [vmem:[%s280 + $0x68] sm:$0xff]
        %v296 = vld [vmem:[%s280 + $0x70] sm:$0xff]
        %v297 = vld [vmem:[%s280 + $0x78] sm:$0xff]
        %v298 = vld [vmem:[%s280 + $0x80] sm:$0xff]
        %v299 = vld [vmem:[%s280 + $0x88] sm:$0xff]
        %v300 = vld [vmem:[%s280 + $0x90] sm:$0xff]
        %v301 = vld [vmem:[%s280 + $0x98] sm:$0xff]
        %v302 = vld [vmem:[%s280 + $0xa0] sm:$0xff]
        %v303 = vld [vmem:[%s280 + $0xa8] sm:$0xff]
        %v304 = vld [vmem:[%s280 + $0xb0] sm:$0xff]
        %v305 = vld [vmem:[%s280 + $0xb8] sm:$0xff]
        %v306 = vld [vmem:[%s280 + $0xc0] sm:$0xff]
        %v307 = vld [vmem:[%s280 + $0xc8] sm:$0xff]
        %v308 = vld [vmem:[%s280 + $0xd0] sm:$0xff]
        %v309 = vld [vmem:[%s280 + $0xd8] sm:$0xff]
        %v310 = vld [vmem:[%s1] sm:$0xff]
        %v311 = vld [vmem:[%s1 + $0x8] sm:$0xff]
        %v312 = vld [vmem:[%s1 + $0x10] sm:$0xff]
        %v313 = vld [vmem:[%s1 + $0x18] sm:$0xff]
        %v314 = vld [vmem:[%s1 + $0x20] sm:$0xff]
        %v315 = vld [vmem:[%s1 + $0x28] sm:$0xff]
        %v316 = vld [vmem:[%s1 + $0x30] sm:$0xff]
        %v317 = vld [vmem:[%s1 + $0x38] sm:$0xff]
        %v318 = vld [vmem:[%s1 + $0x40] sm:$0xff]
        %v319 = vld [vmem:[%s1 + $0x48] sm:$0xff]
        %v320 = vld [vmem:[%s1 + $0x50] sm:$0xff]
        %v321 = vld [vmem:[%s1 + $0x58] sm:$0xff]
        %v322 = vld [vmem:[%s1 + $0x60] sm:$0xff]
        %v323 = vld [vmem:[%s1 + $0x68] sm:$0xff]
        %v324 = vld [vmem:[%s1 + $0x70] sm:$0xff]
        %v325 = vld [vmem:[%s1 + $0x78] sm:$0xff]
        %v326 = vld [vmem:[%s1 + $0x80] sm:$0xff]
        %v327 = vld [vmem:[%s1 + $0x88] sm:$0xff]
        %v328 = vld [vmem:[%s1 + $0x90] sm:$0xff]
        %v329 = vld [vmem:[%s1 + $0x98] sm:$0xff]
        %v330 = vld [vmem:[%s1 + $0xa0] sm:$0xff]
        %v331 = vld [vmem:[%s1 + $0xa8] sm:$0xff]
        %v332 = vld [vmem:[%s1 + $0xb0] sm:$0xff]
        %v333 = vld [vmem:[%s1 + $0xb8] sm:$0xff]
        %v334 = vld [vmem:[%s1 + $0xc0] sm:$0xff]
        %v335 = vld [vmem:[%s1 + $0xc8] sm:$0xff]
        %v336 = vld [vmem:[%s1 + $0xd0] sm:$0xff]
        %v337 = vld [vmem:[%s1 + $0xd8] sm:$0xff]
        %v338 = vld [vmem:[%s1 + $0xe0] sm:$0xff]
        %v339 = vld [vmem:[%s1 + $0xe8] sm:$0xff]
        %v340 = vld [vmem:[%s1 + $0xf0] sm:$0xff]
        %v341 = vld [vmem:[%s1 + $0xf8] sm:$0xff]
        %v342 = vld [vmem:[%s1 + $0x100] sm:$0xff]
        %v343 = vld [vmem:[%s1 + $0x108] sm:$0xff]
        %v344 = vld [vmem:[%s1 + $0x110] sm:$0xff]
        %v345 = vld [vmem:[%s1 + $0x118] sm:$0xff]
        %v346 = vld [vmem:[%s1 + $0x120] sm:$0xff]
        %v347 = vld [vmem:[%s1 + $0x128] sm:$0xff]
        %v348 = vld [vmem:[%s1 + $0x130] sm:$0xff]
        %v349 = vld [vmem:[%s1 + $0x138] sm:$0xff]
        %v350 = vld [vmem:[%s1 + $0x140] sm:$0xff]
        %v351 = vld [vmem:[%s1 + $0x148] sm:$0xff]
        %v352 = vld [vmem:[%s1 + $0x150] sm:$0xff]
        %v353 = vld [vmem:[%s1 + $0x158] sm:$0xff]
        %v354 = vld [vmem:[%s1 + $0x160] sm:$0xff]
        %v355 = vld [vmem:[%s1 + $0x168] sm:$0xff]
        %v356 = vld [vmem:[%s1 + $0x170] sm:$0xff]
        %v357 = vld [vmem:[%s1 + $0x178] sm:$0xff]
        %v358 = vld [vmem:[%s1 + $0x180] sm:$0xff]
        %v359 = vld [vmem:[%s1 + $0x188] sm:$0xff]
        %v360 = vld [vmem:[%s1 + $0x190] sm:$0xff]
        %v361 = vld [vmem:[%s1 + $0x198] sm:$0xff]
        %v362 = vld [vmem:[%s1 + $0x1a0] sm:$0xff]
        %v363 = vld [vmem:[%s1 + $0x1a8] sm:$0xff]
        %v364 = vld [vmem:[%s1 + $0x1b0] sm:$0xff]
        %v365 = vld [vmem:[%s1 + $0x1b8] sm:$0xff]
        %v366 = vld [vmem:[%s1 + $0x1c0] sm:$0xff]
        %v367 = vld [vmem:[%s1 + $0x1c8] sm:$0xff]
        %v368 = vld [vmem:[%s1 + $0x1d0] sm:$0xff]
        %v369 = vld [vmem:[%s1 + $0x1d8] sm:$0xff]
        %v370 = vld [vmem:[%s1 + $0x1e0] sm:$0xff]
        %v371 = vld [vmem:[%s1 + $0x1e8] sm:$0xff]
        %v372 = vld [vmem:[%s1 + $0x1f0] sm:$0xff]
        %v373 = vld [vmem:[%s1 + $0x1f8] sm:$0xff]
        %v374 = vld [vmem:[%s2] sm:$0x3]
        %v376 = vlaneseq
        %v377 = vshrl.u32 %v376, 7
        %v378 = vsub.s32 0, %v377
        %v379 = vrot.slane %v374, %v378
        %v380 = vlaneseq
        %v381 = vshrl.u32 %v380, 7
        %v382 = vsub.s32 1, %v381
        %v383 = vrot.slane %v374, %v382
        %386 = vmatprep.subr.mxu0 %v341
        %387 = vmatpush1.msra.mxu0 %v340
        %388 = vmatprep.subr.mxu0 %v339
        %389 = vmatpush1.msra.mxu0 %v338
        %390 = vmatprep.subr.mxu0 %v337
        %391 = vmatpush1.msra.mxu0 %v336
        %392 = vmatprep.subr.mxu0 %v335
        %393 = vmatpush1.msra.mxu0 %v334
        %394 = vmatprep.subr.mxu0 %v333
        %395 = vmatpush1.msra.mxu0 %v332
        %396 = vmatprep.subr.mxu0 %v331
        %397 = vmatpush1.msra.mxu0 %v330
        %398 = vmatprep.subr.mxu0 %v329
        %399 = vmatpush1.msra.mxu0 %v328
        %400 = vmatprep.subr.mxu0 %v327
        %401 = vmatpush1.msra.mxu0 %v326
        %402 = vmatprep.subr.mxu0 %v325
        %403 = vmatpush1.msra.mxu0 %v324
        %404 = vmatprep.subr.mxu0 %v323
        %405 = vmatpush1.msra.mxu0 %v322
        %406 = vmatprep.subr.mxu0 %v321
        %407 = vmatpush1.msra.mxu0 %v320
        %408 = vmatprep.subr.mxu0 %v319
        %409 = vmatpush1.msra.mxu0 %v318
        %410 = vmatprep.subr.mxu0 %v317
        %411 = vmatpush1.msra.mxu0 %v316
        %412 = vmatprep.subr.mxu0 %v315
        %413 = vmatpush1.msra.mxu0 %v314
        %414 = vmatprep.subr.mxu0 %v313
        %415 = vmatpush1.msra.mxu0 %v312
        %416 = vmatprep.subr.mxu0 %v311
        %417 = vmatpush1.msra.mxu0 %v310
        %418 = vmatprep.subr.mxu0 %v373
        %419 = vmatpush2.msra.mxu0 %v372
        %420 = vmatprep.subr.mxu0 %v371
        %421 = vmatpush2.msra.mxu0 %v370
        %422 = vmatprep.subr.mxu0 %v369
        %423 = vmatpush2.msra.mxu0 %v368
        %424 = vmatprep.subr.mxu0 %v367
        %425 = vmatpush2.msra.mxu0 %v366
        %426 = vmatprep.subr.mxu0 %v365
        %427 = vmatpush2.msra.mxu0 %v364
        %428 = vmatprep.subr.mxu0 %v363
        %429 = vmatpush2.msra.mxu0 %v362
        %430 = vmatprep.subr.mxu0 %v361
        %431 = vmatpush2.msra.mxu0 %v360
        %432 = vmatprep.subr.mxu0 %v359
        %433 = vmatpush2.msra.mxu0 %v358
        %434 = vmatprep.subr.mxu0 %v357
        %435 = vmatpush2.msra.mxu0 %v356
        %436 = vmatprep.subr.mxu0 %v355
        %437 = vmatpush2.msra.mxu0 %v354
        %438 = vmatprep.subr.mxu0 %v353
        %439 = vmatpush2.msra.mxu0 %v352
        %440 = vmatprep.subr.mxu0 %v351
        %441 = vmatpush2.msra.mxu0 %v350
        %442 = vmatprep.subr.mxu0 %v349
        %443 = vmatpush2.msra.mxu0 %v348
        %444 = vmatprep.subr.mxu0 %v347
        %445 = vmatpush2.msra.mxu0 %v346
        %446 = vmatprep.subr.mxu0 %v345
        %447 = vmatpush2.msra.mxu0 %v344
        %448 = vmatprep.subr.mxu0 %v343
        %449 = vmatpush2.msra.mxu0 %v342
        %450 = vmatprep.mubr.f32.mxu0 %v283
        %451 = vmatmul.mubr.f32.gmra.mxu0 %v282
        %v452 = vpop.f32.mrf.mxu0
        %v453 = vadd.f32 %v379, %v452
        %v454 = vpop.f32.mrf.mxu0
        %v455 = vadd.f32 %v383, %v454
        %456 = vmatprep.mubr.f32.mxu0 %v285
        %457 = vmatmul.mubr.f32.gmra.mxu0 %v284
        %v458 = vpop.f32.mrf.mxu0
        %v459 = vadd.f32 %v379, %v458
        %v460 = vpop.f32.mrf.mxu0
        %v461 = vadd.f32 %v383, %v460
        %462 = vmatprep.mubr.f32.mxu0 %v287
        %463 = vmatmul.mubr.f32.gmra.mxu0 %v286
        %v464 = vpop.f32.mrf.mxu0
        %v465 = vadd.f32 %v379, %v464
        %v466 = vpop.f32.mrf.mxu0
        %v467 = vadd.f32 %v383, %v466
        %468 = vmatprep.mubr.f32.mxu0 %v289
        %469 = vmatmul.mubr.f32.gmra.mxu0 %v288
        %v470 = vpop.f32.mrf.mxu0
        %v471 = vadd.f32 %v379, %v470
        %v472 = vpop.f32.mrf.mxu0
        %v473 = vadd.f32 %v383, %v472
        %474 = vmatprep.mubr.f32.mxu0 %v291
        %475 = vmatmul.mubr.f32.gmra.mxu0 %v290
        %v476 = vpop.f32.mrf.mxu0
        %v477 = vadd.f32 %v379, %v476
        %v478 = vpop.f32.mrf.mxu0
        %v479 = vadd.f32 %v383, %v478
        %480 = vmatprep.mubr.f32.mxu0 %v293
        %481 = vmatmul.mubr.f32.gmra.mxu0 %v292
        %v482 = vpop.f32.mrf.mxu0
        %v483 = vadd.f32 %v379, %v482
        %v484 = vpop.f32.mrf.mxu0
        %v485 = vadd.f32 %v383, %v484
        %486 = vmatprep.mubr.f32.mxu0 %v295
        %487 = vmatmul.mubr.f32.gmra.mxu0 %v294
        %v488 = vpop.f32.mrf.mxu0
        %v489 = vadd.f32 %v379, %v488
        %v490 = vpop.f32.mrf.mxu0
        %v491 = vadd.f32 %v383, %v490
        %492 = vmatprep.mubr.f32.mxu0 %v297
        %493 = vmatmul.mubr.f32.gmra.mxu0 %v296
        %v494 = vpop.f32.mrf.mxu0
        %v495 = vadd.f32 %v379, %v494
        %v496 = vpop.f32.mrf.mxu0
        %v497 = vadd.f32 %v383, %v496
        %498 = vmatprep.mubr.f32.mxu0 %v299
        %499 = vmatmul.mubr.f32.gmra.mxu0 %v298
        %v500 = vpop.f32.mrf.mxu0
        %v501 = vadd.f32 %v379, %v500
        %v502 = vpop.f32.mrf.mxu0
        %v503 = vadd.f32 %v383, %v502
        %504 = vmatprep.mubr.f32.mxu0 %v301
        %505 = vmatmul.mubr.f32.gmra.mxu0 %v300
        %v506 = vpop.f32.mrf.mxu0
        %v507 = vadd.f32 %v379, %v506
        %v508 = vpop.f32.mrf.mxu0
        %v509 = vadd.f32 %v383, %v508
        %510 = vmatprep.mubr.f32.mxu0 %v303
        %511 = vmatmul.mubr.f32.gmra.mxu0 %v302
        %v512 = vpop.f32.mrf.mxu0
        %v513 = vadd.f32 %v379, %v512
        %v514 = vpop.f32.mrf.mxu0
        %v515 = vadd.f32 %v383, %v514
        %516 = vmatprep.mubr.f32.mxu0 %v305
        %517 = vmatmul.mubr.f32.gmra.mxu0 %v304
        %v518 = vpop.f32.mrf.mxu0
        %v519 = vadd.f32 %v379, %v518
        %v520 = vpop.f32.mrf.mxu0
        %v521 = vadd.f32 %v383, %v520
        %522 = vmatprep.mubr.f32.mxu0 %v307
        %523 = vmatmul.mubr.f32.gmra.mxu0 %v306
        %v524 = vpop.f32.mrf.mxu0
        %v525 = vadd.f32 %v379, %v524
        %v526 = vpop.f32.mrf.mxu0
        %v527 = vadd.f32 %v383, %v526
        %528 = vmatprep.mubr.f32.mxu0 %v309
        %529 = vmatmul.mubr.f32.gmra.mxu0 %v308
        %v530 = vpop.f32.mrf.mxu0
        %v531 = vadd.f32 %v379, %v530
        %v532 = vpop.f32.mrf.mxu0
        %v533 = vadd.f32 %v383, %v532
        %534 = vdwg.mxu0
        %v535 = vmax.f32 %v453, 0.0
        %v536 = vmax.f32 %v455, 0.0
        %v537 = vmax.f32 %v459, 0.0
        %v538 = vmax.f32 %v461, 0.0
        %v539 = vmax.f32 %v465, 0.0
        %v540 = vmax.f32 %v467, 0.0
        %v541 = vmax.f32 %v471, 0.0
        %v542 = vmax.f32 %v473, 0.0
        %v543 = vmax.f32 %v477, 0.0
        %v544 = vmax.f32 %v479, 0.0
        %v545 = vmax.f32 %v483, 0.0
        %v546 = vmax.f32 %v485, 0.0
        %v547 = vmax.f32 %v489, 0.0
        %v548 = vmax.f32 %v491, 0.0
        %v549 = vmax.f32 %v495, 0.0
        %v550 = vmax.f32 %v497, 0.0
        %v551 = vmax.f32 %v501, 0.0
        %v552 = vmax.f32 %v503, 0.0
        %v553 = vmax.f32 %v507, 0.0
        %v554 = vmax.f32 %v509, 0.0
        %v555 = vmax.f32 %v513, 0.0
        %v556 = vmax.f32 %v515, 0.0
        %v557 = vmax.f32 %v519, 0.0
        %v558 = vmax.f32 %v521, 0.0
        %v559 = vmax.f32 %v525, 0.0
        %v560 = vmax.f32 %v527, 0.0
        %v561 = vmax.f32 %v531, 0.0
        %v562 = vmax.f32 %v533, 0.0
        %s563 = scalar_lea.vmem %s1, 512
        %v564 = vld [vmem:[%s563] sm:$0xff]
        %v565 = vld [vmem:[%s563 + $0x8] sm:$0xff]
        %v566 = vld [vmem:[%s563 + $0x10] sm:$0xff]
        %v567 = vld [vmem:[%s563 + $0x18] sm:$0xff]
        %v568 = vld [vmem:[%s563 + $0x20] sm:$0xff]
        %v569 = vld [vmem:[%s563 + $0x28] sm:$0xff]
        %v570 = vld [vmem:[%s563 + $0x30] sm:$0xff]
        %v571 = vld [vmem:[%s563 + $0x38] sm:$0xff]
        %v572 = vld [vmem:[%s563 + $0x40] sm:$0xff]
        %v573 = vld [vmem:[%s563 + $0x48] sm:$0xff]
        %v574 = vld [vmem:[%s563 + $0x50] sm:$0xff]
        %v575 = vld [vmem:[%s563 + $0x58] sm:$0xff]
        %v576 = vld [vmem:[%s563 + $0x60] sm:$0xff]
        %v577 = vld [vmem:[%s563 + $0x68] sm:$0xff]
        %v578 = vld [vmem:[%s563 + $0x70] sm:$0xff]
        %v579 = vld [vmem:[%s563 + $0x78] sm:$0xff]
        %v580 = vld [vmem:[%s563 + $0x80] sm:$0xff]
        %v581 = vld [vmem:[%s563 + $0x88] sm:$0xff]
        %v582 = vld [vmem:[%s563 + $0x90] sm:$0xff]
        %v583 = vld [vmem:[%s563 + $0x98] sm:$0xff]
        %v584 = vld [vmem:[%s563 + $0xa0] sm:$0xff]
        %v585 = vld [vmem:[%s563 + $0xa8] sm:$0xff]
        %v586 = vld [vmem:[%s563 + $0xb0] sm:$0xff]
        %v587 = vld [vmem:[%s563 + $0xb8] sm:$0xff]
        %v588 = vld [vmem:[%s563 + $0xc0] sm:$0xff]
        %v589 = vld [vmem:[%s563 + $0xc8] sm:$0xff]
        %v590 = vld [vmem:[%s563 + $0xd0] sm:$0xff]
        %v591 = vld [vmem:[%s563 + $0xd8] sm:$0xff]
        %v592 = vld [vmem:[%s563 + $0xe0] sm:$0xff]
        %v593 = vld [vmem:[%s563 + $0xe8] sm:$0xff]
        %v594 = vld [vmem:[%s563 + $0xf0] sm:$0xff]
        %v595 = vld [vmem:[%s563 + $0xf8] sm:$0xff]
        %v596 = vld [vmem:[%s563 + $0x100] sm:$0xff]
        %v597 = vld [vmem:[%s563 + $0x108] sm:$0xff]
        %v598 = vld [vmem:[%s563 + $0x110] sm:$0xff]
        %v599 = vld [vmem:[%s563 + $0x118] sm:$0xff]
        %v600 = vld [vmem:[%s563 + $0x120] sm:$0xff]
        %v601 = vld [vmem:[%s563 + $0x128] sm:$0xff]
        %v602 = vld [vmem:[%s563 + $0x130] sm:$0xff]
        %v603 = vld [vmem:[%s563 + $0x138] sm:$0xff]
        %v604 = vld [vmem:[%s563 + $0x140] sm:$0xff]
        %v605 = vld [vmem:[%s563 + $0x148] sm:$0xff]
        %v606 = vld [vmem:[%s563 + $0x150] sm:$0xff]
        %v607 = vld [vmem:[%s563 + $0x158] sm:$0xff]
        %v608 = vld [vmem:[%s563 + $0x160] sm:$0xff]
        %v609 = vld [vmem:[%s563 + $0x168] sm:$0xff]
        %v610 = vld [vmem:[%s563 + $0x170] sm:$0xff]
        %v611 = vld [vmem:[%s563 + $0x178] sm:$0xff]
        %v612 = vld [vmem:[%s563 + $0x180] sm:$0xff]
        %v613 = vld [vmem:[%s563 + $0x188] sm:$0xff]
        %v614 = vld [vmem:[%s563 + $0x190] sm:$0xff]
        %v615 = vld [vmem:[%s563 + $0x198] sm:$0xff]
        %v616 = vld [vmem:[%s563 + $0x1a0] sm:$0xff]
        %v617 = vld [vmem:[%s563 + $0x1a8] sm:$0xff]
        %v618 = vld [vmem:[%s563 + $0x1b0] sm:$0xff]
        %v619 = vld [vmem:[%s563 + $0x1b8] sm:$0xff]
        %v620 = vld [vmem:[%s563 + $0x1c0] sm:$0xff]
        %v621 = vld [vmem:[%s563 + $0x1c8] sm:$0xff]
        %v622 = vld [vmem:[%s563 + $0x1d0] sm:$0xff]
        %v623 = vld [vmem:[%s563 + $0x1d8] sm:$0xff]
        %v624 = vld [vmem:[%s563 + $0x1e0] sm:$0xff]
        %v625 = vld [vmem:[%s563 + $0x1e8] sm:$0xff]
        %v626 = vld [vmem:[%s563 + $0x1f0] sm:$0xff]
        %v627 = vld [vmem:[%s563 + $0x1f8] sm:$0xff]
        %628 = vmatprep.subr.mxu0 %v595
        %629 = vmatpush1.msra.mxu0 %v594
        %630 = vmatprep.subr.mxu0 %v593
        %631 = vmatpush1.msra.mxu0 %v592
        %632 = vmatprep.subr.mxu0 %v591
        %633 = vmatpush1.msra.mxu0 %v590
        %634 = vmatprep.subr.mxu0 %v589
        %635 = vmatpush1.msra.mxu0 %v588
        %636 = vmatprep.subr.mxu0 %v587
        %637 = vmatpush1.msra.mxu0 %v586
        %638 = vmatprep.subr.mxu0 %v585
        %639 = vmatpush1.msra.mxu0 %v584
        %640 = vmatprep.subr.mxu0 %v583
        %641 = vmatpush1.msra.mxu0 %v582
        %642 = vmatprep.subr.mxu0 %v581
        %643 = vmatpush1.msra.mxu0 %v580
        %644 = vmatprep.subr.mxu0 %v579
        %645 = vmatpush1.msra.mxu0 %v578
        %646 = vmatprep.subr.mxu0 %v577
        %647 = vmatpush1.msra.mxu0 %v576
        %648 = vmatprep.subr.mxu0 %v575
        %649 = vmatpush1.msra.mxu0 %v574
        %650 = vmatprep.subr.mxu0 %v573
        %651 = vmatpush1.msra.mxu0 %v572
        %652 = vmatprep.subr.mxu0 %v571
        %653 = vmatpush1.msra.mxu0 %v570
        %654 = vmatprep.subr.mxu0 %v569
        %655 = vmatpush1.msra.mxu0 %v568
        %656 = vmatprep.subr.mxu0 %v567
        %657 = vmatpush1.msra.mxu0 %v566
        %658 = vmatprep.subr.mxu0 %v565
        %659 = vmatpush1.msra.mxu0 %v564
        %660 = vmatprep.subr.mxu0 %v627
        %661 = vmatpush2.msra.mxu0 %v626
        %662 = vmatprep.subr.mxu0 %v625
        %663 = vmatpush2.msra.mxu0 %v624
        %664 = vmatprep.subr.mxu0 %v623
        %665 = vmatpush2.msra.mxu0 %v622
        %666 = vmatprep.subr.mxu0 %v621
        %667 = vmatpush2.msra.mxu0 %v620
        %668 = vmatprep.subr.mxu0 %v619
        %669 = vmatpush2.msra.mxu0 %v618
        %670 = vmatprep.subr.mxu0 %v617
        %671 = vmatpush2.msra.mxu0 %v616
        %672 = vmatprep.subr.mxu0 %v615
        %673 = vmatpush2.msra.mxu0 %v614
        %674 = vmatprep.subr.mxu0 %v613
        %675 = vmatpush2.msra.mxu0 %v612
        %676 = vmatprep.subr.mxu0 %v611
        %677 = vmatpush2.msra.mxu0 %v610
        %678 = vmatprep.subr.mxu0 %v609
        %679 = vmatpush2.msra.mxu0 %v608
        %680 = vmatprep.subr.mxu0 %v607
        %681 = vmatpush2.msra.mxu0 %v606
        %682 = vmatprep.subr.mxu0 %v605
        %683 = vmatpush2.msra.mxu0 %v604
        %684 = vmatprep.subr.mxu0 %v603
        %685 = vmatpush2.msra.mxu0 %v602
        %686 = vmatprep.subr.mxu0 %v601
        %687 = vmatpush2.msra.mxu0 %v600
        %688 = vmatprep.subr.mxu0 %v599
        %689 = vmatpush2.msra.mxu0 %v598
        %690 = vmatprep.subr.mxu0 %v597
        %691 = vmatpush2.msra.mxu0 %v596
        %692 = vmatprep.mubr.f32.mxu0 %v283
        %693 = vmatmul.mubr.f32.gmra.mxu0 %v282
        %v694 = vpop.f32.mrf.mxu0
        %v695 = vadd.f32 %v379, %v694
        %v696 = vpop.f32.mrf.mxu0
        %v697 = vadd.f32 %v383, %v696
        %698 = vmatprep.mubr.f32.mxu0 %v285
        %699 = vmatmul.mubr.f32.gmra.mxu0 %v284
        %v700 = vpop.f32.mrf.mxu0
        %v701 = vadd.f32 %v379, %v700
        %v702 = vpop.f32.mrf.mxu0
        %v703 = vadd.f32 %v383, %v702
        %704 = vmatprep.mubr.f32.mxu0 %v287
        %705 = vmatmul.mubr.f32.gmra.mxu0 %v286
        %v706 = vpop.f32.mrf.mxu0
        %v707 = vadd.f32 %v379, %v706
        %v708 = vpop.f32.mrf.mxu0
        %v709 = vadd.f32 %v383, %v708
        %710 = vmatprep.mubr.f32.mxu0 %v289
        %711 = vmatmul.mubr.f32.gmra.mxu0 %v288
        %v712 = vpop.f32.mrf.mxu0
        %v713 = vadd.f32 %v379, %v712
        %v714 = vpop.f32.mrf.mxu0
        %v715 = vadd.f32 %v383, %v714
        %716 = vmatprep.mubr.f32.mxu0 %v291
        %717 = vmatmul.mubr.f32.gmra.mxu0 %v290
        %v718 = vpop.f32.mrf.mxu0
        %v719 = vadd.f32 %v379, %v718
        %v720 = vpop.f32.mrf.mxu0
        %v721 = vadd.f32 %v383, %v720
        %722 = vmatprep.mubr.f32.mxu0 %v293
        %723 = vmatmul.mubr.f32.gmra.mxu0 %v292
        %v724 = vpop.f32.mrf.mxu0
        %v725 = vadd.f32 %v379, %v724
        %v726 = vpop.f32.mrf.mxu0
        %v727 = vadd.f32 %v383, %v726
        %728 = vmatprep.mubr.f32.mxu0 %v295
        %729 = vmatmul.mubr.f32.gmra.mxu0 %v294
        %v730 = vpop.f32.mrf.mxu0
        %v731 = vadd.f32 %v379, %v730
        %v732 = vpop.f32.mrf.mxu0
        %v733 = vadd.f32 %v383, %v732
        %734 = vmatprep.mubr.f32.mxu0 %v297
        %735 = vmatmul.mubr.f32.gmra.mxu0 %v296
        %v736 = vpop.f32.mrf.mxu0
        %v737 = vadd.f32 %v379, %v736
        %v738 = vpop.f32.mrf.mxu0
        %v739 = vadd.f32 %v383, %v738
        %740 = vmatprep.mubr.f32.mxu0 %v299
        %741 = vmatmul.mubr.f32.gmra.mxu0 %v298
        %v742 = vpop.f32.mrf.mxu0
        %v743 = vadd.f32 %v379, %v742
        %v744 = vpop.f32.mrf.mxu0
        %v745 = vadd.f32 %v383, %v744
        %746 = vmatprep.mubr.f32.mxu0 %v301
        %747 = vmatmul.mubr.f32.gmra.mxu0 %v300
        %v748 = vpop.f32.mrf.mxu0
        %v749 = vadd.f32 %v379, %v748
        %v750 = vpop.f32.mrf.mxu0
        %v751 = vadd.f32 %v383, %v750
        %752 = vmatprep.mubr.f32.mxu0 %v303
        %753 = vmatmul.mubr.f32.gmra.mxu0 %v302
        %v754 = vpop.f32.mrf.mxu0
        %v755 = vadd.f32 %v379, %v754
        %v756 = vpop.f32.mrf.mxu0
        %v757 = vadd.f32 %v383, %v756
        %758 = vmatprep.mubr.f32.mxu0 %v305
        %759 = vmatmul.mubr.f32.gmra.mxu0 %v304
        %v760 = vpop.f32.mrf.mxu0
        %v761 = vadd.f32 %v379, %v760
        %v762 = vpop.f32.mrf.mxu0
        %v763 = vadd.f32 %v383, %v762
        %764 = vmatprep.mubr.f32.mxu0 %v307
        %765 = vmatmul.mubr.f32.gmra.mxu0 %v306
        %v766 = vpop.f32.mrf.mxu0
        %v767 = vadd.f32 %v379, %v766
        %v768 = vpop.f32.mrf.mxu0
        %v769 = vadd.f32 %v383, %v768
        %770 = vmatprep.mubr.f32.mxu0 %v309
        %771 = vmatmul.mubr.f32.gmra.mxu0 %v308
        %v772 = vpop.f32.mrf.mxu0
        %v773 = vadd.f32 %v379, %v772
        %v774 = vpop.f32.mrf.mxu0
        %v775 = vadd.f32 %v383, %v774
        %776 = vdwg.mxu0
        %v777 = vmax.f32 %v695, 0.0
        %v778 = vmax.f32 %v697, 0.0
        %v779 = vmax.f32 %v701, 0.0
        %v780 = vmax.f32 %v703, 0.0
        %v781 = vmax.f32 %v707, 0.0
        %v782 = vmax.f32 %v709, 0.0
        %v783 = vmax.f32 %v713, 0.0
        %v784 = vmax.f32 %v715, 0.0
        %v785 = vmax.f32 %v719, 0.0
        %v786 = vmax.f32 %v721, 0.0
        %v787 = vmax.f32 %v725, 0.0
        %v788 = vmax.f32 %v727, 0.0
        %v789 = vmax.f32 %v731, 0.0
        %v790 = vmax.f32 %v733, 0.0
        %v791 = vmax.f32 %v737, 0.0
        %v792 = vmax.f32 %v739, 0.0
        %v793 = vmax.f32 %v743, 0.0
        %v794 = vmax.f32 %v745, 0.0
        %v795 = vmax.f32 %v749, 0.0
        %v796 = vmax.f32 %v751, 0.0
        %v797 = vmax.f32 %v755, 0.0
        %v798 = vmax.f32 %v757, 0.0
        %v799 = vmax.f32 %v761, 0.0
        %v800 = vmax.f32 %v763, 0.0
        %v801 = vmax.f32 %v767, 0.0
        %v802 = vmax.f32 %v769, 0.0
        %v803 = vmax.f32 %v773, 0.0
        %v804 = vmax.f32 %v775, 0.0
        %v805 = vmax.f32 %v535, %v777
        %v806 = vmax.f32 %v536, %v778
        %v807 = vmax.f32 %v537, %v779
        %v808 = vmax.f32 %v538, %v780
        %v809 = vmax.f32 %v539, %v781
        %v810 = vmax.f32 %v540, %v782
        %v811 = vmax.f32 %v541, %v783
        %v812 = vmax.f32 %v542, %v784
        %v813 = vmax.f32 %v543, %v785
        %v814 = vmax.f32 %v544, %v786
        %v815 = vmax.f32 %v545, %v787
        %v816 = vmax.f32 %v546, %v788
        %v817 = vmax.f32 %v547, %v789
        %v818 = vmax.f32 %v548, %v790
        %v819 = vmax.f32 %v549, %v791
        %v820 = vmax.f32 %v550, %v792
        %v821 = vmax.f32 %v551, %v793
        %v822 = vmax.f32 %v552, %v794
        %v823 = vmax.f32 %v553, %v795
        %v824 = vmax.f32 %v554, %v796
        %v825 = vmax.f32 %v555, %v797
        %v826 = vmax.f32 %v556, %v798
        %v827 = vmax.f32 %v557, %v799
        %v828 = vmax.f32 %v558, %v800
        %v829 = vmax.f32 %v559, %v801
        %v830 = vmax.f32 %v560, %v802
        %v831 = vmax.f32 %v561, %v803
        %v832 = vmax.f32 %v562, %v804
        %s833 = scalar_lea.vmem %s1, 1024
        %v834 = vld [vmem:[%s833] sm:$0xff]
        %v835 = vld [vmem:[%s833 + $0x8] sm:$0xff]
        %v836 = vld [vmem:[%s833 + $0x10] sm:$0xff]
        %v837 = vld [vmem:[%s833 + $0x18] sm:$0xff]
        %v838 = vld [vmem:[%s833 + $0x20] sm:$0xff]
        %v839 = vld [vmem:[%s833 + $0x28] sm:$0xff]
        %v840 = vld [vmem:[%s833 + $0x30] sm:$0xff]
        %v841 = vld [vmem:[%s833 + $0x38] sm:$0xff]
        %v842 = vld [vmem:[%s833 + $0x40] sm:$0xff]
        %v843 = vld [vmem:[%s833 + $0x48] sm:$0xff]
        %v844 = vld [vmem:[%s833 + $0x50] sm:$0xff]
        %v845 = vld [vmem:[%s833 + $0x58] sm:$0xff]
        %v846 = vld [vmem:[%s833 + $0x60] sm:$0xff]
        %v847 = vld [vmem:[%s833 + $0x68] sm:$0xff]
        %v848 = vld [vmem:[%s833 + $0x70] sm:$0xff]
        %v849 = vld [vmem:[%s833 + $0x78] sm:$0xff]
        %v850 = vld [vmem:[%s833 + $0x80] sm:$0xff]
        %v851 = vld [vmem:[%s833 + $0x88] sm:$0xff]
        %v852 = vld [vmem:[%s833 + $0x90] sm:$0xff]
        %v853 = vld [vmem:[%s833 + $0x98] sm:$0xff]
        %v854 = vld [vmem:[%s833 + $0xa0] sm:$0xff]
        %v855 = vld [vmem:[%s833 + $0xa8] sm:$0xff]
        %v856 = vld [vmem:[%s833 + $0xb0] sm:$0xff]
        %v857 = vld [vmem:[%s833 + $0xb8] sm:$0xff]
        %v858 = vld [vmem:[%s833 + $0xc0] sm:$0xff]
        %v859 = vld [vmem:[%s833 + $0xc8] sm:$0xff]
        %v860 = vld [vmem:[%s833 + $0xd0] sm:$0xff]
        %v861 = vld [vmem:[%s833 + $0xd8] sm:$0xff]
        %v862 = vld [vmem:[%s833 + $0xe0] sm:$0xff]
        %v863 = vld [vmem:[%s833 + $0xe8] sm:$0xff]
        %v864 = vld [vmem:[%s833 + $0xf0] sm:$0xff]
        %v865 = vld [vmem:[%s833 + $0xf8] sm:$0xff]
        %v866 = vld [vmem:[%s833 + $0x100] sm:$0xff]
        %v867 = vld [vmem:[%s833 + $0x108] sm:$0xff]
        %v868 = vld [vmem:[%s833 + $0x110] sm:$0xff]
        %v869 = vld [vmem:[%s833 + $0x118] sm:$0xff]
        %v870 = vld [vmem:[%s833 + $0x120] sm:$0xff]
        %v871 = vld [vmem:[%s833 + $0x128] sm:$0xff]
        %v872 = vld [vmem:[%s833 + $0x130] sm:$0xff]
        %v873 = vld [vmem:[%s833 + $0x138] sm:$0xff]
        %v874 = vld [vmem:[%s833 + $0x140] sm:$0xff]
        %v875 = vld [vmem:[%s833 + $0x148] sm:$0xff]
        %v876 = vld [vmem:[%s833 + $0x150] sm:$0xff]
        %v877 = vld [vmem:[%s833 + $0x158] sm:$0xff]
        %v878 = vld [vmem:[%s833 + $0x160] sm:$0xff]
        %v879 = vld [vmem:[%s833 + $0x168] sm:$0xff]
        %v880 = vld [vmem:[%s833 + $0x170] sm:$0xff]
        %v881 = vld [vmem:[%s833 + $0x178] sm:$0xff]
        %v882 = vld [vmem:[%s833 + $0x180] sm:$0xff]
        %v883 = vld [vmem:[%s833 + $0x188] sm:$0xff]
        %v884 = vld [vmem:[%s833 + $0x190] sm:$0xff]
        %v885 = vld [vmem:[%s833 + $0x198] sm:$0xff]
        %v886 = vld [vmem:[%s833 + $0x1a0] sm:$0xff]
        %v887 = vld [vmem:[%s833 + $0x1a8] sm:$0xff]
        %v888 = vld [vmem:[%s833 + $0x1b0] sm:$0xff]
        %v889 = vld [vmem:[%s833 + $0x1b8] sm:$0xff]
        %v890 = vld [vmem:[%s833 + $0x1c0] sm:$0xff]
        %v891 = vld [vmem:[%s833 + $0x1c8] sm:$0xff]
        %v892 = vld [vmem:[%s833 + $0x1d0] sm:$0xff]
        %v893 = vld [vmem:[%s833 + $0x1d8] sm:$0xff]
        %v894 = vld [vmem:[%s833 + $0x1e0] sm:$0xff]
        %v895 = vld [vmem:[%s833 + $0x1e8] sm:$0xff]
        %v896 = vld [vmem:[%s833 + $0x1f0] sm:$0xff]
        %v897 = vld [vmem:[%s833 + $0x1f8] sm:$0xff]
        %898 = vmatprep.subr.mxu0 %v865
        %899 = vmatpush1.msra.mxu0 %v864
        %900 = vmatprep.subr.mxu0 %v863
        %901 = vmatpush1.msra.mxu0 %v862
        %902 = vmatprep.subr.mxu0 %v861
        %903 = vmatpush1.msra.mxu0 %v860
        %904 = vmatprep.subr.mxu0 %v859
        %905 = vmatpush1.msra.mxu0 %v858
        %906 = vmatprep.subr.mxu0 %v857
        %907 = vmatpush1.msra.mxu0 %v856
        %908 = vmatprep.subr.mxu0 %v855
        %909 = vmatpush1.msra.mxu0 %v854
        %910 = vmatprep.subr.mxu0 %v853
        %911 = vmatpush1.msra.mxu0 %v852
        %912 = vmatprep.subr.mxu0 %v851
        %913 = vmatpush1.msra.mxu0 %v850
        %914 = vmatprep.subr.mxu0 %v849
        %915 = vmatpush1.msra.mxu0 %v848
        %916 = vmatprep.subr.mxu0 %v847
        %917 = vmatpush1.msra.mxu0 %v846
        %918 = vmatprep.subr.mxu0 %v845
        %919 = vmatpush1.msra.mxu0 %v844
        %920 = vmatprep.subr.mxu0 %v843
        %921 = vmatpush1.msra.mxu0 %v842
        %922 = vmatprep.subr.mxu0 %v841
        %923 = vmatpush1.msra.mxu0 %v840
        %924 = vmatprep.subr.mxu0 %v839
        %925 = vmatpush1.msra.mxu0 %v838
        %926 = vmatprep.subr.mxu0 %v837
        %927 = vmatpush1.msra.mxu0 %v836
        %928 = vmatprep.subr.mxu0 %v835
        %929 = vmatpush1.msra.mxu0 %v834
        %930 = vmatprep.subr.mxu0 %v897
        %931 = vmatpush2.msra.mxu0 %v896
        %932 = vmatprep.subr.mxu0 %v895
        %933 = vmatpush2.msra.mxu0 %v894
        %934 = vmatprep.subr.mxu0 %v893
        %935 = vmatpush2.msra.mxu0 %v892
        %936 = vmatprep.subr.mxu0 %v891
        %937 = vmatpush2.msra.mxu0 %v890
        %938 = vmatprep.subr.mxu0 %v889
        %939 = vmatpush2.msra.mxu0 %v888
        %940 = vmatprep.subr.mxu0 %v887
        %941 = vmatpush2.msra.mxu0 %v886
        %942 = vmatprep.subr.mxu0 %v885
        %943 = vmatpush2.msra.mxu0 %v884
        %944 = vmatprep.subr.mxu0 %v883
        %945 = vmatpush2.msra.mxu0 %v882
        %946 = vmatprep.subr.mxu0 %v881
        %947 = vmatpush2.msra.mxu0 %v880
        %948 = vmatprep.subr.mxu0 %v879
        %949 = vmatpush2.msra.mxu0 %v878
        %950 = vmatprep.subr.mxu0 %v877
        %951 = vmatpush2.msra.mxu0 %v876
        %952 = vmatprep.subr.mxu0 %v875
        %953 = vmatpush2.msra.mxu0 %v874
        %954 = vmatprep.subr.mxu0 %v873
        %955 = vmatpush2.msra.mxu0 %v872
        %956 = vmatprep.subr.mxu0 %v871
        %957 = vmatpush2.msra.mxu0 %v870
        %958 = vmatprep.subr.mxu0 %v869
        %959 = vmatpush2.msra.mxu0 %v868
        %960 = vmatprep.subr.mxu0 %v867
        %961 = vmatpush2.msra.mxu0 %v866
        %962 = vmatprep.mubr.f32.mxu0 %v283
        %963 = vmatmul.mubr.f32.gmra.mxu0 %v282
        %v964 = vpop.f32.mrf.mxu0
        %v965 = vadd.f32 %v379, %v964
        %v966 = vpop.f32.mrf.mxu0
        %v967 = vadd.f32 %v383, %v966
        %968 = vmatprep.mubr.f32.mxu0 %v285
        %969 = vmatmul.mubr.f32.gmra.mxu0 %v284
        %v970 = vpop.f32.mrf.mxu0
        %v971 = vadd.f32 %v379, %v970
        %v972 = vpop.f32.mrf.mxu0
        %v973 = vadd.f32 %v383, %v972
        %974 = vmatprep.mubr.f32.mxu0 %v287
        %975 = vmatmul.mubr.f32.gmra.mxu0 %v286
        %v976 = vpop.f32.mrf.mxu0
        %v977 = vadd.f32 %v379, %v976
        %v978 = vpop.f32.mrf.mxu0
        %v979 = vadd.f32 %v383, %v978
        %980 = vmatprep.mubr.f32.mxu0 %v289
        %981 = vmatmul.mubr.f32.gmra.mxu0 %v288
        %v982 = vpop.f32.mrf.mxu0
        %v983 = vadd.f32 %v379, %v982
        %v984 = vpop.f32.mrf.mxu0
        %v985 = vadd.f32 %v383, %v984
        %986 = vmatprep.mubr.f32.mxu0 %v291
        %987 = vmatmul.mubr.f32.gmra.mxu0 %v290
        %v988 = vpop.f32.mrf.mxu0
        %v989 = vadd.f32 %v379, %v988
        %v990 = vpop.f32.mrf.mxu0
        %v991 = vadd.f32 %v383, %v990
        %992 = vmatprep.mubr.f32.mxu0 %v293
        %993 = vmatmul.mubr.f32.gmra.mxu0 %v292
        %v994 = vpop.f32.mrf.mxu0
        %v995 = vadd.f32 %v379, %v994
        %v996 = vpop.f32.mrf.mxu0
        %v997 = vadd.f32 %v383, %v996
        %998 = vmatprep.mubr.f32.mxu0 %v295
        %999 = vmatmul.mubr.f32.gmra.mxu0 %v294
        %v1000 = vpop.f32.mrf.mxu0
        %v1001 = vadd.f32 %v379, %v1000
        %v1002 = vpop.f32.mrf.mxu0
        %v1003 = vadd.f32 %v383, %v1002
        %1004 = vmatprep.mubr.f32.mxu0 %v297
        %1005 = vmatmul.mubr.f32.gmra.mxu0 %v296
        %v1006 = vpop.f32.mrf.mxu0
        %v1007 = vadd.f32 %v379, %v1006
        %v1008 = vpop.f32.mrf.mxu0
        %v1009 = vadd.f32 %v383, %v1008
        %1010 = vmatprep.mubr.f32.mxu0 %v299
        %1011 = vmatmul.mubr.f32.gmra.mxu0 %v298
        %v1012 = vpop.f32.mrf.mxu0
        %v1013 = vadd.f32 %v379, %v1012
        %v1014 = vpop.f32.mrf.mxu0
        %v1015 = vadd.f32 %v383, %v1014
        %1016 = vmatprep.mubr.f32.mxu0 %v301
        %1017 = vmatmul.mubr.f32.gmra.mxu0 %v300
        %v1018 = vpop.f32.mrf.mxu0
        %v1019 = vadd.f32 %v379, %v1018
        %v1020 = vpop.f32.mrf.mxu0
        %v1021 = vadd.f32 %v383, %v1020
        %1022 = vmatprep.mubr.f32.mxu0 %v303
        %1023 = vmatmul.mubr.f32.gmra.mxu0 %v302
        %v1024 = vpop.f32.mrf.mxu0
        %v1025 = vadd.f32 %v379, %v1024
        %v1026 = vpop.f32.mrf.mxu0
        %v1027 = vadd.f32 %v383, %v1026
        %1028 = vmatprep.mubr.f32.mxu0 %v305
        %1029 = vmatmul.mubr.f32.gmra.mxu0 %v304
        %v1030 = vpop.f32.mrf.mxu0
        %v1031 = vadd.f32 %v379, %v1030
        %v1032 = vpop.f32.mrf.mxu0
        %v1033 = vadd.f32 %v383, %v1032
        %1034 = vmatprep.mubr.f32.mxu0 %v307
        %1035 = vmatmul.mubr.f32.gmra.mxu0 %v306
        %v1036 = vpop.f32.mrf.mxu0
        %v1037 = vadd.f32 %v379, %v1036
        %v1038 = vpop.f32.mrf.mxu0
        %v1039 = vadd.f32 %v383, %v1038
        %1040 = vmatprep.mubr.f32.mxu0 %v309
        %1041 = vmatmul.mubr.f32.gmra.mxu0 %v308
        %v1042 = vpop.f32.mrf.mxu0
        %v1043 = vadd.f32 %v379, %v1042
        %v1044 = vpop.f32.mrf.mxu0
        %v1045 = vadd.f32 %v383, %v1044
        %1046 = vdwg.mxu0
        %v1047 = vmax.f32 %v965, 0.0
        %v1048 = vmax.f32 %v967, 0.0
        %v1049 = vmax.f32 %v971, 0.0
        %v1050 = vmax.f32 %v973, 0.0
        %v1051 = vmax.f32 %v977, 0.0
        %v1052 = vmax.f32 %v979, 0.0
        %v1053 = vmax.f32 %v983, 0.0
        %v1054 = vmax.f32 %v985, 0.0
        %v1055 = vmax.f32 %v989, 0.0
        %v1056 = vmax.f32 %v991, 0.0
        %v1057 = vmax.f32 %v995, 0.0
        %v1058 = vmax.f32 %v997, 0.0
        %v1059 = vmax.f32 %v1001, 0.0
        %v1060 = vmax.f32 %v1003, 0.0
        %v1061 = vmax.f32 %v1007, 0.0
        %v1062 = vmax.f32 %v1009, 0.0
        %v1063 = vmax.f32 %v1013, 0.0
        %v1064 = vmax.f32 %v1015, 0.0
        %v1065 = vmax.f32 %v1019, 0.0
        %v1066 = vmax.f32 %v1021, 0.0
        %v1067 = vmax.f32 %v1025, 0.0
        %v1068 = vmax.f32 %v1027, 0.0
        %v1069 = vmax.f32 %v1031, 0.0
        %v1070 = vmax.f32 %v1033, 0.0
        %v1071 = vmax.f32 %v1037, 0.0
        %v1072 = vmax.f32 %v1039, 0.0
        %v1073 = vmax.f32 %v1043, 0.0
        %v1074 = vmax.f32 %v1045, 0.0
        %v1075 = vmax.f32 %v805, %v1047
        %v1076 = vmax.f32 %v806, %v1048
        %v1077 = vmax.f32 %v807, %v1049
        %v1078 = vmax.f32 %v808, %v1050
        %v1079 = vmax.f32 %v809, %v1051
        %v1080 = vmax.f32 %v810, %v1052
        %v1081 = vmax.f32 %v811, %v1053
        %v1082 = vmax.f32 %v812, %v1054
        %v1083 = vmax.f32 %v813, %v1055
        %v1084 = vmax.f32 %v814, %v1056
        %v1085 = vmax.f32 %v815, %v1057
        %v1086 = vmax.f32 %v816, %v1058
        %v1087 = vmax.f32 %v817, %v1059
        %v1088 = vmax.f32 %v818, %v1060
        %v1089 = vmax.f32 %v819, %v1061
        %v1090 = vmax.f32 %v820, %v1062
        %v1091 = vmax.f32 %v821, %v1063
        %v1092 = vmax.f32 %v822, %v1064
        %v1093 = vmax.f32 %v823, %v1065
        %v1094 = vmax.f32 %v824, %v1066
        %v1095 = vmax.f32 %v825, %v1067
        %v1096 = vmax.f32 %v826, %v1068
        %v1097 = vmax.f32 %v827, %v1069
        %v1098 = vmax.f32 %v828, %v1070
        %v1099 = vmax.f32 %v829, %v1071
        %v1100 = vmax.f32 %v830, %v1072
        %v1101 = vmax.f32 %v831, %v1073
        %v1102 = vmax.f32 %v832, %v1074
        %s1103 = scalar_lea.vmem %s1, 1536
        %v1104 = vld [vmem:[%s1103] sm:$0xff]
        %v1105 = vld [vmem:[%s1103 + $0x8] sm:$0xff]
        %v1106 = vld [vmem:[%s1103 + $0x10] sm:$0xff]
        %v1107 = vld [vmem:[%s1103 + $0x18] sm:$0xff]
        %v1108 = vld [vmem:[%s1103 + $0x20] sm:$0xff]
        %v1109 = vld [vmem:[%s1103 + $0x28] sm:$0xff]
        %v1110 = vld [vmem:[%s1103 + $0x30] sm:$0xff]
        %v1111 = vld [vmem:[%s1103 + $0x38] sm:$0xff]
        %v1112 = vld [vmem:[%s1103 + $0x40] sm:$0xff]
        %v1113 = vld [vmem:[%s1103 + $0x48] sm:$0xff]
        %v1114 = vld [vmem:[%s1103 + $0x50] sm:$0xff]
        %v1115 = vld [vmem:[%s1103 + $0x58] sm:$0xff]
        %v1116 = vld [vmem:[%s1103 + $0x60] sm:$0xff]
        %v1117 = vld [vmem:[%s1103 + $0x68] sm:$0xff]
        %v1118 = vld [vmem:[%s1103 + $0x70] sm:$0xff]
        %v1119 = vld [vmem:[%s1103 + $0x78] sm:$0xff]
        %v1120 = vld [vmem:[%s1103 + $0x80] sm:$0xff]
        %v1121 = vld [vmem:[%s1103 + $0x88] sm:$0xff]
        %v1122 = vld [vmem:[%s1103 + $0x90] sm:$0xff]
        %v1123 = vld [vmem:[%s1103 + $0x98] sm:$0xff]
        %v1124 = vld [vmem:[%s1103 + $0xa0] sm:$0xff]
        %v1125 = vld [vmem:[%s1103 + $0xa8] sm:$0xff]
        %v1126 = vld [vmem:[%s1103 + $0xb0] sm:$0xff]
        %v1127 = vld [vmem:[%s1103 + $0xb8] sm:$0xff]
        %v1128 = vld [vmem:[%s1103 + $0xc0] sm:$0xff]
        %v1129 = vld [vmem:[%s1103 + $0xc8] sm:$0xff]
        %v1130 = vld [vmem:[%s1103 + $0xd0] sm:$0xff]
        %v1131 = vld [vmem:[%s1103 + $0xd8] sm:$0xff]
        %v1132 = vld [vmem:[%s1103 + $0xe0] sm:$0xff]
        %v1133 = vld [vmem:[%s1103 + $0xe8] sm:$0xff]
        %v1134 = vld [vmem:[%s1103 + $0xf0] sm:$0xff]
        %v1135 = vld [vmem:[%s1103 + $0xf8] sm:$0xff]
        %v1136 = vld [vmem:[%s1103 + $0x100] sm:$0xff]
        %v1137 = vld [vmem:[%s1103 + $0x108] sm:$0xff]
        %v1138 = vld [vmem:[%s1103 + $0x110] sm:$0xff]
        %v1139 = vld [vmem:[%s1103 + $0x118] sm:$0xff]
        %v1140 = vld [vmem:[%s1103 + $0x120] sm:$0xff]
        %v1141 = vld [vmem:[%s1103 + $0x128] sm:$0xff]
        %v1142 = vld [vmem:[%s1103 + $0x130] sm:$0xff]
        %v1143 = vld [vmem:[%s1103 + $0x138] sm:$0xff]
        %v1144 = vld [vmem:[%s1103 + $0x140] sm:$0xff]
        %v1145 = vld [vmem:[%s1103 + $0x148] sm:$0xff]
        %v1146 = vld [vmem:[%s1103 + $0x150] sm:$0xff]
        %v1147 = vld [vmem:[%s1103 + $0x158] sm:$0xff]
        %v1148 = vld [vmem:[%s1103 + $0x160] sm:$0xff]
        %v1149 = vld [vmem:[%s1103 + $0x168] sm:$0xff]
        %v1150 = vld [vmem:[%s1103 + $0x170] sm:$0xff]
        %v1151 = vld [vmem:[%s1103 + $0x178] sm:$0xff]
        %v1152 = vld [vmem:[%s1103 + $0x180] sm:$0xff]
        %v1153 = vld [vmem:[%s1103 + $0x188] sm:$0xff]
        %v1154 = vld [vmem:[%s1103 + $0x190] sm:$0xff]
        %v1155 = vld [vmem:[%s1103 + $0x198] sm:$0xff]
        %v1156 = vld [vmem:[%s1103 + $0x1a0] sm:$0xff]
        %v1157 = vld [vmem:[%s1103 + $0x1a8] sm:$0xff]
        %v1158 = vld [vmem:[%s1103 + $0x1b0] sm:$0xff]
        %v1159 = vld [vmem:[%s1103 + $0x1b8] sm:$0xff]
        %v1160 = vld [vmem:[%s1103 + $0x1c0] sm:$0xff]
        %v1161 = vld [vmem:[%s1103 + $0x1c8] sm:$0xff]
        %v1162 = vld [vmem:[%s1103 + $0x1d0] sm:$0xff]
        %v1163 = vld [vmem:[%s1103 + $0x1d8] sm:$0xff]
        %v1164 = vld [vmem:[%s1103 + $0x1e0] sm:$0xff]
        %v1165 = vld [vmem:[%s1103 + $0x1e8] sm:$0xff]
        %v1166 = vld [vmem:[%s1103 + $0x1f0] sm:$0xff]
        %v1167 = vld [vmem:[%s1103 + $0x1f8] sm:$0xff]
        %1168 = vmatprep.subr.mxu0 %v1135
        %1169 = vmatpush1.msra.mxu0 %v1134
        %1170 = vmatprep.subr.mxu0 %v1133
        %1171 = vmatpush1.msra.mxu0 %v1132
        %1172 = vmatprep.subr.mxu0 %v1131
        %1173 = vmatpush1.msra.mxu0 %v1130
        %1174 = vmatprep.subr.mxu0 %v1129
        %1175 = vmatpush1.msra.mxu0 %v1128
        %1176 = vmatprep.subr.mxu0 %v1127
        %1177 = vmatpush1.msra.mxu0 %v1126
        %1178 = vmatprep.subr.mxu0 %v1125
        %1179 = vmatpush1.msra.mxu0 %v1124
        %1180 = vmatprep.subr.mxu0 %v1123
        %1181 = vmatpush1.msra.mxu0 %v1122
        %1182 = vmatprep.subr.mxu0 %v1121
        %1183 = vmatpush1.msra.mxu0 %v1120
        %1184 = vmatprep.subr.mxu0 %v1119
        %1185 = vmatpush1.msra.mxu0 %v1118
        %1186 = vmatprep.subr.mxu0 %v1117
        %1187 = vmatpush1.msra.mxu0 %v1116
        %1188 = vmatprep.subr.mxu0 %v1115
        %1189 = vmatpush1.msra.mxu0 %v1114
        %1190 = vmatprep.subr.mxu0 %v1113
        %1191 = vmatpush1.msra.mxu0 %v1112
        %1192 = vmatprep.subr.mxu0 %v1111
        %1193 = vmatpush1.msra.mxu0 %v1110
        %1194 = vmatprep.subr.mxu0 %v1109
        %1195 = vmatpush1.msra.mxu0 %v1108
        %1196 = vmatprep.subr.mxu0 %v1107
        %1197 = vmatpush1.msra.mxu0 %v1106
        %1198 = vmatprep.subr.mxu0 %v1105
        %1199 = vmatpush1.msra.mxu0 %v1104
        %1200 = vmatprep.subr.mxu0 %v1167
        %1201 = vmatpush2.msra.mxu0 %v1166
        %1202 = vmatprep.subr.mxu0 %v1165
        %1203 = vmatpush2.msra.mxu0 %v1164
        %1204 = vmatprep.subr.mxu0 %v1163
        %1205 = vmatpush2.msra.mxu0 %v1162
        %1206 = vmatprep.subr.mxu0 %v1161
        %1207 = vmatpush2.msra.mxu0 %v1160
        %1208 = vmatprep.subr.mxu0 %v1159
        %1209 = vmatpush2.msra.mxu0 %v1158
        %1210 = vmatprep.subr.mxu0 %v1157
        %1211 = vmatpush2.msra.mxu0 %v1156
        %1212 = vmatprep.subr.mxu0 %v1155
        %1213 = vmatpush2.msra.mxu0 %v1154
        %1214 = vmatprep.subr.mxu0 %v1153
        %1215 = vmatpush2.msra.mxu0 %v1152
        %1216 = vmatprep.subr.mxu0 %v1151
        %1217 = vmatpush2.msra.mxu0 %v1150
        %1218 = vmatprep.subr.mxu0 %v1149
        %1219 = vmatpush2.msra.mxu0 %v1148
        %1220 = vmatprep.subr.mxu0 %v1147
        %1221 = vmatpush2.msra.mxu0 %v1146
        %1222 = vmatprep.subr.mxu0 %v1145
        %1223 = vmatpush2.msra.mxu0 %v1144
        %1224 = vmatprep.subr.mxu0 %v1143
        %1225 = vmatpush2.msra.mxu0 %v1142
        %1226 = vmatprep.subr.mxu0 %v1141
        %1227 = vmatpush2.msra.mxu0 %v1140
        %1228 = vmatprep.subr.mxu0 %v1139
        %1229 = vmatpush2.msra.mxu0 %v1138
        %1230 = vmatprep.subr.mxu0 %v1137
        %1231 = vmatpush2.msra.mxu0 %v1136
        %1232 = vmatprep.mubr.f32.mxu0 %v283
        %1233 = vmatmul.mubr.f32.gmra.mxu0 %v282
        %v1234 = vpop.f32.mrf.mxu0
        %v1235 = vadd.f32 %v379, %v1234
        %v1236 = vpop.f32.mrf.mxu0
        %v1237 = vadd.f32 %v383, %v1236
        %1238 = vmatprep.mubr.f32.mxu0 %v285
        %1239 = vmatmul.mubr.f32.gmra.mxu0 %v284
        %v1240 = vpop.f32.mrf.mxu0
        %v1241 = vadd.f32 %v379, %v1240
        %v1242 = vpop.f32.mrf.mxu0
        %v1243 = vadd.f32 %v383, %v1242
        %1244 = vmatprep.mubr.f32.mxu0 %v287
        %1245 = vmatmul.mubr.f32.gmra.mxu0 %v286
        %v1246 = vpop.f32.mrf.mxu0
        %v1247 = vadd.f32 %v379, %v1246
        %v1248 = vpop.f32.mrf.mxu0
        %v1249 = vadd.f32 %v383, %v1248
        %1250 = vmatprep.mubr.f32.mxu0 %v289
        %1251 = vmatmul.mubr.f32.gmra.mxu0 %v288
        %v1252 = vpop.f32.mrf.mxu0
        %v1253 = vadd.f32 %v379, %v1252
        %v1254 = vpop.f32.mrf.mxu0
        %v1255 = vadd.f32 %v383, %v1254
        %1256 = vmatprep.mubr.f32.mxu0 %v291
        %1257 = vmatmul.mubr.f32.gmra.mxu0 %v290
        %v1258 = vpop.f32.mrf.mxu0
        %v1259 = vadd.f32 %v379, %v1258
        %v1260 = vpop.f32.mrf.mxu0
        %v1261 = vadd.f32 %v383, %v1260
        %1262 = vmatprep.mubr.f32.mxu0 %v293
        %1263 = vmatmul.mubr.f32.gmra.mxu0 %v292
        %v1264 = vpop.f32.mrf.mxu0
        %v1265 = vadd.f32 %v379, %v1264
        %v1266 = vpop.f32.mrf.mxu0
        %v1267 = vadd.f32 %v383, %v1266
        %1268 = vmatprep.mubr.f32.mxu0 %v295
        %1269 = vmatmul.mubr.f32.gmra.mxu0 %v294
        %v1270 = vpop.f32.mrf.mxu0
        %v1271 = vadd.f32 %v379, %v1270
        %v1272 = vpop.f32.mrf.mxu0
        %v1273 = vadd.f32 %v383, %v1272
        %1274 = vmatprep.mubr.f32.mxu0 %v297
        %1275 = vmatmul.mubr.f32.gmra.mxu0 %v296
        %v1276 = vpop.f32.mrf.mxu0
        %v1277 = vadd.f32 %v379, %v1276
        %v1278 = vpop.f32.mrf.mxu0
        %v1279 = vadd.f32 %v383, %v1278
        %1280 = vmatprep.mubr.f32.mxu0 %v299
        %1281 = vmatmul.mubr.f32.gmra.mxu0 %v298
        %v1282 = vpop.f32.mrf.mxu0
        %v1283 = vadd.f32 %v379, %v1282
        %v1284 = vpop.f32.mrf.mxu0
        %v1285 = vadd.f32 %v383, %v1284
        %1286 = vmatprep.mubr.f32.mxu0 %v301
        %1287 = vmatmul.mubr.f32.gmra.mxu0 %v300
        %v1288 = vpop.f32.mrf.mxu0
        %v1289 = vadd.f32 %v379, %v1288
        %v1290 = vpop.f32.mrf.mxu0
        %v1291 = vadd.f32 %v383, %v1290
        %1292 = vmatprep.mubr.f32.mxu0 %v303
        %1293 = vmatmul.mubr.f32.gmra.mxu0 %v302
        %v1294 = vpop.f32.mrf.mxu0
        %v1295 = vadd.f32 %v379, %v1294
        %v1296 = vpop.f32.mrf.mxu0
        %v1297 = vadd.f32 %v383, %v1296
        %1298 = vmatprep.mubr.f32.mxu0 %v305
        %1299 = vmatmul.mubr.f32.gmra.mxu0 %v304
        %v1300 = vpop.f32.mrf.mxu0
        %v1301 = vadd.f32 %v379, %v1300
        %v1302 = vpop.f32.mrf.mxu0
        %v1303 = vadd.f32 %v383, %v1302
        %1304 = vmatprep.mubr.f32.mxu0 %v307
        %1305 = vmatmul.mubr.f32.gmra.mxu0 %v306
        %v1306 = vpop.f32.mrf.mxu0
        %v1307 = vadd.f32 %v379, %v1306
        %v1308 = vpop.f32.mrf.mxu0
        %v1309 = vadd.f32 %v383, %v1308
        %1310 = vmatprep.mubr.f32.mxu0 %v309
        %1311 = vmatmul.mubr.f32.gmra.mxu0 %v308
        %v1312 = vpop.f32.mrf.mxu0
        %v1313 = vadd.f32 %v379, %v1312
        %v1314 = vpop.f32.mrf.mxu0
        %v1315 = vadd.f32 %v383, %v1314
        %1316 = vdwg.mxu0
        %v1317 = vmax.f32 %v1235, 0.0
        %v1318 = vmax.f32 %v1237, 0.0
        %v1319 = vmax.f32 %v1241, 0.0
        %v1320 = vmax.f32 %v1243, 0.0
        %v1321 = vmax.f32 %v1247, 0.0
        %v1322 = vmax.f32 %v1249, 0.0
        %v1323 = vmax.f32 %v1253, 0.0
        %v1324 = vmax.f32 %v1255, 0.0
        %v1325 = vmax.f32 %v1259, 0.0
        %v1326 = vmax.f32 %v1261, 0.0
        %v1327 = vmax.f32 %v1265, 0.0
        %v1328 = vmax.f32 %v1267, 0.0
        %v1329 = vmax.f32 %v1271, 0.0
        %v1330 = vmax.f32 %v1273, 0.0
        %v1331 = vmax.f32 %v1277, 0.0
        %v1332 = vmax.f32 %v1279, 0.0
        %v1333 = vmax.f32 %v1283, 0.0
        %v1334 = vmax.f32 %v1285, 0.0
        %v1335 = vmax.f32 %v1289, 0.0
        %v1336 = vmax.f32 %v1291, 0.0
        %v1337 = vmax.f32 %v1295, 0.0
        %v1338 = vmax.f32 %v1297, 0.0
        %v1339 = vmax.f32 %v1301, 0.0
        %v1340 = vmax.f32 %v1303, 0.0
        %v1341 = vmax.f32 %v1307, 0.0
        %v1342 = vmax.f32 %v1309, 0.0
        %v1343 = vmax.f32 %v1313, 0.0
        %v1344 = vmax.f32 %v1315, 0.0
        %v1345 = vmax.f32 %v1075, %v1317
        %v1346 = vmax.f32 %v1076, %v1318
        %v1347 = vmax.f32 %v1077, %v1319
        %v1348 = vmax.f32 %v1078, %v1320
        %v1349 = vmax.f32 %v1079, %v1321
        %v1350 = vmax.f32 %v1080, %v1322
        %v1351 = vmax.f32 %v1081, %v1323
        %v1352 = vmax.f32 %v1082, %v1324
        %v1353 = vmax.f32 %v1083, %v1325
        %v1354 = vmax.f32 %v1084, %v1326
        %v1355 = vmax.f32 %v1085, %v1327
        %v1356 = vmax.f32 %v1086, %v1328
        %v1357 = vmax.f32 %v1087, %v1329
        %v1358 = vmax.f32 %v1088, %v1330
        %v1359 = vmax.f32 %v1089, %v1331
        %v1360 = vmax.f32 %v1090, %v1332
        %v1361 = vmax.f32 %v1091, %v1333
        %v1362 = vmax.f32 %v1092, %v1334
        %v1363 = vmax.f32 %v1093, %v1335
        %v1364 = vmax.f32 %v1094, %v1336
        %v1365 = vmax.f32 %v1095, %v1337
        %v1366 = vmax.f32 %v1096, %v1338
        %v1367 = vmax.f32 %v1097, %v1339
        %v1368 = vmax.f32 %v1098, %v1340
        %v1369 = vmax.f32 %v1099, %v1341
        %v1370 = vmax.f32 %v1100, %v1342
        %v1371 = vmax.f32 %v1101, %v1343
        %v1372 = vmax.f32 %v1102, %v1344
        %1373 = vst [vmem:[#allocation2] sm:$0xff] %v1345
        %1374 = vst [vmem:[#allocation2 + $0x8] sm:$0xff] %v1346
        %1375 = vst [vmem:[#allocation2 + $0x10] sm:$0xff] %v1347
        %1376 = vst [vmem:[#allocation2 + $0x18] sm:$0xff] %v1348
        %1377 = vst [vmem:[#allocation2 + $0x20] sm:$0xff] %v1349
        %1378 = vst [vmem:[#allocation2 + $0x28] sm:$0xff] %v1350
        %1379 = vst [vmem:[#allocation2 + $0x30] sm:$0xff] %v1351
        %1380 = vst [vmem:[#allocation2 + $0x38] sm:$0xff] %v1352
        %1381 = vst [vmem:[#allocation2 + $0x40] sm:$0xff] %v1353
        %1382 = vst [vmem:[#allocation2 + $0x48] sm:$0xff] %v1354
        %1383 = vst [vmem:[#allocation2 + $0x50] sm:$0xff] %v1355
        %1384 = vst [vmem:[#allocation2 + $0x58] sm:$0xff] %v1356
        %1385 = vst [vmem:[#allocation2 + $0x60] sm:$0xff] %v1357
        %1386 = vst [vmem:[#allocation2 + $0x68] sm:$0xff] %v1358
        %1387 = vst [vmem:[#allocation2 + $0x70] sm:$0xff] %v1359
        %1388 = vst [vmem:[#allocation2 + $0x78] sm:$0xff] %v1360
        %1389 = vst [vmem:[#allocation2 + $0x80] sm:$0xff] %v1361
        %1390 = vst [vmem:[#allocation2 + $0x88] sm:$0xff] %v1362
        %1391 = vst [vmem:[#allocation2 + $0x90] sm:$0xff] %v1363
        %1392 = vst [vmem:[#allocation2 + $0x98] sm:$0xff] %v1364
        %1393 = vst [vmem:[#allocation2 + $0xa0] sm:$0xff] %v1365
        %1394 = vst [vmem:[#allocation2 + $0xa8] sm:$0xff] %v1366
        %1395 = vst [vmem:[#allocation2 + $0xb0] sm:$0xff] %v1367
        %1396 = vst [vmem:[#allocation2 + $0xb8] sm:$0xff] %v1368
        %1397 = vst [vmem:[#allocation2 + $0xc0] sm:$0xff] %v1369
        %1398 = vst [vmem:[#allocation2 + $0xc8] sm:$0xff] %v1370
        %1399 = vst [vmem:[#allocation2 + $0xd0] sm:$0xff] %v1371
        %1400 = vst [vmem:[#allocation2 + $0xd8] sm:$0xff] %v1372
        %v1401 = vld [vmem:[#allocation2] sm:$0xff]
        %v1402 = vld [vmem:[#allocation2 + $0x8] sm:$0xff]
        %v1403 = vld [vmem:[#allocation2 + $0x10] sm:$0xff]
        %v1404 = vld [vmem:[#allocation2 + $0x18] sm:$0xff]
        %v1405 = vld [vmem:[#allocation2 + $0x20] sm:$0xff]
        %v1406 = vld [vmem:[#allocation2 + $0x28] sm:$0xff]
        %v1407 = vld [vmem:[#allocation2 + $0x30] sm:$0xff]
        %v1408 = vld [vmem:[#allocation2 + $0x38] sm:$0xff]
        %v1409 = vld [vmem:[#allocation2 + $0x40] sm:$0xff]
        %v1410 = vld [vmem:[#allocation2 + $0x48] sm:$0xff]
        %v1411 = vld [vmem:[#allocation2 + $0x50] sm:$0xff]
        %v1412 = vld [vmem:[#allocation2 + $0x58] sm:$0xff]
        %v1413 = vld [vmem:[#allocation2 + $0x60] sm:$0xff]
        %v1414 = vld [vmem:[#allocation2 + $0x68] sm:$0xff]
        %v1415 = vld [vmem:[#allocation2 + $0x70] sm:$0xff]
        %v1416 = vld [vmem:[#allocation2 + $0x78] sm:$0xff]
        %v1417 = vld [vmem:[#allocation2 + $0x80] sm:$0xff]
        %v1418 = vld [vmem:[#allocation2 + $0x88] sm:$0xff]
        %v1419 = vld [vmem:[#allocation2 + $0x90] sm:$0xff]
        %v1420 = vld [vmem:[#allocation2 + $0x98] sm:$0xff]
        %v1421 = vld [vmem:[#allocation2 + $0xa0] sm:$0xff]
        %v1422 = vld [vmem:[#allocation2 + $0xa8] sm:$0xff]
        %v1423 = vld [vmem:[#allocation2 + $0xb0] sm:$0xff]
        %v1424 = vld [vmem:[#allocation2 + $0xb8] sm:$0xff]
        %v1425 = vld [vmem:[#allocation2 + $0xc0] sm:$0xff]
        %v1426 = vld [vmem:[#allocation2 + $0xc8] sm:$0xff]
        %v1427 = vld [vmem:[#allocation2 + $0xd0] sm:$0xff]
        %v1428 = vld [vmem:[#allocation2 + $0xd8] sm:$0xff]
        %v1429 = vld [vmem:[%s3] sm:$0xff]
        %v1430 = vld [vmem:[%s3 + $0x8] sm:$0xff]
        %v1431 = vld [vmem:[%s3 + $0x10] sm:$0xff]
        %v1432 = vld [vmem:[%s3 + $0x18] sm:$0xff]
        %v1433 = vld [vmem:[%s3 + $0x20] sm:$0xff]
        %v1434 = vld [vmem:[%s3 + $0x28] sm:$0xff]
        %v1435 = vld [vmem:[%s3 + $0x30] sm:$0xff]
        %v1436 = vld [vmem:[%s3 + $0x38] sm:$0xff]
        %v1437 = vld [vmem:[%s3 + $0x40] sm:$0xff]
        %v1438 = vld [vmem:[%s3 + $0x48] sm:$0xff]
        %v1439 = vld [vmem:[%s3 + $0x50] sm:$0xff]
        %v1440 = vld [vmem:[%s3 + $0x58] sm:$0xff]
        %v1441 = vld [vmem:[%s3 + $0x60] sm:$0xff]
        %v1442 = vld [vmem:[%s3 + $0x68] sm:$0xff]
        %v1443 = vld [vmem:[%s3 + $0x70] sm:$0xff]
        %v1444 = vld [vmem:[%s3 + $0x78] sm:$0xff]
        %v1445 = vld [vmem:[%s3 + $0x80] sm:$0xff]
        %v1446 = vld [vmem:[%s3 + $0x88] sm:$0xff]
        %v1447 = vld [vmem:[%s3 + $0x90] sm:$0xff]
        %v1448 = vld [vmem:[%s3 + $0x98] sm:$0xff]
        %v1449 = vld [vmem:[%s3 + $0xa0] sm:$0xff]
        %v1450 = vld [vmem:[%s3 + $0xa8] sm:$0xff]
        %v1451 = vld [vmem:[%s3 + $0xb0] sm:$0xff]
        %v1452 = vld [vmem:[%s3 + $0xb8] sm:$0xff]
        %v1453 = vld [vmem:[%s3 + $0xc0] sm:$0xff]
        %v1454 = vld [vmem:[%s3 + $0xc8] sm:$0xff]
        %v1455 = vld [vmem:[%s3 + $0xd0] sm:$0xff]
        %v1456 = vld [vmem:[%s3 + $0xd8] sm:$0xff]
        %v1457 = vld [vmem:[%s3 + $0xe0] sm:$0xff]
        %v1458 = vld [vmem:[%s3 + $0xe8] sm:$0xff]
        %v1459 = vld [vmem:[%s3 + $0xf0] sm:$0xff]
        %v1460 = vld [vmem:[%s3 + $0xf8] sm:$0xff]
        %v1461 = vld [vmem:[%s3 + $0x100] sm:$0xff]
        %v1462 = vld [vmem:[%s3 + $0x108] sm:$0xff]
        %v1463 = vld [vmem:[%s3 + $0x110] sm:$0xff]
        %v1464 = vld [vmem:[%s3 + $0x118] sm:$0xff]
        %v1465 = vld [vmem:[%s3 + $0x120] sm:$0xff]
        %v1466 = vld [vmem:[%s3 + $0x128] sm:$0xff]
        %v1467 = vld [vmem:[%s3 + $0x130] sm:$0xff]
        %v1468 = vld [vmem:[%s3 + $0x138] sm:$0xff]
        %v1469 = vld [vmem:[%s3 + $0x140] sm:$0xff]
        %v1470 = vld [vmem:[%s3 + $0x148] sm:$0xff]
        %v1471 = vld [vmem:[%s3 + $0x150] sm:$0xff]
        %v1472 = vld [vmem:[%s3 + $0x158] sm:$0xff]
        %v1473 = vld [vmem:[%s3 + $0x160] sm:$0xff]
        %v1474 = vld [vmem:[%s3 + $0x168] sm:$0xff]
        %v1475 = vld [vmem:[%s3 + $0x170] sm:$0xff]
        %v1476 = vld [vmem:[%s3 + $0x178] sm:$0xff]
        %v1477 = vld [vmem:[%s3 + $0x180] sm:$0xff]
        %v1478 = vld [vmem:[%s3 + $0x188] sm:$0xff]
        %v1479 = vld [vmem:[%s3 + $0x190] sm:$0xff]
        %v1480 = vld [vmem:[%s3 + $0x198] sm:$0xff]
        %v1481 = vld [vmem:[%s3 + $0x1a0] sm:$0xff]
        %v1482 = vld [vmem:[%s3 + $0x1a8] sm:$0xff]
        %v1483 = vld [vmem:[%s3 + $0x1b0] sm:$0xff]
        %v1484 = vld [vmem:[%s3 + $0x1b8] sm:$0xff]
        %v1485 = vld [vmem:[%s3 + $0x1c0] sm:$0xff]
        %v1486 = vld [vmem:[%s3 + $0x1c8] sm:$0xff]
        %v1487 = vld [vmem:[%s3 + $0x1d0] sm:$0xff]
        %v1488 = vld [vmem:[%s3 + $0x1d8] sm:$0xff]
        %v1489 = vld [vmem:[%s3 + $0x1e0] sm:$0xff]
        %v1490 = vld [vmem:[%s3 + $0x1e8] sm:$0xff]
        %v1491 = vld [vmem:[%s3 + $0x1f0] sm:$0xff]
        %v1492 = vld [vmem:[%s3 + $0x1f8] sm:$0xff]
        %v1493 = vld [vmem:[%s3 + $0x200] sm:$0xff]
        %v1494 = vld [vmem:[%s3 + $0x208] sm:$0xff]
        %v1495 = vld [vmem:[%s3 + $0x210] sm:$0xff]
        %v1496 = vld [vmem:[%s3 + $0x218] sm:$0xff]
        %v1497 = vld [vmem:[%s3 + $0x220] sm:$0xff]
        %v1498 = vld [vmem:[%s3 + $0x228] sm:$0xff]
        %v1499 = vld [vmem:[%s3 + $0x230] sm:$0xff]
        %v1500 = vld [vmem:[%s3 + $0x238] sm:$0xff]
        %v1501 = vld [vmem:[%s3 + $0x240] sm:$0xff]
        %v1502 = vld [vmem:[%s3 + $0x248] sm:$0xff]
        %v1503 = vld [vmem:[%s3 + $0x250] sm:$0xff]
        %v1504 = vld [vmem:[%s3 + $0x258] sm:$0xff]
        %v1505 = vld [vmem:[%s3 + $0x260] sm:$0xff]
        %v1506 = vld [vmem:[%s3 + $0x268] sm:$0xff]
        %v1507 = vld [vmem:[%s3 + $0x270] sm:$0xff]
        %v1508 = vld [vmem:[%s3 + $0x278] sm:$0xff]
        %v1509 = vld [vmem:[%s3 + $0x280] sm:$0xff]
        %v1510 = vld [vmem:[%s3 + $0x288] sm:$0xff]
        %v1511 = vld [vmem:[%s3 + $0x290] sm:$0xff]
        %v1512 = vld [vmem:[%s3 + $0x298] sm:$0xff]
        %v1513 = vld [vmem:[%s3 + $0x2a0] sm:$0xff]
        %v1514 = vld [vmem:[%s3 + $0x2a8] sm:$0xff]
        %v1515 = vld [vmem:[%s3 + $0x2b0] sm:$0xff]
        %v1516 = vld [vmem:[%s3 + $0x2b8] sm:$0xff]
        %v1517 = vld [vmem:[%s3 + $0x2c0] sm:$0xff]
        %v1518 = vld [vmem:[%s3 + $0x2c8] sm:$0xff]
        %v1519 = vld [vmem:[%s3 + $0x2d0] sm:$0xff]
        %v1520 = vld [vmem:[%s3 + $0x2d8] sm:$0xff]
        %v1521 = vld [vmem:[%s3 + $0x2e0] sm:$0xff]
        %v1522 = vld [vmem:[%s3 + $0x2e8] sm:$0xff]
        %v1523 = vld [vmem:[%s3 + $0x2f0] sm:$0xff]
        %v1524 = vld [vmem:[%s3 + $0x2f8] sm:$0xff]
        %v1525 = vld [vmem:[%s3 + $0x300] sm:$0xff]
        %v1526 = vld [vmem:[%s3 + $0x308] sm:$0xff]
        %v1527 = vld [vmem:[%s3 + $0x310] sm:$0xff]
        %v1528 = vld [vmem:[%s3 + $0x318] sm:$0xff]
        %v1529 = vld [vmem:[%s3 + $0x320] sm:$0xff]
        %v1530 = vld [vmem:[%s3 + $0x328] sm:$0xff]
        %v1531 = vld [vmem:[%s3 + $0x330] sm:$0xff]
        %v1532 = vld [vmem:[%s3 + $0x338] sm:$0xff]
        %v1533 = vld [vmem:[%s3 + $0x340] sm:$0xff]
        %v1534 = vld [vmem:[%s3 + $0x348] sm:$0xff]
        %v1535 = vld [vmem:[%s3 + $0x350] sm:$0xff]
        %v1536 = vld [vmem:[%s3 + $0x358] sm:$0xff]
        %v1537 = vld [vmem:[%s3 + $0x360] sm:$0xff]
        %v1538 = vld [vmem:[%s3 + $0x368] sm:$0xff]
        %v1539 = vld [vmem:[%s3 + $0x370] sm:$0xff]
        %v1540 = vld [vmem:[%s3 + $0x378] sm:$0xff]
        %v1541 = vld [vmem:[%s3 + $0x380] sm:$0xff]
        %v1542 = vld [vmem:[%s3 + $0x388] sm:$0xff]
        %v1543 = vld [vmem:[%s3 + $0x390] sm:$0xff]
        %v1544 = vld [vmem:[%s3 + $0x398] sm:$0xff]
        %v1545 = vld [vmem:[%s3 + $0x3a0] sm:$0xff]
        %v1546 = vld [vmem:[%s3 + $0x3a8] sm:$0xff]
        %v1547 = vld [vmem:[%s3 + $0x3b0] sm:$0xff]
        %v1548 = vld [vmem:[%s3 + $0x3b8] sm:$0xff]
        %v1549 = vld [vmem:[%s3 + $0x3c0] sm:$0xff]
        %v1550 = vld [vmem:[%s3 + $0x3c8] sm:$0xff]
        %v1551 = vld [vmem:[%s3 + $0x3d0] sm:$0xff]
        %v1552 = vld [vmem:[%s3 + $0x3d8] sm:$0xff]
        %v1553 = vld [vmem:[%s3 + $0x3e0] sm:$0xff]
        %v1554 = vld [vmem:[%s3 + $0x3e8] sm:$0xff]
        %v1555 = vld [vmem:[%s3 + $0x3f0] sm:$0xff]
        %v1556 = vld [vmem:[%s3 + $0x3f8] sm:$0xff]
        %v1557 = vld [vmem:[%s3 + $0x400] sm:$0xff]
        %v1558 = vld [vmem:[%s3 + $0x408] sm:$0xff]
        %v1559 = vld [vmem:[%s3 + $0x410] sm:$0xff]
        %v1560 = vld [vmem:[%s3 + $0x418] sm:$0xff]
        %v1561 = vld [vmem:[%s3 + $0x420] sm:$0xff]
        %v1562 = vld [vmem:[%s3 + $0x428] sm:$0xff]
        %v1563 = vld [vmem:[%s3 + $0x430] sm:$0xff]
        %v1564 = vld [vmem:[%s3 + $0x438] sm:$0xff]
        %v1565 = vld [vmem:[%s3 + $0x440] sm:$0xff]
        %v1566 = vld [vmem:[%s3 + $0x448] sm:$0xff]
        %v1567 = vld [vmem:[%s3 + $0x450] sm:$0xff]
        %v1568 = vld [vmem:[%s3 + $0x458] sm:$0xff]
        %v1569 = vld [vmem:[%s3 + $0x460] sm:$0xff]
        %v1570 = vld [vmem:[%s3 + $0x468] sm:$0xff]
        %v1571 = vld [vmem:[%s3 + $0x470] sm:$0xff]
        %v1572 = vld [vmem:[%s3 + $0x478] sm:$0xff]
        %v1573 = vld [vmem:[%s3 + $0x480] sm:$0xff]
        %v1574 = vld [vmem:[%s3 + $0x488] sm:$0xff]
        %v1575 = vld [vmem:[%s3 + $0x490] sm:$0xff]
        %v1576 = vld [vmem:[%s3 + $0x498] sm:$0xff]
        %v1577 = vld [vmem:[%s3 + $0x4a0] sm:$0xff]
        %v1578 = vld [vmem:[%s3 + $0x4a8] sm:$0xff]
        %v1579 = vld [vmem:[%s3 + $0x4b0] sm:$0xff]
        %v1580 = vld [vmem:[%s3 + $0x4b8] sm:$0xff]
        %v1581 = vld [vmem:[%s3 + $0x4c0] sm:$0xff]
        %v1582 = vld [vmem:[%s3 + $0x4c8] sm:$0xff]
        %v1583 = vld [vmem:[%s3 + $0x4d0] sm:$0xff]
        %v1584 = vld [vmem:[%s3 + $0x4d8] sm:$0xff]
        %v1585 = vld [vmem:[%s3 + $0x4e0] sm:$0xff]
        %v1586 = vld [vmem:[%s3 + $0x4e8] sm:$0xff]
        %v1587 = vld [vmem:[%s3 + $0x4f0] sm:$0xff]
        %v1588 = vld [vmem:[%s3 + $0x4f8] sm:$0xff]
        %v1589 = vld [vmem:[%s3 + $0x500] sm:$0xff]
        %v1590 = vld [vmem:[%s3 + $0x508] sm:$0xff]
        %v1591 = vld [vmem:[%s3 + $0x510] sm:$0xff]
        %v1592 = vld [vmem:[%s3 + $0x518] sm:$0xff]
        %v1593 = vld [vmem:[%s3 + $0x520] sm:$0xff]
        %v1594 = vld [vmem:[%s3 + $0x528] sm:$0xff]
        %v1595 = vld [vmem:[%s3 + $0x530] sm:$0xff]
        %v1596 = vld [vmem:[%s3 + $0x538] sm:$0xff]
        %v1597 = vld [vmem:[%s3 + $0x540] sm:$0xff]
        %v1598 = vld [vmem:[%s3 + $0x548] sm:$0xff]
        %v1599 = vld [vmem:[%s3 + $0x550] sm:$0xff]
        %v1600 = vld [vmem:[%s3 + $0x558] sm:$0xff]
        %v1601 = vld [vmem:[%s3 + $0x560] sm:$0xff]
        %v1602 = vld [vmem:[%s3 + $0x568] sm:$0xff]
        %v1603 = vld [vmem:[%s3 + $0x570] sm:$0xff]
        %v1604 = vld [vmem:[%s3 + $0x578] sm:$0xff]
        %v1605 = vld [vmem:[%s3 + $0x580] sm:$0xff]
        %v1606 = vld [vmem:[%s3 + $0x588] sm:$0xff]
        %v1607 = vld [vmem:[%s3 + $0x590] sm:$0xff]
        %v1608 = vld [vmem:[%s3 + $0x598] sm:$0xff]
        %v1609 = vld [vmem:[%s3 + $0x5a0] sm:$0xff]
        %v1610 = vld [vmem:[%s3 + $0x5a8] sm:$0xff]
        %v1611 = vld [vmem:[%s3 + $0x5b0] sm:$0xff]
        %v1612 = vld [vmem:[%s3 + $0x5b8] sm:$0xff]
        %v1613 = vld [vmem:[%s3 + $0x5c0] sm:$0xff]
        %v1614 = vld [vmem:[%s3 + $0x5c8] sm:$0xff]
        %v1615 = vld [vmem:[%s3 + $0x5d0] sm:$0xff]
        %v1616 = vld [vmem:[%s3 + $0x5d8] sm:$0xff]
        %v1617 = vld [vmem:[%s3 + $0x5e0] sm:$0xff]
        %v1618 = vld [vmem:[%s3 + $0x5e8] sm:$0xff]
        %v1619 = vld [vmem:[%s3 + $0x5f0] sm:$0xff]
        %v1620 = vld [vmem:[%s3 + $0x5f8] sm:$0xff]
        %v1621 = vld [vmem:[%s3 + $0x600] sm:$0xff]
        %v1622 = vld [vmem:[%s3 + $0x608] sm:$0xff]
        %v1623 = vld [vmem:[%s3 + $0x610] sm:$0xff]
        %v1624 = vld [vmem:[%s3 + $0x618] sm:$0xff]
        %v1625 = vld [vmem:[%s3 + $0x620] sm:$0xff]
        %v1626 = vld [vmem:[%s3 + $0x628] sm:$0xff]
        %v1627 = vld [vmem:[%s3 + $0x630] sm:$0xff]
        %v1628 = vld [vmem:[%s3 + $0x638] sm:$0xff]
        %v1629 = vld [vmem:[%s3 + $0x640] sm:$0xff]
        %v1630 = vld [vmem:[%s3 + $0x648] sm:$0xff]
        %v1631 = vld [vmem:[%s3 + $0x650] sm:$0xff]
        %v1632 = vld [vmem:[%s3 + $0x658] sm:$0xff]
        %v1633 = vld [vmem:[%s3 + $0x660] sm:$0xff]
        %v1634 = vld [vmem:[%s3 + $0x668] sm:$0xff]
        %v1635 = vld [vmem:[%s3 + $0x670] sm:$0xff]
        %v1636 = vld [vmem:[%s3 + $0x678] sm:$0xff]
        %v1637 = vld [vmem:[%s3 + $0x680] sm:$0xff]
        %v1638 = vld [vmem:[%s3 + $0x688] sm:$0xff]
        %v1639 = vld [vmem:[%s3 + $0x690] sm:$0xff]
        %v1640 = vld [vmem:[%s3 + $0x698] sm:$0xff]
        %v1641 = vld [vmem:[%s3 + $0x6a0] sm:$0xff]
        %v1642 = vld [vmem:[%s3 + $0x6a8] sm:$0xff]
        %v1643 = vld [vmem:[%s3 + $0x6b0] sm:$0xff]
        %v1644 = vld [vmem:[%s3 + $0x6b8] sm:$0xff]
        %v1645 = vld [vmem:[%s3 + $0x6c0] sm:$0xff]
        %v1646 = vld [vmem:[%s3 + $0x6c8] sm:$0xff]
        %v1647 = vld [vmem:[%s3 + $0x6d0] sm:$0xff]
        %v1648 = vld [vmem:[%s3 + $0x6d8] sm:$0xff]
        %v1649 = vld [vmem:[%s3 + $0x6e0] sm:$0xff]
        %v1650 = vld [vmem:[%s3 + $0x6e8] sm:$0xff]
        %v1651 = vld [vmem:[%s3 + $0x6f0] sm:$0xff]
        %v1652 = vld [vmem:[%s3 + $0x6f8] sm:$0xff]
        %v1653 = vld [vmem:[%s3 + $0x700] sm:$0xff]
        %v1654 = vld [vmem:[%s3 + $0x708] sm:$0xff]
        %v1655 = vld [vmem:[%s3 + $0x710] sm:$0xff]
        %v1656 = vld [vmem:[%s3 + $0x718] sm:$0xff]
        %v1657 = vld [vmem:[%s3 + $0x720] sm:$0xff]
        %v1658 = vld [vmem:[%s3 + $0x728] sm:$0xff]
        %v1659 = vld [vmem:[%s3 + $0x730] sm:$0xff]
        %v1660 = vld [vmem:[%s3 + $0x738] sm:$0xff]
        %v1661 = vld [vmem:[%s3 + $0x740] sm:$0xff]
        %v1662 = vld [vmem:[%s3 + $0x748] sm:$0xff]
        %v1663 = vld [vmem:[%s3 + $0x750] sm:$0xff]
        %v1664 = vld [vmem:[%s3 + $0x758] sm:$0xff]
        %v1665 = vld [vmem:[%s3 + $0x760] sm:$0xff]
        %v1666 = vld [vmem:[%s3 + $0x768] sm:$0xff]
        %v1667 = vld [vmem:[%s3 + $0x770] sm:$0xff]
        %v1668 = vld [vmem:[%s3 + $0x778] sm:$0xff]
        %v1669 = vld [vmem:[%s3 + $0x780] sm:$0xff]
        %v1670 = vld [vmem:[%s3 + $0x788] sm:$0xff]
        %v1671 = vld [vmem:[%s3 + $0x790] sm:$0xff]
        %v1672 = vld [vmem:[%s3 + $0x798] sm:$0xff]
        %v1673 = vld [vmem:[%s3 + $0x7a0] sm:$0xff]
        %v1674 = vld [vmem:[%s3 + $0x7a8] sm:$0xff]
        %v1675 = vld [vmem:[%s3 + $0x7b0] sm:$0xff]
        %v1676 = vld [vmem:[%s3 + $0x7b8] sm:$0xff]
        %v1677 = vld [vmem:[%s3 + $0x7c0] sm:$0xff]
        %v1678 = vld [vmem:[%s3 + $0x7c8] sm:$0xff]
        %v1679 = vld [vmem:[%s3 + $0x7d0] sm:$0xff]
        %v1680 = vld [vmem:[%s3 + $0x7d8] sm:$0xff]
        %v1681 = vld [vmem:[%s3 + $0x7e0] sm:$0xff]
        %v1682 = vld [vmem:[%s3 + $0x7e8] sm:$0xff]
        %v1683 = vld [vmem:[%s3 + $0x7f0] sm:$0xff]
        %v1684 = vld [vmem:[%s3 + $0x7f8] sm:$0xff]
        %v1685 = vld [vmem:[%s3 + $0x800] sm:$0xff]
        %v1686 = vld [vmem:[%s3 + $0x808] sm:$0xff]
        %v1687 = vld [vmem:[%s3 + $0x810] sm:$0xff]
        %v1688 = vld [vmem:[%s3 + $0x818] sm:$0xff]
        %v1689 = vld [vmem:[%s3 + $0x820] sm:$0xff]
        %v1690 = vld [vmem:[%s3 + $0x828] sm:$0xff]
        %v1691 = vld [vmem:[%s3 + $0x830] sm:$0xff]
        %v1692 = vld [vmem:[%s3 + $0x838] sm:$0xff]
        %v1693 = vld [vmem:[%s3 + $0x840] sm:$0xff]
        %v1694 = vld [vmem:[%s3 + $0x848] sm:$0xff]
        %v1695 = vld [vmem:[%s3 + $0x850] sm:$0xff]
        %v1696 = vld [vmem:[%s3 + $0x858] sm:$0xff]
        %v1697 = vld [vmem:[%s3 + $0x860] sm:$0xff]
        %v1698 = vld [vmem:[%s3 + $0x868] sm:$0xff]
        %v1699 = vld [vmem:[%s3 + $0x870] sm:$0xff]
        %v1700 = vld [vmem:[%s3 + $0x878] sm:$0xff]
        %v1701 = vld [vmem:[%s3 + $0x880] sm:$0xff]
        %v1702 = vld [vmem:[%s3 + $0x888] sm:$0xff]
        %v1703 = vld [vmem:[%s3 + $0x890] sm:$0xff]
        %v1704 = vld [vmem:[%s3 + $0x898] sm:$0xff]
        %v1705 = vld [vmem:[%s3 + $0x8a0] sm:$0xff]
        %v1706 = vld [vmem:[%s3 + $0x8a8] sm:$0xff]
        %v1707 = vld [vmem:[%s3 + $0x8b0] sm:$0xff]
        %v1708 = vld [vmem:[%s3 + $0x8b8] sm:$0xff]
        %v1709 = vld [vmem:[%s3 + $0x8c0] sm:$0xff]
        %v1710 = vld [vmem:[%s3 + $0x8c8] sm:$0xff]
        %v1711 = vld [vmem:[%s3 + $0x8d0] sm:$0xff]
        %v1712 = vld [vmem:[%s3 + $0x8d8] sm:$0xff]
        %v1713 = vld [vmem:[%s3 + $0x8e0] sm:$0xff]
        %v1714 = vld [vmem:[%s3 + $0x8e8] sm:$0xff]
        %v1715 = vld [vmem:[%s3 + $0x8f0] sm:$0xff]
        %v1716 = vld [vmem:[%s3 + $0x8f8] sm:$0xff]
        %v1717 = vld [vmem:[%s3 + $0x900] sm:$0xff]
        %v1718 = vld [vmem:[%s3 + $0x908] sm:$0xff]
        %v1719 = vld [vmem:[%s3 + $0x910] sm:$0xff]
        %v1720 = vld [vmem:[%s3 + $0x918] sm:$0xff]
        %v1721 = vld [vmem:[%s3 + $0x920] sm:$0xff]
        %v1722 = vld [vmem:[%s3 + $0x928] sm:$0xff]
        %v1723 = vld [vmem:[%s3 + $0x930] sm:$0xff]
        %v1724 = vld [vmem:[%s3 + $0x938] sm:$0xff]
        %v1725 = vld [vmem:[%s3 + $0x940] sm:$0xff]
        %v1726 = vld [vmem:[%s3 + $0x948] sm:$0xff]
        %v1727 = vld [vmem:[%s3 + $0x950] sm:$0xff]
        %v1728 = vld [vmem:[%s3 + $0x958] sm:$0xff]
        %v1729 = vld [vmem:[%s3 + $0x960] sm:$0xff]
        %v1730 = vld [vmem:[%s3 + $0x968] sm:$0xff]
        %v1731 = vld [vmem:[%s3 + $0x970] sm:$0xff]
        %v1732 = vld [vmem:[%s3 + $0x978] sm:$0xff]
        %v1733 = vld [vmem:[%s3 + $0x980] sm:$0xff]
        %v1734 = vld [vmem:[%s3 + $0x988] sm:$0xff]
        %v1735 = vld [vmem:[%s3 + $0x990] sm:$0xff]
        %v1736 = vld [vmem:[%s3 + $0x998] sm:$0xff]
        %v1737 = vld [vmem:[%s3 + $0x9a0] sm:$0xff]
        %v1738 = vld [vmem:[%s3 + $0x9a8] sm:$0xff]
        %v1739 = vld [vmem:[%s3 + $0x9b0] sm:$0xff]
        %v1740 = vld [vmem:[%s3 + $0x9b8] sm:$0xff]
        %v1741 = vld [vmem:[%s3 + $0x9c0] sm:$0xff]
        %v1742 = vld [vmem:[%s3 + $0x9c8] sm:$0xff]
        %v1743 = vld [vmem:[%s3 + $0x9d0] sm:$0xff]
        %v1744 = vld [vmem:[%s3 + $0x9d8] sm:$0xff]
        %v1745 = vld [vmem:[%s3 + $0x9e0] sm:$0xff]
        %v1746 = vld [vmem:[%s3 + $0x9e8] sm:$0xff]
        %v1747 = vld [vmem:[%s3 + $0x9f0] sm:$0xff]
        %v1748 = vld [vmem:[%s3 + $0x9f8] sm:$0xff]
        %v1749 = vld [vmem:[%s3 + $0xa00] sm:$0xff]
        %v1750 = vld [vmem:[%s3 + $0xa08] sm:$0xff]
        %v1751 = vld [vmem:[%s3 + $0xa10] sm:$0xff]
        %v1752 = vld [vmem:[%s3 + $0xa18] sm:$0xff]
        %v1753 = vld [vmem:[%s3 + $0xa20] sm:$0xff]
        %v1754 = vld [vmem:[%s3 + $0xa28] sm:$0xff]
        %v1755 = vld [vmem:[%s3 + $0xa30] sm:$0xff]
        %v1756 = vld [vmem:[%s3 + $0xa38] sm:$0xff]
        %v1757 = vld [vmem:[%s3 + $0xa40] sm:$0xff]
        %v1758 = vld [vmem:[%s3 + $0xa48] sm:$0xff]
        %v1759 = vld [vmem:[%s3 + $0xa50] sm:$0xff]
        %v1760 = vld [vmem:[%s3 + $0xa58] sm:$0xff]
        %v1761 = vld [vmem:[%s3 + $0xa60] sm:$0xff]
        %v1762 = vld [vmem:[%s3 + $0xa68] sm:$0xff]
        %v1763 = vld [vmem:[%s3 + $0xa70] sm:$0xff]
        %v1764 = vld [vmem:[%s3 + $0xa78] sm:$0xff]
        %v1765 = vld [vmem:[%s3 + $0xa80] sm:$0xff]
        %v1766 = vld [vmem:[%s3 + $0xa88] sm:$0xff]
        %v1767 = vld [vmem:[%s3 + $0xa90] sm:$0xff]
        %v1768 = vld [vmem:[%s3 + $0xa98] sm:$0xff]
        %v1769 = vld [vmem:[%s3 + $0xaa0] sm:$0xff]
        %v1770 = vld [vmem:[%s3 + $0xaa8] sm:$0xff]
        %v1771 = vld [vmem:[%s3 + $0xab0] sm:$0xff]
        %v1772 = vld [vmem:[%s3 + $0xab8] sm:$0xff]
        %v1773 = vld [vmem:[%s3 + $0xac0] sm:$0xff]
        %v1774 = vld [vmem:[%s3 + $0xac8] sm:$0xff]
        %v1775 = vld [vmem:[%s3 + $0xad0] sm:$0xff]
        %v1776 = vld [vmem:[%s3 + $0xad8] sm:$0xff]
        %v1777 = vld [vmem:[%s3 + $0xae0] sm:$0xff]
        %v1778 = vld [vmem:[%s3 + $0xae8] sm:$0xff]
        %v1779 = vld [vmem:[%s3 + $0xaf0] sm:$0xff]
        %v1780 = vld [vmem:[%s3 + $0xaf8] sm:$0xff]
        %v1781 = vld [vmem:[%s3 + $0xb00] sm:$0xff]
        %v1782 = vld [vmem:[%s3 + $0xb08] sm:$0xff]
        %v1783 = vld [vmem:[%s3 + $0xb10] sm:$0xff]
        %v1784 = vld [vmem:[%s3 + $0xb18] sm:$0xff]
        %v1785 = vld [vmem:[%s3 + $0xb20] sm:$0xff]
        %v1786 = vld [vmem:[%s3 + $0xb28] sm:$0xff]
        %v1787 = vld [vmem:[%s3 + $0xb30] sm:$0xff]
        %v1788 = vld [vmem:[%s3 + $0xb38] sm:$0xff]
        %v1789 = vld [vmem:[%s3 + $0xb40] sm:$0xff]
        %v1790 = vld [vmem:[%s3 + $0xb48] sm:$0xff]
        %v1791 = vld [vmem:[%s3 + $0xb50] sm:$0xff]
        %v1792 = vld [vmem:[%s3 + $0xb58] sm:$0xff]
        %v1793 = vld [vmem:[%s3 + $0xb60] sm:$0xff]
        %v1794 = vld [vmem:[%s3 + $0xb68] sm:$0xff]
        %v1795 = vld [vmem:[%s3 + $0xb70] sm:$0xff]
        %v1796 = vld [vmem:[%s3 + $0xb78] sm:$0xff]
        %v1797 = vld [vmem:[%s3 + $0xb80] sm:$0xff]
        %v1798 = vld [vmem:[%s3 + $0xb88] sm:$0xff]
        %v1799 = vld [vmem:[%s3 + $0xb90] sm:$0xff]
        %v1800 = vld [vmem:[%s3 + $0xb98] sm:$0xff]
        %v1801 = vld [vmem:[%s3 + $0xba0] sm:$0xff]
        %v1802 = vld [vmem:[%s3 + $0xba8] sm:$0xff]
        %v1803 = vld [vmem:[%s3 + $0xbb0] sm:$0xff]
        %v1804 = vld [vmem:[%s3 + $0xbb8] sm:$0xff]
        %v1805 = vld [vmem:[%s3 + $0xbc0] sm:$0xff]
        %v1806 = vld [vmem:[%s3 + $0xbc8] sm:$0xff]
        %v1807 = vld [vmem:[%s3 + $0xbd0] sm:$0xff]
        %v1808 = vld [vmem:[%s3 + $0xbd8] sm:$0xff]
        %v1809 = vld [vmem:[%s3 + $0xbe0] sm:$0xff]
        %v1810 = vld [vmem:[%s3 + $0xbe8] sm:$0xff]
        %v1811 = vld [vmem:[%s3 + $0xbf0] sm:$0xff]
        %v1812 = vld [vmem:[%s3 + $0xbf8] sm:$0xff]
        %v1813 = vld [vmem:[%s3 + $0xc00] sm:$0xff]
        %v1814 = vld [vmem:[%s3 + $0xc08] sm:$0xff]
        %v1815 = vld [vmem:[%s3 + $0xc10] sm:$0xff]
        %v1816 = vld [vmem:[%s3 + $0xc18] sm:$0xff]
        %v1817 = vld [vmem:[%s3 + $0xc20] sm:$0xff]
        %v1818 = vld [vmem:[%s3 + $0xc28] sm:$0xff]
        %v1819 = vld [vmem:[%s3 + $0xc30] sm:$0xff]
        %v1820 = vld [vmem:[%s3 + $0xc38] sm:$0xff]
        %v1821 = vld [vmem:[%s3 + $0xc40] sm:$0xff]
        %v1822 = vld [vmem:[%s3 + $0xc48] sm:$0xff]
        %v1823 = vld [vmem:[%s3 + $0xc50] sm:$0xff]
        %v1824 = vld [vmem:[%s3 + $0xc58] sm:$0xff]
        %v1825 = vld [vmem:[%s3 + $0xc60] sm:$0xff]
        %v1826 = vld [vmem:[%s3 + $0xc68] sm:$0xff]
        %v1827 = vld [vmem:[%s3 + $0xc70] sm:$0xff]
        %v1828 = vld [vmem:[%s3 + $0xc78] sm:$0xff]
        %v1829 = vld [vmem:[%s3 + $0xc80] sm:$0xff]
        %v1830 = vld [vmem:[%s3 + $0xc88] sm:$0xff]
        %v1831 = vld [vmem:[%s3 + $0xc90] sm:$0xff]
        %v1832 = vld [vmem:[%s3 + $0xc98] sm:$0xff]
        %v1833 = vld [vmem:[%s3 + $0xca0] sm:$0xff]
        %v1834 = vld [vmem:[%s3 + $0xca8] sm:$0xff]
        %v1835 = vld [vmem:[%s3 + $0xcb0] sm:$0xff]
        %v1836 = vld [vmem:[%s3 + $0xcb8] sm:$0xff]
        %v1837 = vld [vmem:[%s3 + $0xcc0] sm:$0xff]
        %v1838 = vld [vmem:[%s3 + $0xcc8] sm:$0xff]
        %v1839 = vld [vmem:[%s3 + $0xcd0] sm:$0xff]
        %v1840 = vld [vmem:[%s3 + $0xcd8] sm:$0xff]
        %v1841 = vld [vmem:[%s3 + $0xce0] sm:$0xff]
        %v1842 = vld [vmem:[%s3 + $0xce8] sm:$0xff]
        %v1843 = vld [vmem:[%s3 + $0xcf0] sm:$0xff]
        %v1844 = vld [vmem:[%s3 + $0xcf8] sm:$0xff]
        %v1845 = vld [vmem:[%s3 + $0xd00] sm:$0xff]
        %v1846 = vld [vmem:[%s3 + $0xd08] sm:$0xff]
        %v1847 = vld [vmem:[%s3 + $0xd10] sm:$0xff]
        %v1848 = vld [vmem:[%s3 + $0xd18] sm:$0xff]
        %v1849 = vld [vmem:[%s3 + $0xd20] sm:$0xff]
        %v1850 = vld [vmem:[%s3 + $0xd28] sm:$0xff]
        %v1851 = vld [vmem:[%s3 + $0xd30] sm:$0xff]
        %v1852 = vld [vmem:[%s3 + $0xd38] sm:$0xff]
        %v1853 = vld [vmem:[%s3 + $0xd40] sm:$0xff]
        %v1854 = vld [vmem:[%s3 + $0xd48] sm:$0xff]
        %v1855 = vld [vmem:[%s3 + $0xd50] sm:$0xff]
        %v1856 = vld [vmem:[%s3 + $0xd58] sm:$0xff]
        %v1857 = vld [vmem:[%s3 + $0xd60] sm:$0xff]
        %v1858 = vld [vmem:[%s3 + $0xd68] sm:$0xff]
        %v1859 = vld [vmem:[%s3 + $0xd70] sm:$0xff]
        %v1860 = vld [vmem:[%s3 + $0xd78] sm:$0xff]
        %v1861 = vld [vmem:[%s3 + $0xd80] sm:$0xff]
        %v1862 = vld [vmem:[%s3 + $0xd88] sm:$0xff]
        %v1863 = vld [vmem:[%s3 + $0xd90] sm:$0xff]
        %v1864 = vld [vmem:[%s3 + $0xd98] sm:$0xff]
        %v1865 = vld [vmem:[%s3 + $0xda0] sm:$0xff]
        %v1866 = vld [vmem:[%s3 + $0xda8] sm:$0xff]
        %v1867 = vld [vmem:[%s3 + $0xdb0] sm:$0xff]
        %v1868 = vld [vmem:[%s3 + $0xdb8] sm:$0xff]
        %v1869 = vld [vmem:[%s3 + $0xdc0] sm:$0xff]
        %v1870 = vld [vmem:[%s3 + $0xdc8] sm:$0xff]
        %v1871 = vld [vmem:[%s3 + $0xdd0] sm:$0xff]
        %v1872 = vld [vmem:[%s3 + $0xdd8] sm:$0xff]
        %v1873 = vld [vmem:[%s3 + $0xde0] sm:$0xff]
        %v1874 = vld [vmem:[%s3 + $0xde8] sm:$0xff]
        %v1875 = vld [vmem:[%s3 + $0xdf0] sm:$0xff]
        %v1876 = vld [vmem:[%s3 + $0xdf8] sm:$0xff]
        %v1877 = vld [vmem:[%s4] sm:$0x1]
        %v1879 = vlaneseq
        %v1880 = vshrl.u32 %v1879, 7
        %v1881 = vsub.s32 0, %v1880
        %v1882 = vrot.slane %v1877, %v1881
        %1884 = vmatprep.subr.mxu0 0.0
        %1885 = vmatpush1.msra.mxu0 %v1444
        %1886 = vmatprep.subr.mxu0 0.0
        %1887 = vmatpush1.msra.mxu0 %v1443
        %1888 = vmatprep.subr.mxu0 0.0
        %1889 = vmatpush1.msra.mxu0 %v1442
        %1890 = vmatprep.subr.mxu0 0.0
        %1891 = vmatpush1.msra.mxu0 %v1441
        %1892 = vmatprep.subr.mxu0 0.0
        %1893 = vmatpush1.msra.mxu0 %v1440
        %1894 = vmatprep.subr.mxu0 0.0
        %1895 = vmatpush1.msra.mxu0 %v1439
        %1896 = vmatprep.subr.mxu0 0.0
        %1897 = vmatpush1.msra.mxu0 %v1438
        %1898 = vmatprep.subr.mxu0 0.0
        %1899 = vmatpush1.msra.mxu0 %v1437
        %1900 = vmatprep.subr.mxu0 0.0
        %1901 = vmatpush1.msra.mxu0 %v1436
        %1902 = vmatprep.subr.mxu0 0.0
        %1903 = vmatpush1.msra.mxu0 %v1435
        %1904 = vmatprep.subr.mxu0 0.0
        %1905 = vmatpush1.msra.mxu0 %v1434
        %1906 = vmatprep.subr.mxu0 0.0
        %1907 = vmatpush1.msra.mxu0 %v1433
        %1908 = vmatprep.subr.mxu0 0.0
        %1909 = vmatpush1.msra.mxu0 %v1432
        %1910 = vmatprep.subr.mxu0 0.0
        %1911 = vmatpush1.msra.mxu0 %v1431
        %1912 = vmatprep.subr.mxu0 0.0
        %1913 = vmatpush1.msra.mxu0 %v1430
        %1914 = vmatprep.subr.mxu0 0.0
        %1915 = vmatpush1.msra.mxu0 %v1429
        %1916 = vmatprep.subr.mxu0 0.0
        %1917 = vmatpush2.msra.mxu0 %v1460
        %1918 = vmatprep.subr.mxu0 0.0
        %1919 = vmatpush2.msra.mxu0 %v1459
        %1920 = vmatprep.subr.mxu0 0.0
        %1921 = vmatpush2.msra.mxu0 %v1458
        %1922 = vmatprep.subr.mxu0 0.0
        %1923 = vmatpush2.msra.mxu0 %v1457
        %1924 = vmatprep.subr.mxu0 0.0
        %1925 = vmatpush2.msra.mxu0 %v1456
        %1926 = vmatprep.subr.mxu0 0.0
        %1927 = vmatpush2.msra.mxu0 %v1455
        %1928 = vmatprep.subr.mxu0 0.0
        %1929 = vmatpush2.msra.mxu0 %v1454
        %1930 = vmatprep.subr.mxu0 0.0
        %1931 = vmatpush2.msra.mxu0 %v1453
        %1932 = vmatprep.subr.mxu0 0.0
        %1933 = vmatpush2.msra.mxu0 %v1452
        %1934 = vmatprep.subr.mxu0 0.0
        %1935 = vmatpush2.msra.mxu0 %v1451
        %1936 = vmatprep.subr.mxu0 0.0
        %1937 = vmatpush2.msra.mxu0 %v1450
        %1938 = vmatprep.subr.mxu0 0.0
        %1939 = vmatpush2.msra.mxu0 %v1449
        %1940 = vmatprep.subr.mxu0 0.0
        %1941 = vmatpush2.msra.mxu0 %v1448
        %1942 = vmatprep.subr.mxu0 0.0
        %1943 = vmatpush2.msra.mxu0 %v1447
        %1944 = vmatprep.subr.mxu0 0.0
        %1945 = vmatpush2.msra.mxu0 %v1446
        %1946 = vmatprep.subr.mxu0 0.0
        %1947 = vmatpush2.msra.mxu0 %v1445
        %1948 = vmatprep.mubr.f32.mxu0 %v1402
        %1949 = vmatmul.mubr.f32.gmra.mxu0 %v1401
        %v1950 = vpop.f32.mrf.mxu0
        %v1951 = vadd.f32 %v1882, %v1950
        %v1952 = vpop.f32.mrf.mxu0
        %1953 = vdwg.mxu0
        %1954 = vmatprep.subr.mxu0 0.0
        %1955 = vmatpush1.msra.mxu0 %v1476
        %1956 = vmatprep.subr.mxu0 0.0
        %1957 = vmatpush1.msra.mxu0 %v1475
        %1958 = vmatprep.subr.mxu0 0.0
        %1959 = vmatpush1.msra.mxu0 %v1474
        %1960 = vmatprep.subr.mxu0 0.0
        %1961 = vmatpush1.msra.mxu0 %v1473
        %1962 = vmatprep.subr.mxu0 0.0
        %1963 = vmatpush1.msra.mxu0 %v1472
        %1964 = vmatprep.subr.mxu0 0.0
        %1965 = vmatpush1.msra.mxu0 %v1471
        %1966 = vmatprep.subr.mxu0 0.0
        %1967 = vmatpush1.msra.mxu0 %v1470
        %1968 = vmatprep.subr.mxu0 0.0
        %1969 = vmatpush1.msra.mxu0 %v1469
        %1970 = vmatprep.subr.mxu0 0.0
        %1971 = vmatpush1.msra.mxu0 %v1468
        %1972 = vmatprep.subr.mxu0 0.0
        %1973 = vmatpush1.msra.mxu0 %v1467
        %1974 = vmatprep.subr.mxu0 0.0
        %1975 = vmatpush1.msra.mxu0 %v1466
        %1976 = vmatprep.subr.mxu0 0.0
        %1977 = vmatpush1.msra.mxu0 %v1465
        %1978 = vmatprep.subr.mxu0 0.0
        %1979 = vmatpush1.msra.mxu0 %v1464
        %1980 = vmatprep.subr.mxu0 0.0
        %1981 = vmatpush1.msra.mxu0 %v1463
        %1982 = vmatprep.subr.mxu0 0.0
        %1983 = vmatpush1.msra.mxu0 %v1462
        %1984 = vmatprep.subr.mxu0 0.0
        %1985 = vmatpush1.msra.mxu0 %v1461
        %1986 = vmatprep.subr.mxu0 0.0
        %1987 = vmatpush2.msra.mxu0 %v1492
        %1988 = vmatprep.subr.mxu0 0.0
        %1989 = vmatpush2.msra.mxu0 %v1491
        %1990 = vmatprep.subr.mxu0 0.0
        %1991 = vmatpush2.msra.mxu0 %v1490
        %1992 = vmatprep.subr.mxu0 0.0
        %1993 = vmatpush2.msra.mxu0 %v1489
        %1994 = vmatprep.subr.mxu0 0.0
        %1995 = vmatpush2.msra.mxu0 %v1488
        %1996 = vmatprep.subr.mxu0 0.0
        %1997 = vmatpush2.msra.mxu0 %v1487
        %1998 = vmatprep.subr.mxu0 0.0
        %1999 = vmatpush2.msra.mxu0 %v1486
        %2000 = vmatprep.subr.mxu0 0.0
        %2001 = vmatpush2.msra.mxu0 %v1485
        %2002 = vmatprep.subr.mxu0 0.0
        %2003 = vmatpush2.msra.mxu0 %v1484
        %2004 = vmatprep.subr.mxu0 0.0
        %2005 = vmatpush2.msra.mxu0 %v1483
        %2006 = vmatprep.subr.mxu0 0.0
        %2007 = vmatpush2.msra.mxu0 %v1482
        %2008 = vmatprep.subr.mxu0 0.0
        %2009 = vmatpush2.msra.mxu0 %v1481
        %2010 = vmatprep.subr.mxu0 0.0
        %2011 = vmatpush2.msra.mxu0 %v1480
        %2012 = vmatprep.subr.mxu0 0.0
        %2013 = vmatpush2.msra.mxu0 %v1479
        %2014 = vmatprep.subr.mxu0 0.0
        %2015 = vmatpush2.msra.mxu0 %v1478
        %2016 = vmatprep.subr.mxu0 0.0
        %2017 = vmatpush2.msra.mxu0 %v1477
        %2018 = vmatprep.mubr.f32.mxu0 %v1404
        %2019 = vmatmul.mubr.f32.gmra.mxu0 %v1403
        %v2020 = vpop.f32.mrf.mxu0
        %v2021 = vadd.f32 %v1951, %v2020
        %v2022 = vpop.f32.mrf.mxu0
        %2023 = vdwg.mxu0
        %2024 = vmatprep.subr.mxu0 0.0
        %2025 = vmatpush1.msra.mxu0 %v1508
        %2026 = vmatprep.subr.mxu0 0.0
        %2027 = vmatpush1.msra.mxu0 %v1507
        %2028 = vmatprep.subr.mxu0 0.0
        %2029 = vmatpush1.msra.mxu0 %v1506
        %2030 = vmatprep.subr.mxu0 0.0
        %2031 = vmatpush1.msra.mxu0 %v1505
        %2032 = vmatprep.subr.mxu0 0.0
        %2033 = vmatpush1.msra.mxu0 %v1504
        %2034 = vmatprep.subr.mxu0 0.0
        %2035 = vmatpush1.msra.mxu0 %v1503
        %2036 = vmatprep.subr.mxu0 0.0
        %2037 = vmatpush1.msra.mxu0 %v1502
        %2038 = vmatprep.subr.mxu0 0.0
        %2039 = vmatpush1.msra.mxu0 %v1501
        %2040 = vmatprep.subr.mxu0 0.0
        %2041 = vmatpush1.msra.mxu0 %v1500
        %2042 = vmatprep.subr.mxu0 0.0
        %2043 = vmatpush1.msra.mxu0 %v1499
        %2044 = vmatprep.subr.mxu0 0.0
        %2045 = vmatpush1.msra.mxu0 %v1498
        %2046 = vmatprep.subr.mxu0 0.0
        %2047 = vmatpush1.msra.mxu0 %v1497
        %2048 = vmatprep.subr.mxu0 0.0
        %2049 = vmatpush1.msra.mxu0 %v1496
        %2050 = vmatprep.subr.mxu0 0.0
        %2051 = vmatpush1.msra.mxu0 %v1495
        %2052 = vmatprep.subr.mxu0 0.0
        %2053 = vmatpush1.msra.mxu0 %v1494
        %2054 = vmatprep.subr.mxu0 0.0
        %2055 = vmatpush1.msra.mxu0 %v1493
        %2056 = vmatprep.subr.mxu0 0.0
        %2057 = vmatpush2.msra.mxu0 %v1524
        %2058 = vmatprep.subr.mxu0 0.0
        %2059 = vmatpush2.msra.mxu0 %v1523
        %2060 = vmatprep.subr.mxu0 0.0
        %2061 = vmatpush2.msra.mxu0 %v1522
        %2062 = vmatprep.subr.mxu0 0.0
        %2063 = vmatpush2.msra.mxu0 %v1521
        %2064 = vmatprep.subr.mxu0 0.0
        %2065 = vmatpush2.msra.mxu0 %v1520
        %2066 = vmatprep.subr.mxu0 0.0
        %2067 = vmatpush2.msra.mxu0 %v1519
        %2068 = vmatprep.subr.mxu0 0.0
        %2069 = vmatpush2.msra.mxu0 %v1518
        %2070 = vmatprep.subr.mxu0 0.0
        %2071 = vmatpush2.msra.mxu0 %v1517
        %2072 = vmatprep.subr.mxu0 0.0
        %2073 = vmatpush2.msra.mxu0 %v1516
        %2074 = vmatprep.subr.mxu0 0.0
        %2075 = vmatpush2.msra.mxu0 %v1515
        %2076 = vmatprep.subr.mxu0 0.0
        %2077 = vmatpush2.msra.mxu0 %v1514
        %2078 = vmatprep.subr.mxu0 0.0
        %2079 = vmatpush2.msra.mxu0 %v1513
        %2080 = vmatprep.subr.mxu0 0.0
        %2081 = vmatpush2.msra.mxu0 %v1512
        %2082 = vmatprep.subr.mxu0 0.0
        %2083 = vmatpush2.msra.mxu0 %v1511
        %2084 = vmatprep.subr.mxu0 0.0
        %2085 = vmatpush2.msra.mxu0 %v1510
        %2086 = vmatprep.subr.mxu0 0.0
        %2087 = vmatpush2.msra.mxu0 %v1509
        %2088 = vmatprep.mubr.f32.mxu0 %v1406
        %2089 = vmatmul.mubr.f32.gmra.mxu0 %v1405
        %v2090 = vpop.f32.mrf.mxu0
        %v2091 = vadd.f32 %v2021, %v2090
        %v2092 = vpop.f32.mrf.mxu0
        %2093 = vdwg.mxu0
        %2094 = vmatprep.subr.mxu0 0.0
        %2095 = vmatpush1.msra.mxu0 %v1540
        %2096 = vmatprep.subr.mxu0 0.0
        %2097 = vmatpush1.msra.mxu0 %v1539
        %2098 = vmatprep.subr.mxu0 0.0
        %2099 = vmatpush1.msra.mxu0 %v1538
        %2100 = vmatprep.subr.mxu0 0.0
        %2101 = vmatpush1.msra.mxu0 %v1537
        %2102 = vmatprep.subr.mxu0 0.0
        %2103 = vmatpush1.msra.mxu0 %v1536
        %2104 = vmatprep.subr.mxu0 0.0
        %2105 = vmatpush1.msra.mxu0 %v1535
        %2106 = vmatprep.subr.mxu0 0.0
        %2107 = vmatpush1.msra.mxu0 %v1534
        %2108 = vmatprep.subr.mxu0 0.0
        %2109 = vmatpush1.msra.mxu0 %v1533
        %2110 = vmatprep.subr.mxu0 0.0
        %2111 = vmatpush1.msra.mxu0 %v1532
        %2112 = vmatprep.subr.mxu0 0.0
        %2113 = vmatpush1.msra.mxu0 %v1531
        %2114 = vmatprep.subr.mxu0 0.0
        %2115 = vmatpush1.msra.mxu0 %v1530
        %2116 = vmatprep.subr.mxu0 0.0
        %2117 = vmatpush1.msra.mxu0 %v1529
        %2118 = vmatprep.subr.mxu0 0.0
        %2119 = vmatpush1.msra.mxu0 %v1528
        %2120 = vmatprep.subr.mxu0 0.0
        %2121 = vmatpush1.msra.mxu0 %v1527
        %2122 = vmatprep.subr.mxu0 0.0
        %2123 = vmatpush1.msra.mxu0 %v1526
        %2124 = vmatprep.subr.mxu0 0.0
        %2125 = vmatpush1.msra.mxu0 %v1525
        %2126 = vmatprep.subr.mxu0 0.0
        %2127 = vmatpush2.msra.mxu0 %v1556
        %2128 = vmatprep.subr.mxu0 0.0
        %2129 = vmatpush2.msra.mxu0 %v1555
        %2130 = vmatprep.subr.mxu0 0.0
        %2131 = vmatpush2.msra.mxu0 %v1554
        %2132 = vmatprep.subr.mxu0 0.0
        %2133 = vmatpush2.msra.mxu0 %v1553
        %2134 = vmatprep.subr.mxu0 0.0
        %2135 = vmatpush2.msra.mxu0 %v1552
        %2136 = vmatprep.subr.mxu0 0.0
        %2137 = vmatpush2.msra.mxu0 %v1551
        %2138 = vmatprep.subr.mxu0 0.0
        %2139 = vmatpush2.msra.mxu0 %v1550
        %2140 = vmatprep.subr.mxu0 0.0
        %2141 = vmatpush2.msra.mxu0 %v1549
        %2142 = vmatprep.subr.mxu0 0.0
        %2143 = vmatpush2.msra.mxu0 %v1548
        %2144 = vmatprep.subr.mxu0 0.0
        %2145 = vmatpush2.msra.mxu0 %v1547
        %2146 = vmatprep.subr.mxu0 0.0
        %2147 = vmatpush2.msra.mxu0 %v1546
        %2148 = vmatprep.subr.mxu0 0.0
        %2149 = vmatpush2.msra.mxu0 %v1545
        %2150 = vmatprep.subr.mxu0 0.0
        %2151 = vmatpush2.msra.mxu0 %v1544
        %2152 = vmatprep.subr.mxu0 0.0
        %2153 = vmatpush2.msra.mxu0 %v1543
        %2154 = vmatprep.subr.mxu0 0.0
        %2155 = vmatpush2.msra.mxu0 %v1542
        %2156 = vmatprep.subr.mxu0 0.0
        %2157 = vmatpush2.msra.mxu0 %v1541
        %2158 = vmatprep.mubr.f32.mxu0 %v1408
        %2159 = vmatmul.mubr.f32.gmra.mxu0 %v1407
        %v2160 = vpop.f32.mrf.mxu0
        %v2161 = vadd.f32 %v2091, %v2160
        %v2162 = vpop.f32.mrf.mxu0
        %2163 = vdwg.mxu0
        %2164 = vmatprep.subr.mxu0 0.0
        %2165 = vmatpush1.msra.mxu0 %v1572
        %2166 = vmatprep.subr.mxu0 0.0
        %2167 = vmatpush1.msra.mxu0 %v1571
        %2168 = vmatprep.subr.mxu0 0.0
        %2169 = vmatpush1.msra.mxu0 %v1570
        %2170 = vmatprep.subr.mxu0 0.0
        %2171 = vmatpush1.msra.mxu0 %v1569
        %2172 = vmatprep.subr.mxu0 0.0
        %2173 = vmatpush1.msra.mxu0 %v1568
        %2174 = vmatprep.subr.mxu0 0.0
        %2175 = vmatpush1.msra.mxu0 %v1567
        %2176 = vmatprep.subr.mxu0 0.0
        %2177 = vmatpush1.msra.mxu0 %v1566
        %2178 = vmatprep.subr.mxu0 0.0
        %2179 = vmatpush1.msra.mxu0 %v1565
        %2180 = vmatprep.subr.mxu0 0.0
        %2181 = vmatpush1.msra.mxu0 %v1564
        %2182 = vmatprep.subr.mxu0 0.0
        %2183 = vmatpush1.msra.mxu0 %v1563
        %2184 = vmatprep.subr.mxu0 0.0
        %2185 = vmatpush1.msra.mxu0 %v1562
        %2186 = vmatprep.subr.mxu0 0.0
        %2187 = vmatpush1.msra.mxu0 %v1561
        %2188 = vmatprep.subr.mxu0 0.0
        %2189 = vmatpush1.msra.mxu0 %v1560
        %2190 = vmatprep.subr.mxu0 0.0
        %2191 = vmatpush1.msra.mxu0 %v1559
        %2192 = vmatprep.subr.mxu0 0.0
        %2193 = vmatpush1.msra.mxu0 %v1558
        %2194 = vmatprep.subr.mxu0 0.0
        %2195 = vmatpush1.msra.mxu0 %v1557
        %2196 = vmatprep.subr.mxu0 0.0
        %2197 = vmatpush2.msra.mxu0 %v1588
        %2198 = vmatprep.subr.mxu0 0.0
        %2199 = vmatpush2.msra.mxu0 %v1587
        %2200 = vmatprep.subr.mxu0 0.0
        %2201 = vmatpush2.msra.mxu0 %v1586
        %2202 = vmatprep.subr.mxu0 0.0
        %2203 = vmatpush2.msra.mxu0 %v1585
        %2204 = vmatprep.subr.mxu0 0.0
        %2205 = vmatpush2.msra.mxu0 %v1584
        %2206 = vmatprep.subr.mxu0 0.0
        %2207 = vmatpush2.msra.mxu0 %v1583
        %2208 = vmatprep.subr.mxu0 0.0
        %2209 = vmatpush2.msra.mxu0 %v1582
        %2210 = vmatprep.subr.mxu0 0.0
        %2211 = vmatpush2.msra.mxu0 %v1581
        %2212 = vmatprep.subr.mxu0 0.0
        %2213 = vmatpush2.msra.mxu0 %v1580
        %2214 = vmatprep.subr.mxu0 0.0
        %2215 = vmatpush2.msra.mxu0 %v1579
        %2216 = vmatprep.subr.mxu0 0.0
        %2217 = vmatpush2.msra.mxu0 %v1578
        %2218 = vmatprep.subr.mxu0 0.0
        %2219 = vmatpush2.msra.mxu0 %v1577
        %2220 = vmatprep.subr.mxu0 0.0
        %2221 = vmatpush2.msra.mxu0 %v1576
        %2222 = vmatprep.subr.mxu0 0.0
        %2223 = vmatpush2.msra.mxu0 %v1575
        %2224 = vmatprep.subr.mxu0 0.0
        %2225 = vmatpush2.msra.mxu0 %v1574
        %2226 = vmatprep.subr.mxu0 0.0
        %2227 = vmatpush2.msra.mxu0 %v1573
        %2228 = vmatprep.mubr.f32.mxu0 %v1410
        %2229 = vmatmul.mubr.f32.gmra.mxu0 %v1409
        %v2230 = vpop.f32.mrf.mxu0
        %v2231 = vadd.f32 %v2161, %v2230
        %v2232 = vpop.f32.mrf.mxu0
        %2233 = vdwg.mxu0
        %2234 = vmatprep.subr.mxu0 0.0
        %2235 = vmatpush1.msra.mxu0 %v1604
        %2236 = vmatprep.subr.mxu0 0.0
        %2237 = vmatpush1.msra.mxu0 %v1603
        %2238 = vmatprep.subr.mxu0 0.0
        %2239 = vmatpush1.msra.mxu0 %v1602
        %2240 = vmatprep.subr.mxu0 0.0
        %2241 = vmatpush1.msra.mxu0 %v1601
        %2242 = vmatprep.subr.mxu0 0.0
        %2243 = vmatpush1.msra.mxu0 %v1600
        %2244 = vmatprep.subr.mxu0 0.0
        %2245 = vmatpush1.msra.mxu0 %v1599
        %2246 = vmatprep.subr.mxu0 0.0
        %2247 = vmatpush1.msra.mxu0 %v1598
        %2248 = vmatprep.subr.mxu0 0.0
        %2249 = vmatpush1.msra.mxu0 %v1597
        %2250 = vmatprep.subr.mxu0 0.0
        %2251 = vmatpush1.msra.mxu0 %v1596
        %2252 = vmatprep.subr.mxu0 0.0
        %2253 = vmatpush1.msra.mxu0 %v1595
        %2254 = vmatprep.subr.mxu0 0.0
        %2255 = vmatpush1.msra.mxu0 %v1594
        %2256 = vmatprep.subr.mxu0 0.0
        %2257 = vmatpush1.msra.mxu0 %v1593
        %2258 = vmatprep.subr.mxu0 0.0
        %2259 = vmatpush1.msra.mxu0 %v1592
        %2260 = vmatprep.subr.mxu0 0.0
        %2261 = vmatpush1.msra.mxu0 %v1591
        %2262 = vmatprep.subr.mxu0 0.0
        %2263 = vmatpush1.msra.mxu0 %v1590
        %2264 = vmatprep.subr.mxu0 0.0
        %2265 = vmatpush1.msra.mxu0 %v1589
        %2266 = vmatprep.subr.mxu0 0.0
        %2267 = vmatpush2.msra.mxu0 %v1620
        %2268 = vmatprep.subr.mxu0 0.0
        %2269 = vmatpush2.msra.mxu0 %v1619
        %2270 = vmatprep.subr.mxu0 0.0
        %2271 = vmatpush2.msra.mxu0 %v1618
        %2272 = vmatprep.subr.mxu0 0.0
        %2273 = vmatpush2.msra.mxu0 %v1617
        %2274 = vmatprep.subr.mxu0 0.0
        %2275 = vmatpush2.msra.mxu0 %v1616
        %2276 = vmatprep.subr.mxu0 0.0
        %2277 = vmatpush2.msra.mxu0 %v1615
        %2278 = vmatprep.subr.mxu0 0.0
        %2279 = vmatpush2.msra.mxu0 %v1614
        %2280 = vmatprep.subr.mxu0 0.0
        %2281 = vmatpush2.msra.mxu0 %v1613
        %2282 = vmatprep.subr.mxu0 0.0
        %2283 = vmatpush2.msra.mxu0 %v1612
        %2284 = vmatprep.subr.mxu0 0.0
        %2285 = vmatpush2.msra.mxu0 %v1611
        %2286 = vmatprep.subr.mxu0 0.0
        %2287 = vmatpush2.msra.mxu0 %v1610
        %2288 = vmatprep.subr.mxu0 0.0
        %2289 = vmatpush2.msra.mxu0 %v1609
        %2290 = vmatprep.subr.mxu0 0.0
        %2291 = vmatpush2.msra.mxu0 %v1608
        %2292 = vmatprep.subr.mxu0 0.0
        %2293 = vmatpush2.msra.mxu0 %v1607
        %2294 = vmatprep.subr.mxu0 0.0
        %2295 = vmatpush2.msra.mxu0 %v1606
        %2296 = vmatprep.subr.mxu0 0.0
        %2297 = vmatpush2.msra.mxu0 %v1605
        %2298 = vmatprep.mubr.f32.mxu0 %v1412
        %2299 = vmatmul.mubr.f32.gmra.mxu0 %v1411
        %v2300 = vpop.f32.mrf.mxu0
        %v2301 = vadd.f32 %v2231, %v2300
        %v2302 = vpop.f32.mrf.mxu0
        %2303 = vdwg.mxu0
        %2304 = vmatprep.subr.mxu0 0.0
        %2305 = vmatpush1.msra.mxu0 %v1636
        %2306 = vmatprep.subr.mxu0 0.0
        %2307 = vmatpush1.msra.mxu0 %v1635
        %2308 = vmatprep.subr.mxu0 0.0
        %2309 = vmatpush1.msra.mxu0 %v1634
        %2310 = vmatprep.subr.mxu0 0.0
        %2311 = vmatpush1.msra.mxu0 %v1633
        %2312 = vmatprep.subr.mxu0 0.0
        %2313 = vmatpush1.msra.mxu0 %v1632
        %2314 = vmatprep.subr.mxu0 0.0
        %2315 = vmatpush1.msra.mxu0 %v1631
        %2316 = vmatprep.subr.mxu0 0.0
        %2317 = vmatpush1.msra.mxu0 %v1630
        %2318 = vmatprep.subr.mxu0 0.0
        %2319 = vmatpush1.msra.mxu0 %v1629
        %2320 = vmatprep.subr.mxu0 0.0
        %2321 = vmatpush1.msra.mxu0 %v1628
        %2322 = vmatprep.subr.mxu0 0.0
        %2323 = vmatpush1.msra.mxu0 %v1627
        %2324 = vmatprep.subr.mxu0 0.0
        %2325 = vmatpush1.msra.mxu0 %v1626
        %2326 = vmatprep.subr.mxu0 0.0
        %2327 = vmatpush1.msra.mxu0 %v1625
        %2328 = vmatprep.subr.mxu0 0.0
        %2329 = vmatpush1.msra.mxu0 %v1624
        %2330 = vmatprep.subr.mxu0 0.0
        %2331 = vmatpush1.msra.mxu0 %v1623
        %2332 = vmatprep.subr.mxu0 0.0
        %2333 = vmatpush1.msra.mxu0 %v1622
        %2334 = vmatprep.subr.mxu0 0.0
        %2335 = vmatpush1.msra.mxu0 %v1621
        %2336 = vmatprep.subr.mxu0 0.0
        %2337 = vmatpush2.msra.mxu0 %v1652
        %2338 = vmatprep.subr.mxu0 0.0
        %2339 = vmatpush2.msra.mxu0 %v1651
        %2340 = vmatprep.subr.mxu0 0.0
        %2341 = vmatpush2.msra.mxu0 %v1650
        %2342 = vmatprep.subr.mxu0 0.0
        %2343 = vmatpush2.msra.mxu0 %v1649
        %2344 = vmatprep.subr.mxu0 0.0
        %2345 = vmatpush2.msra.mxu0 %v1648
        %2346 = vmatprep.subr.mxu0 0.0
        %2347 = vmatpush2.msra.mxu0 %v1647
        %2348 = vmatprep.subr.mxu0 0.0
        %2349 = vmatpush2.msra.mxu0 %v1646
        %2350 = vmatprep.subr.mxu0 0.0
        %2351 = vmatpush2.msra.mxu0 %v1645
        %2352 = vmatprep.subr.mxu0 0.0
        %2353 = vmatpush2.msra.mxu0 %v1644
        %2354 = vmatprep.subr.mxu0 0.0
        %2355 = vmatpush2.msra.mxu0 %v1643
        %2356 = vmatprep.subr.mxu0 0.0
        %2357 = vmatpush2.msra.mxu0 %v1642
        %2358 = vmatprep.subr.mxu0 0.0
        %2359 = vmatpush2.msra.mxu0 %v1641
        %2360 = vmatprep.subr.mxu0 0.0
        %2361 = vmatpush2.msra.mxu0 %v1640
        %2362 = vmatprep.subr.mxu0 0.0
        %2363 = vmatpush2.msra.mxu0 %v1639
        %2364 = vmatprep.subr.mxu0 0.0
        %2365 = vmatpush2.msra.mxu0 %v1638
        %2366 = vmatprep.subr.mxu0 0.0
        %2367 = vmatpush2.msra.mxu0 %v1637
        %2368 = vmatprep.mubr.f32.mxu0 %v1414
        %2369 = vmatmul.mubr.f32.gmra.mxu0 %v1413
        %v2370 = vpop.f32.mrf.mxu0
        %v2371 = vadd.f32 %v2301, %v2370
        %v2372 = vpop.f32.mrf.mxu0
        %2373 = vdwg.mxu0
        %2374 = vmatprep.subr.mxu0 0.0
        %2375 = vmatpush1.msra.mxu0 %v1668
        %2376 = vmatprep.subr.mxu0 0.0
        %2377 = vmatpush1.msra.mxu0 %v1667
        %2378 = vmatprep.subr.mxu0 0.0
        %2379 = vmatpush1.msra.mxu0 %v1666
        %2380 = vmatprep.subr.mxu0 0.0
        %2381 = vmatpush1.msra.mxu0 %v1665
        %2382 = vmatprep.subr.mxu0 0.0
        %2383 = vmatpush1.msra.mxu0 %v1664
        %2384 = vmatprep.subr.mxu0 0.0
        %2385 = vmatpush1.msra.mxu0 %v1663
        %2386 = vmatprep.subr.mxu0 0.0
        %2387 = vmatpush1.msra.mxu0 %v1662
        %2388 = vmatprep.subr.mxu0 0.0
        %2389 = vmatpush1.msra.mxu0 %v1661
        %2390 = vmatprep.subr.mxu0 0.0
        %2391 = vmatpush1.msra.mxu0 %v1660
        %2392 = vmatprep.subr.mxu0 0.0
        %2393 = vmatpush1.msra.mxu0 %v1659
        %2394 = vmatprep.subr.mxu0 0.0
        %2395 = vmatpush1.msra.mxu0 %v1658
        %2396 = vmatprep.subr.mxu0 0.0
        %2397 = vmatpush1.msra.mxu0 %v1657
        %2398 = vmatprep.subr.mxu0 0.0
        %2399 = vmatpush1.msra.mxu0 %v1656
        %2400 = vmatprep.subr.mxu0 0.0
        %2401 = vmatpush1.msra.mxu0 %v1655
        %2402 = vmatprep.subr.mxu0 0.0
        %2403 = vmatpush1.msra.mxu0 %v1654
        %2404 = vmatprep.subr.mxu0 0.0
        %2405 = vmatpush1.msra.mxu0 %v1653
        %2406 = vmatprep.subr.mxu0 0.0
        %2407 = vmatpush2.msra.mxu0 %v1684
        %2408 = vmatprep.subr.mxu0 0.0
        %2409 = vmatpush2.msra.mxu0 %v1683
        %2410 = vmatprep.subr.mxu0 0.0
        %2411 = vmatpush2.msra.mxu0 %v1682
        %2412 = vmatprep.subr.mxu0 0.0
        %2413 = vmatpush2.msra.mxu0 %v1681
        %2414 = vmatprep.subr.mxu0 0.0
        %2415 = vmatpush2.msra.mxu0 %v1680
        %2416 = vmatprep.subr.mxu0 0.0
        %2417 = vmatpush2.msra.mxu0 %v1679
        %2418 = vmatprep.subr.mxu0 0.0
        %2419 = vmatpush2.msra.mxu0 %v1678
        %2420 = vmatprep.subr.mxu0 0.0
        %2421 = vmatpush2.msra.mxu0 %v1677
        %2422 = vmatprep.subr.mxu0 0.0
        %2423 = vmatpush2.msra.mxu0 %v1676
        %2424 = vmatprep.subr.mxu0 0.0
        %2425 = vmatpush2.msra.mxu0 %v1675
        %2426 = vmatprep.subr.mxu0 0.0
        %2427 = vmatpush2.msra.mxu0 %v1674
        %2428 = vmatprep.subr.mxu0 0.0
        %2429 = vmatpush2.msra.mxu0 %v1673
        %2430 = vmatprep.subr.mxu0 0.0
        %2431 = vmatpush2.msra.mxu0 %v1672
        %2432 = vmatprep.subr.mxu0 0.0
        %2433 = vmatpush2.msra.mxu0 %v1671
        %2434 = vmatprep.subr.mxu0 0.0
        %2435 = vmatpush2.msra.mxu0 %v1670
        %2436 = vmatprep.subr.mxu0 0.0
        %2437 = vmatpush2.msra.mxu0 %v1669
        %2438 = vmatprep.mubr.f32.mxu0 %v1416
        %2439 = vmatmul.mubr.f32.gmra.mxu0 %v1415
        %v2440 = vpop.f32.mrf.mxu0
        %v2441 = vadd.f32 %v2371, %v2440
        %v2442 = vpop.f32.mrf.mxu0
        %2443 = vdwg.mxu0
        %2444 = vmatprep.subr.mxu0 0.0
        %2445 = vmatpush1.msra.mxu0 %v1700
        %2446 = vmatprep.subr.mxu0 0.0
        %2447 = vmatpush1.msra.mxu0 %v1699
        %2448 = vmatprep.subr.mxu0 0.0
        %2449 = vmatpush1.msra.mxu0 %v1698
        %2450 = vmatprep.subr.mxu0 0.0
        %2451 = vmatpush1.msra.mxu0 %v1697
        %2452 = vmatprep.subr.mxu0 0.0
        %2453 = vmatpush1.msra.mxu0 %v1696
        %2454 = vmatprep.subr.mxu0 0.0
        %2455 = vmatpush1.msra.mxu0 %v1695
        %2456 = vmatprep.subr.mxu0 0.0
        %2457 = vmatpush1.msra.mxu0 %v1694
        %2458 = vmatprep.subr.mxu0 0.0
        %2459 = vmatpush1.msra.mxu0 %v1693
        %2460 = vmatprep.subr.mxu0 0.0
        %2461 = vmatpush1.msra.mxu0 %v1692
        %2462 = vmatprep.subr.mxu0 0.0
        %2463 = vmatpush1.msra.mxu0 %v1691
        %2464 = vmatprep.subr.mxu0 0.0
        %2465 = vmatpush1.msra.mxu0 %v1690
        %2466 = vmatprep.subr.mxu0 0.0
        %2467 = vmatpush1.msra.mxu0 %v1689
        %2468 = vmatprep.subr.mxu0 0.0
        %2469 = vmatpush1.msra.mxu0 %v1688
        %2470 = vmatprep.subr.mxu0 0.0
        %2471 = vmatpush1.msra.mxu0 %v1687
        %2472 = vmatprep.subr.mxu0 0.0
        %2473 = vmatpush1.msra.mxu0 %v1686
        %2474 = vmatprep.subr.mxu0 0.0
        %2475 = vmatpush1.msra.mxu0 %v1685
        %2476 = vmatprep.subr.mxu0 0.0
        %2477 = vmatpush2.msra.mxu0 %v1716
        %2478 = vmatprep.subr.mxu0 0.0
        %2479 = vmatpush2.msra.mxu0 %v1715
        %2480 = vmatprep.subr.mxu0 0.0
        %2481 = vmatpush2.msra.mxu0 %v1714
        %2482 = vmatprep.subr.mxu0 0.0
        %2483 = vmatpush2.msra.mxu0 %v1713
        %2484 = vmatprep.subr.mxu0 0.0
        %2485 = vmatpush2.msra.mxu0 %v1712
        %2486 = vmatprep.subr.mxu0 0.0
        %2487 = vmatpush2.msra.mxu0 %v1711
        %2488 = vmatprep.subr.mxu0 0.0
        %2489 = vmatpush2.msra.mxu0 %v1710
        %2490 = vmatprep.subr.mxu0 0.0
        %2491 = vmatpush2.msra.mxu0 %v1709
        %2492 = vmatprep.subr.mxu0 0.0
        %2493 = vmatpush2.msra.mxu0 %v1708
        %2494 = vmatprep.subr.mxu0 0.0
        %2495 = vmatpush2.msra.mxu0 %v1707
        %2496 = vmatprep.subr.mxu0 0.0
        %2497 = vmatpush2.msra.mxu0 %v1706
        %2498 = vmatprep.subr.mxu0 0.0
        %2499 = vmatpush2.msra.mxu0 %v1705
        %2500 = vmatprep.subr.mxu0 0.0
        %2501 = vmatpush2.msra.mxu0 %v1704
        %2502 = vmatprep.subr.mxu0 0.0
        %2503 = vmatpush2.msra.mxu0 %v1703
        %2504 = vmatprep.subr.mxu0 0.0
        %2505 = vmatpush2.msra.mxu0 %v1702
        %2506 = vmatprep.subr.mxu0 0.0
        %2507 = vmatpush2.msra.mxu0 %v1701
        %2508 = vmatprep.mubr.f32.mxu0 %v1418
        %2509 = vmatmul.mubr.f32.gmra.mxu0 %v1417
        %v2510 = vpop.f32.mrf.mxu0
        %v2511 = vadd.f32 %v2441, %v2510
        %v2512 = vpop.f32.mrf.mxu0
        %2513 = vdwg.mxu0
        %2514 = vmatprep.subr.mxu0 0.0
        %2515 = vmatpush1.msra.mxu0 %v1732
        %2516 = vmatprep.subr.mxu0 0.0
        %2517 = vmatpush1.msra.mxu0 %v1731
        %2518 = vmatprep.subr.mxu0 0.0
        %2519 = vmatpush1.msra.mxu0 %v1730
        %2520 = vmatprep.subr.mxu0 0.0
        %2521 = vmatpush1.msra.mxu0 %v1729
        %2522 = vmatprep.subr.mxu0 0.0
        %2523 = vmatpush1.msra.mxu0 %v1728
        %2524 = vmatprep.subr.mxu0 0.0
        %2525 = vmatpush1.msra.mxu0 %v1727
        %2526 = vmatprep.subr.mxu0 0.0
        %2527 = vmatpush1.msra.mxu0 %v1726
        %2528 = vmatprep.subr.mxu0 0.0
        %2529 = vmatpush1.msra.mxu0 %v1725
        %2530 = vmatprep.subr.mxu0 0.0
        %2531 = vmatpush1.msra.mxu0 %v1724
        %2532 = vmatprep.subr.mxu0 0.0
        %2533 = vmatpush1.msra.mxu0 %v1723
        %2534 = vmatprep.subr.mxu0 0.0
        %2535 = vmatpush1.msra.mxu0 %v1722
        %2536 = vmatprep.subr.mxu0 0.0
        %2537 = vmatpush1.msra.mxu0 %v1721
        %2538 = vmatprep.subr.mxu0 0.0
        %2539 = vmatpush1.msra.mxu0 %v1720
        %2540 = vmatprep.subr.mxu0 0.0
        %2541 = vmatpush1.msra.mxu0 %v1719
        %2542 = vmatprep.subr.mxu0 0.0
        %2543 = vmatpush1.msra.mxu0 %v1718
        %2544 = vmatprep.subr.mxu0 0.0
        %2545 = vmatpush1.msra.mxu0 %v1717
        %2546 = vmatprep.subr.mxu0 0.0
        %2547 = vmatpush2.msra.mxu0 %v1748
        %2548 = vmatprep.subr.mxu0 0.0
        %2549 = vmatpush2.msra.mxu0 %v1747
        %2550 = vmatprep.subr.mxu0 0.0
        %2551 = vmatpush2.msra.mxu0 %v1746
        %2552 = vmatprep.subr.mxu0 0.0
        %2553 = vmatpush2.msra.mxu0 %v1745
        %2554 = vmatprep.subr.mxu0 0.0
        %2555 = vmatpush2.msra.mxu0 %v1744
        %2556 = vmatprep.subr.mxu0 0.0
        %2557 = vmatpush2.msra.mxu0 %v1743
        %2558 = vmatprep.subr.mxu0 0.0
        %2559 = vmatpush2.msra.mxu0 %v1742
        %2560 = vmatprep.subr.mxu0 0.0
        %2561 = vmatpush2.msra.mxu0 %v1741
        %2562 = vmatprep.subr.mxu0 0.0
        %2563 = vmatpush2.msra.mxu0 %v1740
        %2564 = vmatprep.subr.mxu0 0.0
        %2565 = vmatpush2.msra.mxu0 %v1739
        %2566 = vmatprep.subr.mxu0 0.0
        %2567 = vmatpush2.msra.mxu0 %v1738
        %2568 = vmatprep.subr.mxu0 0.0
        %2569 = vmatpush2.msra.mxu0 %v1737
        %2570 = vmatprep.subr.mxu0 0.0
        %2571 = vmatpush2.msra.mxu0 %v1736
        %2572 = vmatprep.subr.mxu0 0.0
        %2573 = vmatpush2.msra.mxu0 %v1735
        %2574 = vmatprep.subr.mxu0 0.0
        %2575 = vmatpush2.msra.mxu0 %v1734
        %2576 = vmatprep.subr.mxu0 0.0
        %2577 = vmatpush2.msra.mxu0 %v1733
        %2578 = vmatprep.mubr.f32.mxu0 %v1420
        %2579 = vmatmul.mubr.f32.gmra.mxu0 %v1419
        %v2580 = vpop.f32.mrf.mxu0
        %v2581 = vadd.f32 %v2511, %v2580
        %v2582 = vpop.f32.mrf.mxu0
        %2583 = vdwg.mxu0
        %2584 = vmatprep.subr.mxu0 0.0
        %2585 = vmatpush1.msra.mxu0 %v1764
        %2586 = vmatprep.subr.mxu0 0.0
        %2587 = vmatpush1.msra.mxu0 %v1763
        %2588 = vmatprep.subr.mxu0 0.0
        %2589 = vmatpush1.msra.mxu0 %v1762
        %2590 = vmatprep.subr.mxu0 0.0
        %2591 = vmatpush1.msra.mxu0 %v1761
        %2592 = vmatprep.subr.mxu0 0.0
        %2593 = vmatpush1.msra.mxu0 %v1760
        %2594 = vmatprep.subr.mxu0 0.0
        %2595 = vmatpush1.msra.mxu0 %v1759
        %2596 = vmatprep.subr.mxu0 0.0
        %2597 = vmatpush1.msra.mxu0 %v1758
        %2598 = vmatprep.subr.mxu0 0.0
        %2599 = vmatpush1.msra.mxu0 %v1757
        %2600 = vmatprep.subr.mxu0 0.0
        %2601 = vmatpush1.msra.mxu0 %v1756
        %2602 = vmatprep.subr.mxu0 0.0
        %2603 = vmatpush1.msra.mxu0 %v1755
        %2604 = vmatprep.subr.mxu0 0.0
        %2605 = vmatpush1.msra.mxu0 %v1754
        %2606 = vmatprep.subr.mxu0 0.0
        %2607 = vmatpush1.msra.mxu0 %v1753
        %2608 = vmatprep.subr.mxu0 0.0
        %2609 = vmatpush1.msra.mxu0 %v1752
        %2610 = vmatprep.subr.mxu0 0.0
        %2611 = vmatpush1.msra.mxu0 %v1751
        %2612 = vmatprep.subr.mxu0 0.0
        %2613 = vmatpush1.msra.mxu0 %v1750
        %2614 = vmatprep.subr.mxu0 0.0
        %2615 = vmatpush1.msra.mxu0 %v1749
        %2616 = vmatprep.subr.mxu0 0.0
        %2617 = vmatpush2.msra.mxu0 %v1780
        %2618 = vmatprep.subr.mxu0 0.0
        %2619 = vmatpush2.msra.mxu0 %v1779
        %2620 = vmatprep.subr.mxu0 0.0
        %2621 = vmatpush2.msra.mxu0 %v1778
        %2622 = vmatprep.subr.mxu0 0.0
        %2623 = vmatpush2.msra.mxu0 %v1777
        %2624 = vmatprep.subr.mxu0 0.0
        %2625 = vmatpush2.msra.mxu0 %v1776
        %2626 = vmatprep.subr.mxu0 0.0
        %2627 = vmatpush2.msra.mxu0 %v1775
        %2628 = vmatprep.subr.mxu0 0.0
        %2629 = vmatpush2.msra.mxu0 %v1774
        %2630 = vmatprep.subr.mxu0 0.0
        %2631 = vmatpush2.msra.mxu0 %v1773
        %2632 = vmatprep.subr.mxu0 0.0
        %2633 = vmatpush2.msra.mxu0 %v1772
        %2634 = vmatprep.subr.mxu0 0.0
        %2635 = vmatpush2.msra.mxu0 %v1771
        %2636 = vmatprep.subr.mxu0 0.0
        %2637 = vmatpush2.msra.mxu0 %v1770
        %2638 = vmatprep.subr.mxu0 0.0
        %2639 = vmatpush2.msra.mxu0 %v1769
        %2640 = vmatprep.subr.mxu0 0.0
        %2641 = vmatpush2.msra.mxu0 %v1768
        %2642 = vmatprep.subr.mxu0 0.0
        %2643 = vmatpush2.msra.mxu0 %v1767
        %2644 = vmatprep.subr.mxu0 0.0
        %2645 = vmatpush2.msra.mxu0 %v1766
        %2646 = vmatprep.subr.mxu0 0.0
        %2647 = vmatpush2.msra.mxu0 %v1765
        %2648 = vmatprep.mubr.f32.mxu0 %v1422
        %2649 = vmatmul.mubr.f32.gmra.mxu0 %v1421
        %v2650 = vpop.f32.mrf.mxu0
        %v2651 = vadd.f32 %v2581, %v2650
        %v2652 = vpop.f32.mrf.mxu0
        %2653 = vdwg.mxu0
        %2654 = vmatprep.subr.mxu0 0.0
        %2655 = vmatpush1.msra.mxu0 %v1796
        %2656 = vmatprep.subr.mxu0 0.0
        %2657 = vmatpush1.msra.mxu0 %v1795
        %2658 = vmatprep.subr.mxu0 0.0
        %2659 = vmatpush1.msra.mxu0 %v1794
        %2660 = vmatprep.subr.mxu0 0.0
        %2661 = vmatpush1.msra.mxu0 %v1793
        %2662 = vmatprep.subr.mxu0 0.0
        %2663 = vmatpush1.msra.mxu0 %v1792
        %2664 = vmatprep.subr.mxu0 0.0
        %2665 = vmatpush1.msra.mxu0 %v1791
        %2666 = vmatprep.subr.mxu0 0.0
        %2667 = vmatpush1.msra.mxu0 %v1790
        %2668 = vmatprep.subr.mxu0 0.0
        %2669 = vmatpush1.msra.mxu0 %v1789
        %2670 = vmatprep.subr.mxu0 0.0
        %2671 = vmatpush1.msra.mxu0 %v1788
        %2672 = vmatprep.subr.mxu0 0.0
        %2673 = vmatpush1.msra.mxu0 %v1787
        %2674 = vmatprep.subr.mxu0 0.0
        %2675 = vmatpush1.msra.mxu0 %v1786
        %2676 = vmatprep.subr.mxu0 0.0
        %2677 = vmatpush1.msra.mxu0 %v1785
        %2678 = vmatprep.subr.mxu0 0.0
        %2679 = vmatpush1.msra.mxu0 %v1784
        %2680 = vmatprep.subr.mxu0 0.0
        %2681 = vmatpush1.msra.mxu0 %v1783
        %2682 = vmatprep.subr.mxu0 0.0
        %2683 = vmatpush1.msra.mxu0 %v1782
        %2684 = vmatprep.subr.mxu0 0.0
        %2685 = vmatpush1.msra.mxu0 %v1781
        %2686 = vmatprep.subr.mxu0 0.0
        %2687 = vmatpush2.msra.mxu0 %v1812
        %2688 = vmatprep.subr.mxu0 0.0
        %2689 = vmatpush2.msra.mxu0 %v1811
        %2690 = vmatprep.subr.mxu0 0.0
        %2691 = vmatpush2.msra.mxu0 %v1810
        %2692 = vmatprep.subr.mxu0 0.0
        %2693 = vmatpush2.msra.mxu0 %v1809
        %2694 = vmatprep.subr.mxu0 0.0
        %2695 = vmatpush2.msra.mxu0 %v1808
        %2696 = vmatprep.subr.mxu0 0.0
        %2697 = vmatpush2.msra.mxu0 %v1807
        %2698 = vmatprep.subr.mxu0 0.0
        %2699 = vmatpush2.msra.mxu0 %v1806
        %2700 = vmatprep.subr.mxu0 0.0
        %2701 = vmatpush2.msra.mxu0 %v1805
        %2702 = vmatprep.subr.mxu0 0.0
        %2703 = vmatpush2.msra.mxu0 %v1804
        %2704 = vmatprep.subr.mxu0 0.0
        %2705 = vmatpush2.msra.mxu0 %v1803
        %2706 = vmatprep.subr.mxu0 0.0
        %2707 = vmatpush2.msra.mxu0 %v1802
        %2708 = vmatprep.subr.mxu0 0.0
        %2709 = vmatpush2.msra.mxu0 %v1801
        %2710 = vmatprep.subr.mxu0 0.0
        %2711 = vmatpush2.msra.mxu0 %v1800
        %2712 = vmatprep.subr.mxu0 0.0
        %2713 = vmatpush2.msra.mxu0 %v1799
        %2714 = vmatprep.subr.mxu0 0.0
        %2715 = vmatpush2.msra.mxu0 %v1798
        %2716 = vmatprep.subr.mxu0 0.0
        %2717 = vmatpush2.msra.mxu0 %v1797
        %2718 = vmatprep.mubr.f32.mxu0 %v1424
        %2719 = vmatmul.mubr.f32.gmra.mxu0 %v1423
        %v2720 = vpop.f32.mrf.mxu0
        %v2721 = vadd.f32 %v2651, %v2720
        %v2722 = vpop.f32.mrf.mxu0
        %2723 = vdwg.mxu0
        %2724 = vmatprep.subr.mxu0 0.0
        %2725 = vmatpush1.msra.mxu0 %v1828
        %2726 = vmatprep.subr.mxu0 0.0
        %2727 = vmatpush1.msra.mxu0 %v1827
        %2728 = vmatprep.subr.mxu0 0.0
        %2729 = vmatpush1.msra.mxu0 %v1826
        %2730 = vmatprep.subr.mxu0 0.0
        %2731 = vmatpush1.msra.mxu0 %v1825
        %2732 = vmatprep.subr.mxu0 0.0
        %2733 = vmatpush1.msra.mxu0 %v1824
        %2734 = vmatprep.subr.mxu0 0.0
        %2735 = vmatpush1.msra.mxu0 %v1823
        %2736 = vmatprep.subr.mxu0 0.0
        %2737 = vmatpush1.msra.mxu0 %v1822
        %2738 = vmatprep.subr.mxu0 0.0
        %2739 = vmatpush1.msra.mxu0 %v1821
        %2740 = vmatprep.subr.mxu0 0.0
        %2741 = vmatpush1.msra.mxu0 %v1820
        %2742 = vmatprep.subr.mxu0 0.0
        %2743 = vmatpush1.msra.mxu0 %v1819
        %2744 = vmatprep.subr.mxu0 0.0
        %2745 = vmatpush1.msra.mxu0 %v1818
        %2746 = vmatprep.subr.mxu0 0.0
        %2747 = vmatpush1.msra.mxu0 %v1817
        %2748 = vmatprep.subr.mxu0 0.0
        %2749 = vmatpush1.msra.mxu0 %v1816
        %2750 = vmatprep.subr.mxu0 0.0
        %2751 = vmatpush1.msra.mxu0 %v1815
        %2752 = vmatprep.subr.mxu0 0.0
        %2753 = vmatpush1.msra.mxu0 %v1814
        %2754 = vmatprep.subr.mxu0 0.0
        %2755 = vmatpush1.msra.mxu0 %v1813
        %2756 = vmatprep.subr.mxu0 0.0
        %2757 = vmatpush2.msra.mxu0 %v1844
        %2758 = vmatprep.subr.mxu0 0.0
        %2759 = vmatpush2.msra.mxu0 %v1843
        %2760 = vmatprep.subr.mxu0 0.0
        %2761 = vmatpush2.msra.mxu0 %v1842
        %2762 = vmatprep.subr.mxu0 0.0
        %2763 = vmatpush2.msra.mxu0 %v1841
        %2764 = vmatprep.subr.mxu0 0.0
        %2765 = vmatpush2.msra.mxu0 %v1840
        %2766 = vmatprep.subr.mxu0 0.0
        %2767 = vmatpush2.msra.mxu0 %v1839
        %2768 = vmatprep.subr.mxu0 0.0
        %2769 = vmatpush2.msra.mxu0 %v1838
        %2770 = vmatprep.subr.mxu0 0.0
        %2771 = vmatpush2.msra.mxu0 %v1837
        %2772 = vmatprep.subr.mxu0 0.0
        %2773 = vmatpush2.msra.mxu0 %v1836
        %2774 = vmatprep.subr.mxu0 0.0
        %2775 = vmatpush2.msra.mxu0 %v1835
        %2776 = vmatprep.subr.mxu0 0.0
        %2777 = vmatpush2.msra.mxu0 %v1834
        %2778 = vmatprep.subr.mxu0 0.0
        %2779 = vmatpush2.msra.mxu0 %v1833
        %2780 = vmatprep.subr.mxu0 0.0
        %2781 = vmatpush2.msra.mxu0 %v1832
        %2782 = vmatprep.subr.mxu0 0.0
        %2783 = vmatpush2.msra.mxu0 %v1831
        %2784 = vmatprep.subr.mxu0 0.0
        %2785 = vmatpush2.msra.mxu0 %v1830
        %2786 = vmatprep.subr.mxu0 0.0
        %2787 = vmatpush2.msra.mxu0 %v1829
        %2788 = vmatprep.mubr.f32.mxu0 %v1426
        %2789 = vmatmul.mubr.f32.gmra.mxu0 %v1425
        %v2790 = vpop.f32.mrf.mxu0
        %v2791 = vadd.f32 %v2721, %v2790
        %v2792 = vpop.f32.mrf.mxu0
        %2793 = vdwg.mxu0
        %2794 = vmatprep.subr.mxu0 0.0
        %2795 = vmatpush1.msra.mxu0 %v1860
        %2796 = vmatprep.subr.mxu0 0.0
        %2797 = vmatpush1.msra.mxu0 %v1859
        %2798 = vmatprep.subr.mxu0 0.0
        %2799 = vmatpush1.msra.mxu0 %v1858
        %2800 = vmatprep.subr.mxu0 0.0
        %2801 = vmatpush1.msra.mxu0 %v1857
        %2802 = vmatprep.subr.mxu0 0.0
        %2803 = vmatpush1.msra.mxu0 %v1856
        %2804 = vmatprep.subr.mxu0 0.0
        %2805 = vmatpush1.msra.mxu0 %v1855
        %2806 = vmatprep.subr.mxu0 0.0
        %2807 = vmatpush1.msra.mxu0 %v1854
        %2808 = vmatprep.subr.mxu0 0.0
        %2809 = vmatpush1.msra.mxu0 %v1853
        %2810 = vmatprep.subr.mxu0 0.0
        %2811 = vmatpush1.msra.mxu0 %v1852
        %2812 = vmatprep.subr.mxu0 0.0
        %2813 = vmatpush1.msra.mxu0 %v1851
        %2814 = vmatprep.subr.mxu0 0.0
        %2815 = vmatpush1.msra.mxu0 %v1850
        %2816 = vmatprep.subr.mxu0 0.0
        %2817 = vmatpush1.msra.mxu0 %v1849
        %2818 = vmatprep.subr.mxu0 0.0
        %2819 = vmatpush1.msra.mxu0 %v1848
        %2820 = vmatprep.subr.mxu0 0.0
        %2821 = vmatpush1.msra.mxu0 %v1847
        %2822 = vmatprep.subr.mxu0 0.0
        %2823 = vmatpush1.msra.mxu0 %v1846
        %2824 = vmatprep.subr.mxu0 0.0
        %2825 = vmatpush1.msra.mxu0 %v1845
        %2826 = vmatprep.subr.mxu0 0.0
        %2827 = vmatpush2.msra.mxu0 %v1876
        %2828 = vmatprep.subr.mxu0 0.0
        %2829 = vmatpush2.msra.mxu0 %v1875
        %2830 = vmatprep.subr.mxu0 0.0
        %2831 = vmatpush2.msra.mxu0 %v1874
        %2832 = vmatprep.subr.mxu0 0.0
        %2833 = vmatpush2.msra.mxu0 %v1873
        %2834 = vmatprep.subr.mxu0 0.0
        %2835 = vmatpush2.msra.mxu0 %v1872
        %2836 = vmatprep.subr.mxu0 0.0
        %2837 = vmatpush2.msra.mxu0 %v1871
        %2838 = vmatprep.subr.mxu0 0.0
        %2839 = vmatpush2.msra.mxu0 %v1870
        %2840 = vmatprep.subr.mxu0 0.0
        %2841 = vmatpush2.msra.mxu0 %v1869
        %2842 = vmatprep.subr.mxu0 0.0
        %2843 = vmatpush2.msra.mxu0 %v1868
        %2844 = vmatprep.subr.mxu0 0.0
        %2845 = vmatpush2.msra.mxu0 %v1867
        %2846 = vmatprep.subr.mxu0 0.0
        %2847 = vmatpush2.msra.mxu0 %v1866
        %2848 = vmatprep.subr.mxu0 0.0
        %2849 = vmatpush2.msra.mxu0 %v1865
        %2850 = vmatprep.subr.mxu0 0.0
        %2851 = vmatpush2.msra.mxu0 %v1864
        %2852 = vmatprep.subr.mxu0 0.0
        %2853 = vmatpush2.msra.mxu0 %v1863
        %2854 = vmatprep.subr.mxu0 0.0
        %2855 = vmatpush2.msra.mxu0 %v1862
        %2856 = vmatprep.subr.mxu0 0.0
        %2857 = vmatpush2.msra.mxu0 %v1861
        %2858 = vmatprep.mubr.f32.mxu0 %v1428
        %2859 = vmatmul.mubr.f32.gmra.mxu0 %v1427
        %v2860 = vpop.f32.mrf.mxu0
        %v2861 = vadd.f32 %v2791, %v2860
        %v2862 = vpop.f32.mrf.mxu0
        %2863 = vdwg.mxu0
        %v2864 = vmax.f32 %v2861, 0.0
        %v2865 = vld [vmem:[%s5] sm:$0xff]
        %v2866 = vld [vmem:[%s5 + $0x8] sm:$0xff]
        %v2867 = vld [vmem:[%s5 + $0x10] sm:$0xff]
        %v2868 = vld [vmem:[%s5 + $0x18] sm:$0xff]
        %v2869 = vld [vmem:[%s5 + $0x20] sm:$0xff]
        %v2870 = vld [vmem:[%s5 + $0x28] sm:$0xff]
        %v2871 = vld [vmem:[%s5 + $0x30] sm:$0xff]
        %v2872 = vld [vmem:[%s5 + $0x38] sm:$0xff]
        %v2873 = vld [vmem:[%s6] sm:$0x1]
        %v2875 = vlaneseq
        %v2876 = vshrl.u32 %v2875, 7
        %v2877 = vsub.s32 0, %v2876
        %v2878 = vrot.slane %v2873, %v2877
        %vm2880 = vcmask 523264
        %v2882 = vsel %vm2880, %v2864, 0
        %2884 = vmatprep.subr.mxu0 0.0
        %2885 = vmatpush1.msra.mxu0 0.0
        %2886 = vmatprep.subr.mxu0 0.0
        %2887 = vmatpush1.msra.mxu0 0.0
        %2888 = vmatprep.subr.mxu0 0.0
        %2889 = vmatpush1.msra.mxu0 0.0
        %2890 = vmatprep.subr.mxu0 0.0
        %2891 = vmatpush1.msra.mxu0 0.0
        %2892 = vmatprep.subr.mxu0 0.0
        %2893 = vmatpush1.msra.mxu0 0.0
        %2894 = vmatprep.subr.mxu0 0.0
        %2895 = vmatpush1.msra.mxu0 0.0
        %2896 = vmatprep.subr.mxu0 0.0
        %2897 = vmatpush1.msra.mxu0 0.0
        %2898 = vmatprep.subr.mxu0 0.0
        %2899 = vmatpush1.msra.mxu0 0.0
        %2900 = vmatprep.subr.mxu0 0.0
        %2901 = vmatpush1.msra.mxu0 %v2872
        %2902 = vmatprep.subr.mxu0 0.0
        %2903 = vmatpush1.msra.mxu0 %v2871
        %2904 = vmatprep.subr.mxu0 0.0
        %2905 = vmatpush1.msra.mxu0 %v2870
        %2906 = vmatprep.subr.mxu0 0.0
        %2907 = vmatpush1.msra.mxu0 %v2869
        %2908 = vmatprep.subr.mxu0 0.0
        %2909 = vmatpush1.msra.mxu0 %v2868
        %2910 = vmatprep.subr.mxu0 0.0
        %2911 = vmatpush1.msra.mxu0 %v2867
        %2912 = vmatprep.subr.mxu0 0.0
        %2913 = vmatpush1.msra.mxu0 %v2866
        %2914 = vmatprep.subr.mxu0 0.0
        %2915 = vmatpush1.msra.mxu0 %v2865
        %2916 = vmatprep.subr.mxu0 0.0
        %2917 = vmatpush2.msra.mxu0 0.0
        %2918 = vmatprep.subr.mxu0 0.0
        %2919 = vmatpush2.msra.mxu0 0.0
        %2920 = vmatprep.subr.mxu0 0.0
        %2921 = vmatpush2.msra.mxu0 0.0
        %2922 = vmatprep.subr.mxu0 0.0
        %2923 = vmatpush2.msra.mxu0 0.0
        %2924 = vmatprep.subr.mxu0 0.0
        %2925 = vmatpush2.msra.mxu0 0.0
        %2926 = vmatprep.subr.mxu0 0.0
        %2927 = vmatpush2.msra.mxu0 0.0
        %2928 = vmatprep.subr.mxu0 0.0
        %2929 = vmatpush2.msra.mxu0 0.0
        %2930 = vmatprep.subr.mxu0 0.0
        %2931 = vmatpush2.msra.mxu0 0.0
        %2932 = vmatprep.subr.mxu0 0.0
        %2933 = vmatpush2.msra.mxu0 0.0
        %2934 = vmatprep.subr.mxu0 0.0
        %2935 = vmatpush2.msra.mxu0 0.0
        %2936 = vmatprep.subr.mxu0 0.0
        %2937 = vmatpush2.msra.mxu0 0.0
        %2938 = vmatprep.subr.mxu0 0.0
        %2939 = vmatpush2.msra.mxu0 0.0
        %2940 = vmatprep.subr.mxu0 0.0
        %2941 = vmatpush2.msra.mxu0 0.0
        %2942 = vmatprep.subr.mxu0 0.0
        %2943 = vmatpush2.msra.mxu0 0.0
        %2944 = vmatprep.subr.mxu0 0.0
        %2945 = vmatpush2.msra.mxu0 0.0
        %2946 = vmatprep.subr.mxu0 0.0
        %2947 = vmatpush2.msra.mxu0 0.0
        %2948 = vmatprep.mubr.f32.mxu0 0.0
        %2949 = vmatmul.mubr.f32.gmra.mxu0 %v2882
        %v2950 = vpop.f32.mrf.mxu0
        %v2951 = vadd.f32 %v2878, %v2950
        %v2952 = vpop.f32.mrf.mxu0
        %2953 = vdwg.mxu0
        %2954 = vmax.xlane.f32.xlu0 %v2951
        %v2955 = vpop.xlane.xlu0 %2954
        %v2956 = vsub.f32 %v2951, %v2955
        %v2957 = vmul.f32 %v2956, 1.442695
        %v2958 = vpow.pop %v2957
        %2959 = vadd.xlane.f32.xlu0 %v2958
        %v2960 = vpop.xlane.xlu0 %2959
        %v2961 = vrcp.pop %v2960
        %v2962 = vmul.f32 %v2958, %v2961
        %2963 = vst [vmem:[%s274] sm:$0xff] %v2962
        %s2964 = sand.u32 %s181, 1
        %s2965 = scalar_lea.sflag [#allocation4], %s2964
        %s2966 = sand.u32 %s181, 1
        %s2967 = smul.addr %s2966, 8
        %s2968 = scalar_lea.vmem [#allocation3], %s2967
        // Predicated region
        $region49: #{cnn_forward.1} parent=47 // pred_check
          %p2969 = pneg %p191
        $region50: #{cnn_forward.1} parent=47 // pred_check_branch
          %2971 = sbr.rel (%p2969) target = $region52
        $region51: #{cnn_forward.1} parent=47 // pred_region
          %s2973 = ssub.s32 128, 128
          %2974 = vsyncadd %s2965, %s2973
          %s2975 = smul.addr %s21, 128
          %s2976 = scalar_lea.hbm %s7, %s2975
          %s2978 = sshll.u32 %s2968, 4
          %s2979 = int_to_ptr.vmem [resolvable:$true] %s2978
          %2981 = dma.vmem_to_hbm [thread:$0]  %s2979, 128, %s2976, %s2965
        $region52: #{cnn_forward.1} parent=47 // pred_fallthru
          _
      $region48: #{cnn_forward.1} parent=5 // pred_fallthru
        _
      %p2982 = scmp.le.s32.totalorder 2, %s16
      // Predicated region
      $region53: #{cnn_forward.1} parent=5 // pred_check
        %p2983 = pneg %p2982
      $region54: #{cnn_forward.1} parent=5 // pred_check_branch
        %2985 = sbr.rel (%p2983) target = $region56
      $region55: #{cnn_forward.1} parent=5 // pred_region
        %s2986 = ssub.s32 %s16, 2
        // Predicated region
        $region57: #{cnn_forward.1} parent=55 // pred_check
          %p2987 = pneg %p197
        $region58: #{cnn_forward.1} parent=55 // pred_check_branch
          %2989 = sbr.rel (%p2987) target = $region60
        $region59: #{cnn_forward.1} parent=55 // pred_region
          %s2990 = sand.u32 %s182, 1
          %s2991 = scalar_lea.sflag [#allocation4], %s2990
          %s2992 = sand.u32 %s182, 1
          %s2993 = smul.addr %s2992, 8
          %s2994 = scalar_lea.vmem [#allocation3], %s2993
          %2995 = dma.done %s2991, 128
        $region60: #{cnn_forward.1} parent=55 // pred_fallthru
          _
      $region56: #{cnn_forward.1} parent=5 // pred_fallthru
        _
    $region6: #{cnn_forward.1} parent=1 // loop_footer
      %s20 = sadd.s32 1, %s16
    $region7: #{cnn_forward.1} parent=1 // loop_footer_branch
      %15 = sbr.rel target = $region3
    $region8: #{cnn_forward.1} parent=1 // loop_exit
      _
    %2996 = vsyncpa [#allocation4], 1
    %s2997 = scalar_lea.sflag [#allocation4], 1
    %2998 = vsyncpa %s2997, 1

</llo_original>
